<compile_context>
chip_gen: v6e
topology: v6e:2x2x1
jax: 0.10.0
libtpu: 0.0.40
codegen_flags: <defaults>
</compile_context>

<pallas_src>
import numpy as np

import jax
import jax.numpy as jnp
from jax.experimental import pallas as pl
from jax.experimental.pallas import tpu as pltpu

CONV1_OUT = 6    # fixed by the PyTorch module
CONV2_OUT = 16   # fixed by the PyTorch module
FC3_OUT = 19     # fixed by the PyTorch module


def get_filter_size(input_size, kernel_size):
    return int((input_size - (kernel_size - 1)) / 2)


# ---------------------------------------------------------------------------
# Fused forward kernel: one grid step == one block of B samples
# ---------------------------------------------------------------------------
def _make_fused_kernel(OC1, OC2, OW2):
    def kernel(x_ref, w1_ref, b1_ref, w2_ref, b2_ref,
               fw1_ref, fb1_ref, fw2_ref, fb2_ref, fw3_ref, fb3_ref, o_ref):
        cd = w1_ref.dtype
        x = x_ref[...]                                   # (B, H*W*C), compute dtype

        # ---- conv1: kh folded into the contraction; one GEMM per output-row
        # parity, so the 2x2 pool's row reduction is a plain elementwise max.
        acc_e = jnp.dot(x, w1_ref[0], preferred_element_type=jnp.float32)
        acc_o = jnp.dot(x, w1_ref[1], preferred_element_type=jnp.float32)
        y1 = jnp.maximum(jnp.maximum(acc_e, acc_o) + b1_ref[...], 0.0)  # (B, PH1*OW1*OC1)

        # ---- pool1 column reduction via a lane-shifted max; only even-ow
        # columns are valid, the packed conv2 weight has zero rows elsewhere.
        p1 = jnp.maximum(y1[:, :-OC1], y1[:, OC1:]).astype(cd)         # (B, L1)

        # ---- conv2: kh and kw folded into the contraction -> ONE GEMM.
        y2 = jnp.dot(p1, w2_ref[...], preferred_element_type=jnp.float32)
        y2 = jnp.maximum(y2 + b2_ref[...], 0.0)                         # (B, OH2*OW2*OC2)

        # ---- pool2 fused: row max then column max via lane shifts; the sparse
        # valid-position layout is absorbed into the packed fc1 weight.
        rp2 = jnp.maximum(y2[:, :-(OW2 * OC2)], y2[:, OW2 * OC2:])
        feat = jnp.maximum(rp2[:, :-OC2], rp2[:, OC2:]).astype(cd)      # (B, F_sparse)

        # ---- MLP: fc1 -> ReLU -> fc2 -> ReLU -> fc3 (output padded to 128 lanes)
        h = jnp.dot(feat, fw1_ref[...], preferred_element_type=jnp.float32)
        h = jnp.maximum(h + fb1_ref[...], 0.0).astype(cd)
        h = jnp.dot(h, fw2_ref[...], preferred_element_type=jnp.float32)
        h = jnp.maximum(h + fb2_ref[...], 0.0).astype(cd)
        out = jnp.dot(h, fw3_ref[...], preferred_element_type=jnp.float32)
        o_ref[...] = out + fb3_ref[...]                                 # (B, 128) unmasked

    return kernel


# ---------------------------------------------------------------------------
# Parameter packing (host-side numpy, done once outside the hot forward)
# ---------------------------------------------------------------------------
def _pack_conv1(w, H, W, C, PH1, OW1, K):
    # w: (K, K, C, OC1) -> (2, H*W*C, PH1*OW1*OC1)  (block-Toeplitz over rows &
    # width; plane p produces conv1 output rows of parity p for all kh at once).
    OC1 = w.shape[-1]
    out = np.zeros((2, H, W, C, PH1, OW1, OC1), np.float32)
    for p in range(2):
        for i in range(PH1):
            for kh in range(K):
                h = 2 * i + p + kh
                for ow in range(OW1):
                    out[p, h, ow:ow + K, :, i, ow, :] = w[kh]
    return out.reshape(2, H * W * C, PH1 * OW1 * OC1)


def _pack_conv2(w2, PH1, OW1, OC1, OH2, OW2, K):
    # Conv2 consumes the fused-pool1 activation whose lane index is
    # (i*OW1 + ow)*OC1 + c1, valid only at even ow (pooled col = ow // 2).
    # -> (PH1*OW1*OC1 - OC1, OH2*OW2*OC2), zero rows at invalid columns.
    OC2 = w2.shape[-1]
    L1 = PH1 * OW1 * OC1 - OC1
    out = np.zeros((L1, OH2 * OW2 * OC2), np.float32)
    for oh2 in range(OH2):
        for ow2 in range(OW2):
            cb = (oh2 * OW2 + ow2) * OC2
            for kh in range(K):
                for kw in range(K):
                    rb = ((oh2 + kh) * OW1 + 2 * (ow2 + kw)) * OC1
                    out[rb:rb + OC1, cb:cb + OC2] = w2[kh, kw]
    return out


def _pack_fc1(fc1_w, OH2, OW2, OC2):
    # Map the kernel's sparse pooled layout (oh2, ow2, oc2) -- valid only at
    # even (oh2, ow2) -- onto PyTorch's (C, H, W) flatten order; zeros elsewhere.
    PH2, PW2 = OH2 // 2, OW2 // 2
    F_sparse = (OH2 - 1) * OW2 * OC2 - OC2
    out = np.zeros((F_sparse, fc1_w.shape[1]), np.float32)
    for oh2 in range(0, OH2 - 1, 2):
        for ow2 in range(0, OW2 - 1, 2):
            for oc in range(OC2):
                j = (oh2 * OW2 + ow2) * OC2 + oc
                src = oc * (PH2 * PW2) + (oh2 // 2) * PW2 + (ow2 // 2)
                out[j, :] = fc1_w[src, :]
    return out


def pack_params(params, input_size, kernel_size=5, compute_dtype=jnp.float32,
                out_pad=128):
    H, W = input_size
    K = kernel_size
    OC1, OC2 = CONV1_OUT, CONV2_OUT
    OH1, OW1 = H - K + 1, W - K + 1
    PH1, PW1 = OH1 // 2, OW1 // 2
    OH2, OW2 = PH1 - K + 1, PW1 - K + 1
    cd = compute_dtype
    f32 = jnp.float32

    w1 = np.asarray(params["conv1_w"], np.float32)        # (K, K, C, 6)
    w2 = np.asarray(params["conv2_w"], np.float32)        # (K, K, 6, 16)
    C = w1.shape[2]

    # Lane-dense fc3: zero-pad output columns to 128.
    fc3_w = np.asarray(params["fc3_w"], np.float32)
    fc3_b = np.asarray(params["fc3_b"], np.float32).reshape(-1)
    n_out = fc3_w.shape[1]
    pad = max(out_pad, n_out)
    fc3_wp = np.zeros((fc3_w.shape[0], pad), np.float32)
    fc3_wp[:, :n_out] = fc3_w
    fc3_bp = np.zeros((1, pad), np.float32)
    fc3_bp[0, :n_out] = fc3_b

    return {
        "conv1_w": jnp.asarray(_pack_conv1(w1, H, W, C, PH1, OW1, K), cd),
        "conv1_b": jnp.asarray(np.tile(
            np.asarray(params["conv1_b"], np.float32).reshape(-1),
            PH1 * OW1)[None, :], f32),
        "conv2_w": jnp.asarray(_pack_conv2(w2, PH1, OW1, OC1, OH2, OW2, K), cd),
        "conv2_b": jnp.asarray(np.tile(
            np.asarray(params["conv2_b"], np.float32).reshape(-1),
            OH2 * OW2)[None, :], f32),
        "fc1_w": jnp.asarray(_pack_fc1(
            np.asarray(params["fc1_w"], np.float32), OH2, OW2, OC2), cd),
        "fc1_b": jnp.asarray(
            np.asarray(params["fc1_b"], np.float32).reshape(1, -1), f32),
        "fc2_w": jnp.asarray(np.asarray(params["fc2_w"], np.float32), cd),
        "fc2_b": jnp.asarray(
            np.asarray(params["fc2_b"], np.float32).reshape(1, -1), f32),
        "fc3_w": jnp.asarray(fc3_wp, cd),
        "fc3_b": jnp.asarray(fc3_bp, f32),
    }


# ---------------------------------------------------------------------------
# Forward wrapper: one pallas_call for the whole network, batch-blocked grid
# ---------------------------------------------------------------------------
def simple_net_forward(x_nchw, packed, kernel_size=5, num_classes=FC3_OUT,
                       block_b=None):
    N, C, H, W = x_nchw.shape
    K = kernel_size
    OC1, OC2 = CONV1_OUT, CONV2_OUT
    OH1, OW1 = H - K + 1, W - K + 1
    PH1, PW1 = OH1 // 2, OW1 // 2
    OH2, OW2 = PH1 - K + 1, PW1 - K + 1
    assert OH1 % 2 == 0 and OW1 % 2 == 0 and OH2 >= 2 and OW2 >= 2, \
        "unsupported spatial configuration for the fused-pool packing"
    cd = packed["conv1_w"].dtype
    d_pad = packed["fc3_w"].shape[1]

    # Batch block B: multiple of 16 (bf16 sublane tiling), capped at 128 (MXU
    # rows), and chosen so the grid stays >= 2 once N is big enough (v7x TCs).
    if block_b is None:
        if N <= 16:
            block_b = 16
        else:
            block_b = min(128, (-(-N // 2) + 15) // 16 * 16)
    n_blocks = -(-N // block_b)
    n_pad = n_blocks * block_b

    # NCHW -> NHWC -> (N, H*W*C): one contiguous slab per sample; the packed
    # conv1 weight folds kh/kw/c into this single contraction dimension.
    x = jnp.transpose(x_nchw, (0, 2, 3, 1)).reshape(N, H * W * C).astype(cd)
    if n_pad != N:
        x = jnp.pad(x, ((0, n_pad - N), (0, 0)))

    def full(a):  # whole-array VMEM-resident block (constant block index)
        nd = a.ndim
        return pl.BlockSpec(a.shape, lambda n: (0,) * nd)

    kernel = _make_fused_kernel(OC1, OC2, OW2)
    out = pl.pallas_call(
        kernel,
        out_shape=jax.ShapeDtypeStruct((n_pad, d_pad), jnp.float32),
        grid=(n_blocks,),
        in_specs=[
            pl.BlockSpec((block_b, H * W * C), lambda n: (n, 0)),
            full(packed["conv1_w"]), full(packed["conv1_b"]),
            full(packed["conv2_w"]), full(packed["conv2_b"]),
            full(packed["fc1_w"]), full(packed["fc1_b"]),
            full(packed["fc2_w"]), full(packed["fc2_b"]),
            full(packed["fc3_w"]), full(packed["fc3_b"]),
        ],
        out_specs=pl.BlockSpec((block_b, d_pad), lambda n: (n, 0)),
        compiler_params=pltpu.CompilerParams(
            dimension_semantics=("parallel",),          # batch blocks across TCs
            vmem_limit_bytes=32 * 1024 * 1024,          # explicit (v5e default=16MiB)
        ),
    )(x, packed["conv1_w"], packed["conv1_b"],
      packed["conv2_w"], packed["conv2_b"],
      packed["fc1_w"], packed["fc1_b"],
      packed["fc2_w"], packed["fc2_b"],
      packed["fc3_w"], packed["fc3_b"])
    return out[:N, :num_classes]


# ---------------------------------------------------------------------------
# Deterministic parameter init (PyTorch-like uniform(-1/sqrt(fan_in), ...))
# ---------------------------------------------------------------------------
def init_params(key, input_ch, input_size, kernel_size=5):
    K = kernel_size
    fs = []
    for s in input_size:
        t = get_filter_size(s, K)
        fs.append(get_filter_size(t, K))
    fc1_in = 16 * fs[0] * fs[1]
    keys = jax.random.split(key, 10)

    def u(k, shape, fan_in):
        bound = float(fan_in) ** -0.5
        return jax.random.uniform(k, shape, jnp.float32, -bound, bound)

    return {
        "conv1_w": u(keys[0], (K, K, input_ch, 6), input_ch * K * K),
        "conv1_b": u(keys[1], (1, 6), input_ch * K * K),
        "conv2_w": u(keys[2], (K, K, 6, 16), 6 * K * K),
        "conv2_b": u(keys[3], (1, 16), 6 * K * K),
        "fc1_w": u(keys[4], (fc1_in, 120), fc1_in),
        "fc1_b": u(keys[5], (1, 120), fc1_in),
        "fc2_w": u(keys[6], (120, 84), 120),
        "fc2_b": u(keys[7], (1, 84), 120),
        "fc3_w": u(keys[8], (84, FC3_OUT), 84),
        "fc3_b": u(keys[9], (1, FC3_OUT), 84),
    }


# ---------------------------------------------------------------------------
# Pure-JAX reference (mirrors the PyTorch forward) for verification
# ---------------------------------------------------------------------------
def _ref_pool(y):  # NCHW 2x2 max pool with floor, like nn.MaxPool2d(2, 2)
    N, C, H, W = y.shape
    PH, PW = H // 2, W // 2
    y = y[:, :, :PH * 2, :PW * 2].reshape(N, C, PH, 2, PW, 2)
    return jnp.max(y, axis=(3, 5))


def reference_forward(x, params):
    hp = jax.lax.Precision.HIGHEST
    w1 = jnp.transpose(params["conv1_w"], (3, 2, 0, 1))  # OIHW
    y = jax.lax.conv_general_dilated(
        x, w1, (1, 1), "VALID",
        dimension_numbers=("NCHW", "OIHW", "NCHW"), precision=hp)
    y = jnp.maximum(y + params["conv1_b"].reshape(1, -1, 1, 1), 0.0)
    y = _ref_pool(y)
    w2 = jnp.transpose(params["conv2_w"], (3, 2, 0, 1))
    y = jax.lax.conv_general_dilated(
        y, w2, (1, 1), "VALID",
        dimension_numbers=("NCHW", "OIHW", "NCHW"), precision=hp)
    y = jnp.maximum(y + params["conv2_b"].reshape(1, -1, 1, 1), 0.0)
    y = _ref_pool(y)
    y = y.reshape(y.shape[0], -1)
    y = jnp.maximum(jnp.dot(y, params["fc1_w"], precision=hp) + params["fc1_b"], 0.0)
    y = jnp.maximum(jnp.dot(y, params["fc2_w"], precision=hp) + params["fc2_b"], 0.0)
    return jnp.dot(y, params["fc3_w"], precision=hp) + params["fc3_b"]


# ---------------------------------------------------------------------------
if __name__ == "__main__":
    key = jax.random.PRNGKey(0)
    N, C, H, W = 2, 4, 16, 16   # batch=2, channels=4, spatial=16x16
    kx, kp = jax.random.split(key)
    x = jax.random.normal(kx, (N, C, H, W), jnp.float32)
    params = init_params(kp, input_ch=C, input_size=(H, W), kernel_size=5)
    ref = reference_forward(x, params)

    fwd = jax.jit(simple_net_forward)

    # Exact-parity configuration: f32 matmul operands (matches PyTorch f32).
    packed_f32 = pack_params(params, (H, W), compute_dtype=jnp.float32)
    out_f32 = jax.block_until_ready(fwd(x, packed_f32))
    assert out_f32.shape == (N, FC3_OUT), out_f32.shape
    assert jnp.allclose(out_f32, ref, atol=5e-3, rtol=5e-3), (
        float(jnp.max(jnp.abs(out_f32 - ref))))

    # Performance configuration (v6e/v7x): bf16 MXU operands, f32 accumulation
    # and f32 epilogues (bias / ReLU / max-pool).
    packed_bf16 = pack_params(params, (H, W), compute_dtype=jnp.bfloat16)
    out_bf16 = jax.block_until_ready(fwd(x, packed_bf16))
    assert jnp.allclose(out_bf16, ref, atol=5e-2, rtol=5e-2), (
        float(jnp.max(jnp.abs(out_bf16 - ref))))

    print("KERNEL_OK")
</pallas_src>

<mosaic_0001>
module attributes {stable_mosaic.version = 11 : i64} {
  func.func @kernel(%arg0: i32, %arg1: memref<16x1024xf32, #tpu.memory_space<vmem>>, %arg2: memref<2x1024x432xf32, #tpu.memory_space<vmem>>, %arg3: memref<1x432xf32, #tpu.memory_space<vmem>>, %arg4: memref<426x64xf32, #tpu.memory_space<vmem>>, %arg5: memref<1x64xf32, #tpu.memory_space<vmem>>, %arg6: memref<16x120xf32, #tpu.memory_space<vmem>>, %arg7: memref<1x120xf32, #tpu.memory_space<vmem>>, %arg8: memref<120x84xf32, #tpu.memory_space<vmem>>, %arg9: memref<1x84xf32, #tpu.memory_space<vmem>>, %arg10: memref<84x128xf32, #tpu.memory_space<vmem>>, %arg11: memref<1x128xf32, #tpu.memory_space<vmem>>, %arg12: memref<16x128xf32, #tpu.memory_space<vmem>>) attributes {dimension_semantics = [#tpu.dimension_semantics<parallel>], iteration_bounds = array<i64: 1>, scalar_prefetch = 0 : i64, scratch_operands = 0 : i64, tpu.core_type = #tpu.core_type<tc>, window_params = [{transform_indices = @transform_0, window_bounds = array<i64: 16, 1024>}, {pipeline_mode = #tpu.pipeline_mode<synchronous>, transform_indices = @transform_1, window_bounds = array<i64: 2, 1024, 432>}, {pipeline_mode = #tpu.pipeline_mode<synchronous>, transform_indices = @transform_2, window_bounds = array<i64: 1, 432>}, {pipeline_mode = #tpu.pipeline_mode<synchronous>, transform_indices = @transform_3, window_bounds = array<i64: 426, 64>}, {pipeline_mode = #tpu.pipeline_mode<synchronous>, transform_indices = @transform_4, window_bounds = array<i64: 1, 64>}, {pipeline_mode = #tpu.pipeline_mode<synchronous>, transform_indices = @transform_5, window_bounds = array<i64: 16, 120>}, {pipeline_mode = #tpu.pipeline_mode<synchronous>, transform_indices = @transform_6, window_bounds = array<i64: 1, 120>}, {pipeline_mode = #tpu.pipeline_mode<synchronous>, transform_indices = @transform_7, window_bounds = array<i64: 120, 84>}, {pipeline_mode = #tpu.pipeline_mode<synchronous>, transform_indices = @transform_8, window_bounds = array<i64: 1, 84>}, {pipeline_mode = #tpu.pipeline_mode<synchronous>, transform_indices = @transform_9, window_bounds = array<i64: 84, 128>}, {pipeline_mode = #tpu.pipeline_mode<synchronous>, transform_indices = @transform_10, window_bounds = array<i64: 1, 128>}, {transform_indices = @transform_11, window_bounds = array<i64: 16, 128>}]} {
    %c0 = arith.constant 0 : index
    %c0_0 = arith.constant 0 : index
    %0 = vector.load %arg1[%c0, %c0_0] : memref<16x1024xf32, #tpu.memory_space<vmem>>, vector<16x1024xf32>
    %c0_1 = arith.constant 0 : index
    %c0_2 = arith.constant 0 : index
    %c0_3 = arith.constant 0 : index
    %1 = vector.load %arg2[%c0_1, %c0_2, %c0_3] : memref<2x1024x432xf32, #tpu.memory_space<vmem>>, vector<1x1024x432xf32>
    %2 = vector.shape_cast %1 : vector<1x1024x432xf32> to vector<1024x432xf32>
    %cst = arith.constant dense<0.000000e+00> : vector<16x432xf32>
    %3 = tpu.matmul %0, %2, %cst {dimension_numbers = #tpu.dot_dimension_numbers<[1], [0], [0], [1], [0, 0, 1, 1], [], []>} : vector<16x1024xf32>, vector<1024x432xf32>, vector<16x432xf32> -> vector<16x432xf32>
    %c1 = arith.constant 1 : index
    %c0_4 = arith.constant 0 : index
    %c0_5 = arith.constant 0 : index
    %4 = vector.load %arg2[%c1, %c0_4, %c0_5] : memref<2x1024x432xf32, #tpu.memory_space<vmem>>, vector<1x1024x432xf32>
    %5 = vector.shape_cast %4 : vector<1x1024x432xf32> to vector<1024x432xf32>
    %cst_6 = arith.constant dense<0.000000e+00> : vector<16x432xf32>
    %6 = tpu.matmul %0, %5, %cst_6 {dimension_numbers = #tpu.dot_dimension_numbers<[1], [0], [0], [1], [0, 0, 1, 1], [], []>} : vector<16x1024xf32>, vector<1024x432xf32>, vector<16x432xf32> -> vector<16x432xf32>
    %7 = arith.maximumf %3, %6 : vector<16x432xf32>
    %c0_7 = arith.constant 0 : index
    %c0_8 = arith.constant 0 : index
    %8 = vector.load %arg3[%c0_7, %c0_8] : memref<1x432xf32, #tpu.memory_space<vmem>>, vector<1x432xf32>
    %9 = vector.broadcast %8 : vector<1x432xf32> to vector<16x432xf32>
    %10 = arith.addf %7, %9 : vector<16x432xf32>
    %cst_9 = arith.constant 0.000000e+00 : f32
    %11 = vector.broadcast %cst_9 : f32 to vector<16x432xf32>
    %12 = arith.maximumf %10, %11 : vector<16x432xf32>
    %13 = vector.extract_strided_slice %12 {offsets = [0, 0], sizes = [16, 426], strides = [1, 1]} : vector<16x432xf32> to vector<16x426xf32>
    %14 = vector.extract_strided_slice %12 {offsets = [0, 6], sizes = [16, 426], strides = [1, 1]} : vector<16x432xf32> to vector<16x426xf32>
    %15 = arith.maximumf %13, %14 : vector<16x426xf32>
    %c0_10 = arith.constant 0 : index
    %c0_11 = arith.constant 0 : index
    %16 = vector.load %arg4[%c0_10, %c0_11] : memref<426x64xf32, #tpu.memory_space<vmem>>, vector<426x64xf32>
    %cst_12 = arith.constant dense<0.000000e+00> : vector<16x64xf32>
    %17 = tpu.matmul %15, %16, %cst_12 {dimension_numbers = #tpu.dot_dimension_numbers<[1], [0], [0], [1], [0, 0, 1, 1], [], []>} : vector<16x426xf32>, vector<426x64xf32>, vector<16x64xf32> -> vector<16x64xf32>
    %c0_13 = arith.constant 0 : index
    %c0_14 = arith.constant 0 : index
    %18 = vector.load %arg5[%c0_13, %c0_14] : memref<1x64xf32, #tpu.memory_space<vmem>>, vector<1x64xf32>
    %19 = vector.broadcast %18 : vector<1x64xf32> to vector<16x64xf32>
    %20 = arith.addf %17, %19 : vector<16x64xf32>
    %cst_15 = arith.constant 0.000000e+00 : f32
    %21 = vector.broadcast %cst_15 : f32 to vector<16x64xf32>
    %22 = arith.maximumf %20, %21 : vector<16x64xf32>
    %23 = vector.extract_strided_slice %22 {offsets = [0, 0], sizes = [16, 32], strides = [1, 1]} : vector<16x64xf32> to vector<16x32xf32>
    %24 = vector.extract_strided_slice %22 {offsets = [0, 32], sizes = [16, 32], strides = [1, 1]} : vector<16x64xf32> to vector<16x32xf32>
    %25 = arith.maximumf %23, %24 : vector<16x32xf32>
    %26 = vector.extract_strided_slice %25 {offsets = [0, 0], sizes = [16, 16], strides = [1, 1]} : vector<16x32xf32> to vector<16x16xf32>
    %27 = vector.extract_strided_slice %25 {offsets = [0, 16], sizes = [16, 16], strides = [1, 1]} : vector<16x32xf32> to vector<16x16xf32>
    %28 = arith.maximumf %26, %27 : vector<16x16xf32>
    %c0_16 = arith.constant 0 : index
    %c0_17 = arith.constant 0 : index
    %29 = vector.load %arg6[%c0_16, %c0_17] : memref<16x120xf32, #tpu.memory_space<vmem>>, vector<16x120xf32>
    %cst_18 = arith.constant dense<0.000000e+00> : vector<16x120xf32>
    %30 = tpu.matmul %28, %29, %cst_18 {dimension_numbers = #tpu.dot_dimension_numbers<[1], [0], [0], [1], [0, 0, 1, 1], [], []>} : vector<16x16xf32>, vector<16x120xf32>, vector<16x120xf32> -> vector<16x120xf32>
    %c0_19 = arith.constant 0 : index
    %c0_20 = arith.constant 0 : index
    %31 = vector.load %arg7[%c0_19, %c0_20] : memref<1x120xf32, #tpu.memory_space<vmem>>, vector<1x120xf32>
    %32 = vector.broadcast %31 : vector<1x120xf32> to vector<16x120xf32>
    %33 = arith.addf %30, %32 : vector<16x120xf32>
    %cst_21 = arith.constant 0.000000e+00 : f32
    %34 = vector.broadcast %cst_21 : f32 to vector<16x120xf32>
    %35 = arith.maximumf %33, %34 : vector<16x120xf32>
    %c0_22 = arith.constant 0 : index
    %c0_23 = arith.constant 0 : index
    %36 = vector.load %arg8[%c0_22, %c0_23] : memref<120x84xf32, #tpu.memory_space<vmem>>, vector<120x84xf32>
    %cst_24 = arith.constant dense<0.000000e+00> : vector<16x84xf32>
    %37 = tpu.matmul %35, %36, %cst_24 {dimension_numbers = #tpu.dot_dimension_numbers<[1], [0], [0], [1], [0, 0, 1, 1], [], []>} : vector<16x120xf32>, vector<120x84xf32>, vector<16x84xf32> -> vector<16x84xf32>
    %c0_25 = arith.constant 0 : index
    %c0_26 = arith.constant 0 : index
    %38 = vector.load %arg9[%c0_25, %c0_26] : memref<1x84xf32, #tpu.memory_space<vmem>>, vector<1x84xf32>
    %39 = vector.broadcast %38 : vector<1x84xf32> to vector<16x84xf32>
    %40 = arith.addf %37, %39 : vector<16x84xf32>
    %cst_27 = arith.constant 0.000000e+00 : f32
    %41 = vector.broadcast %cst_27 : f32 to vector<16x84xf32>
    %42 = arith.maximumf %40, %41 : vector<16x84xf32>
    %c0_28 = arith.constant 0 : index
    %c0_29 = arith.constant 0 : index
    %43 = vector.load %arg10[%c0_28, %c0_29] : memref<84x128xf32, #tpu.memory_space<vmem>>, vector<84x128xf32>
    %cst_30 = arith.constant dense<0.000000e+00> : vector<16x128xf32>
    %44 = tpu.matmul %42, %43, %cst_30 {dimension_numbers = #tpu.dot_dimension_numbers<[1], [0], [0], [1], [0, 0, 1, 1], [], []>} : vector<16x84xf32>, vector<84x128xf32>, vector<16x128xf32> -> vector<16x128xf32>
    %c0_31 = arith.constant 0 : index
    %c0_32 = arith.constant 0 : index
    %45 = vector.load %arg11[%c0_31, %c0_32] : memref<1x128xf32, #tpu.memory_space<vmem>>, vector<1x128xf32>
    %46 = vector.broadcast %45 : vector<1x128xf32> to vector<16x128xf32>
    %47 = arith.addf %44, %46 : vector<16x128xf32>
    %c0_33 = arith.constant 0 : index
    %c0_34 = arith.constant 0 : index
    %48 = vector.load %arg12[%c0_33, %c0_34] : memref<16x128xf32, #tpu.memory_space<vmem>>, vector<16x128xf32>
    tpu.vector_store %arg12[%c0_33, %c0_34], %47 {strides = array<i32>} : memref<16x128xf32, #tpu.memory_space<vmem>>, vector<16x128xf32>,
    return
  }
  func.func @transform_0(%arg0: i32) -> (i32, i32) {
    %c0_i32 = arith.constant 0 : i32
    %c0_i32_0 = arith.constant 0 : i32
    return %arg0, %c0_i32 : i32, i32
  }
  func.func @transform_1(%arg0: i32) -> (i32, i32, i32) {
    %c0_i32 = arith.constant 0 : i32
    %c0_i32_0 = arith.constant 0 : i32
    %c0_i32_1 = arith.constant 0 : i32
    %c0_i32_2 = arith.constant 0 : i32
    return %c0_i32, %c0_i32_0, %c0_i32_1 : i32, i32, i32
  }
  func.func @transform_2(%arg0: i32) -> (i32, i32) {
    %c0_i32 = arith.constant 0 : i32
    %c0_i32_0 = arith.constant 0 : i32
    %c0_i32_1 = arith.constant 0 : i32
    return %c0_i32, %c0_i32_0 : i32, i32
  }
  func.func @transform_3(%arg0: i32) -> (i32, i32) {
    %c0_i32 = arith.constant 0 : i32
    %c0_i32_0 = arith.constant 0 : i32
    %c0_i32_1 = arith.constant 0 : i32
    return %c0_i32, %c0_i32_0 : i32, i32
  }
  func.func @transform_4(%arg0: i32) -> (i32, i32) {
    %c0_i32 = arith.constant 0 : i32
    %c0_i32_0 = arith.constant 0 : i32
    %c0_i32_1 = arith.constant 0 : i32
    return %c0_i32, %c0_i32_0 : i32, i32
  }
  func.func @transform_5(%arg0: i32) -> (i32, i32) {
    %c0_i32 = arith.constant 0 : i32
    %c0_i32_0 = arith.constant 0 : i32
    %c0_i32_1 = arith.constant 0 : i32
    return %c0_i32, %c0_i32_0 : i32, i32
  }
  func.func @transform_6(%arg0: i32) -> (i32, i32) {
    %c0_i32 = arith.constant 0 : i32
    %c0_i32_0 = arith.constant 0 : i32
    %c0_i32_1 = arith.constant 0 : i32
    return %c0_i32, %c0_i32_0 : i32, i32
  }
  func.func @transform_7(%arg0: i32) -> (i32, i32) {
    %c0_i32 = arith.constant 0 : i32
    %c0_i32_0 = arith.constant 0 : i32
    %c0_i32_1 = arith.constant 0 : i32
    return %c0_i32, %c0_i32_0 : i32, i32
  }
  func.func @transform_8(%arg0: i32) -> (i32, i32) {
    %c0_i32 = arith.constant 0 : i32
    %c0_i32_0 = arith.constant 0 : i32
    %c0_i32_1 = arith.constant 0 : i32
    return %c0_i32, %c0_i32_0 : i32, i32
  }
  func.func @transform_9(%arg0: i32) -> (i32, i32) {
    %c0_i32 = arith.constant 0 : i32
    %c0_i32_0 = arith.constant 0 : i32
    %c0_i32_1 = arith.constant 0 : i32
    return %c0_i32, %c0_i32_0 : i32, i32
  }
  func.func @transform_10(%arg0: i32) -> (i32, i32) {
    %c0_i32 = arith.constant 0 : i32
    %c0_i32_0 = arith.constant 0 : i32
    %c0_i32_1 = arith.constant 0 : i32
    return %c0_i32, %c0_i32_0 : i32, i32
  }
  func.func @transform_11(%arg0: i32) -> (i32, i32) {
    %c0_i32 = arith.constant 0 : i32
    %c0_i32_0 = arith.constant 0 : i32
    return %arg0, %c0_i32 : i32, i32
  }
}

</mosaic_0001>

<llo_original>
// kernel: simple_net_forward.1
$region0: #{simple_net_forward.1}
  #allocation0 [shape = 'u32[]', space=smem, size = 0x4, offset = 0x4, fixed_abs, tag = 'smem constant byte address 0x4 - core index']
  #allocation1 [shape = 'u32[144,128]{1,0:T(1,128)}', space=vmem, size = 0x12000, scoped, tag = 'internal scratch']
  %s0 = inlined_call_operand.vmem [shape: f32[16,1024], index: 0, kind: input, shape index: {}]
  %s1 = inlined_call_operand.vmem [shape: f32[2,1024,432], index: 1, kind: input, shape index: {}]
  %s2 = inlined_call_operand.vmem [shape: f32[1,432], index: 2, kind: input, shape index: {}]
  %s3 = inlined_call_operand.vmem [shape: f32[426,64], index: 3, kind: input, shape index: {}]
  %s4 = inlined_call_operand.vmem [shape: f32[1,64], index: 4, kind: input, shape index: {}]
  %s5 = inlined_call_operand.vmem [shape: f32[16,120], index: 5, kind: input, shape index: {}]
  %s6 = inlined_call_operand.vmem [shape: f32[1,120], index: 6, kind: input, shape index: {}]
  %s7 = inlined_call_operand.vmem [shape: f32[120,84], index: 7, kind: input, shape index: {}]
  %s8 = inlined_call_operand.vmem [shape: f32[1,84], index: 8, kind: input, shape index: {}]
  %s9 = inlined_call_operand.vmem [shape: f32[84,128], index: 9, kind: input, shape index: {}]
  %s10 = inlined_call_operand.vmem [shape: f32[1,128], index: 10, kind: input, shape index: {}]
  %s11 = inlined_call_operand.vmem [shape: f32[16,128], index: 11, kind: output, shape index: {}]
  %s12 = sld [smem:[#allocation0]]
  $region54: #{simple_net_forward.1} parent=0
    _
  %s14 = ssub.s32 1, %s12
  %s15 = scalar_select 0, %s14, %s12
  // Predicated region
  $region2: #{simple_net_forward.1} parent=0 // pred_check
    _
  $region3: #{simple_net_forward.1} parent=0 // pred_check_branch
    %17 = sbr.rel (0) target = $region5
  $region4: #{simple_net_forward.1} parent=0 // pred_region
    _
  $region5: #{simple_net_forward.1} parent=0 // pred_fallthru
    _
  // Predicated region
  $region6: #{simple_net_forward.1} parent=0 // pred_check
    _
  $region7: #{simple_net_forward.1} parent=0 // pred_check_branch
    %19 = sbr.rel (0) target = $region9
  $region8: #{simple_net_forward.1} parent=0 // pred_region
    _
  $region9: #{simple_net_forward.1} parent=0 // pred_fallthru
    _
  // Predicated region
  $region10: #{simple_net_forward.1} parent=0 // pred_check
    _
  $region11: #{simple_net_forward.1} parent=0 // pred_check_branch
    %21 = sbr.rel (0) target = $region13
  $region12: #{simple_net_forward.1} parent=0 // pred_region
    _
  $region13: #{simple_net_forward.1} parent=0 // pred_fallthru
    _
  // Predicated region
  $region14: #{simple_net_forward.1} parent=0 // pred_check
    _
  $region15: #{simple_net_forward.1} parent=0 // pred_check_branch
    %23 = sbr.rel (0) target = $region17
  $region16: #{simple_net_forward.1} parent=0 // pred_region
    _
  $region17: #{simple_net_forward.1} parent=0 // pred_fallthru
    _
  // Predicated region
  $region18: #{simple_net_forward.1} parent=0 // pred_check
    _
  $region19: #{simple_net_forward.1} parent=0 // pred_check_branch
    %25 = sbr.rel (0) target = $region21
  $region20: #{simple_net_forward.1} parent=0 // pred_region
    _
  $region21: #{simple_net_forward.1} parent=0 // pred_fallthru
    _
  // Predicated region
  $region22: #{simple_net_forward.1} parent=0 // pred_check
    _
  $region23: #{simple_net_forward.1} parent=0 // pred_check_branch
    %27 = sbr.rel (0) target = $region25
  $region24: #{simple_net_forward.1} parent=0 // pred_region
    _
  $region25: #{simple_net_forward.1} parent=0 // pred_fallthru
    _
  // Predicated region
  $region26: #{simple_net_forward.1} parent=0 // pred_check
    _
  $region27: #{simple_net_forward.1} parent=0 // pred_check_branch
    %29 = sbr.rel (0) target = $region29
  $region28: #{simple_net_forward.1} parent=0 // pred_region
    _
  $region29: #{simple_net_forward.1} parent=0 // pred_fallthru
    _
  // Predicated region
  $region30: #{simple_net_forward.1} parent=0 // pred_check
    _
  $region31: #{simple_net_forward.1} parent=0 // pred_check_branch
    %31 = sbr.rel (0) target = $region33
  $region32: #{simple_net_forward.1} parent=0 // pred_region
    _
  $region33: #{simple_net_forward.1} parent=0 // pred_fallthru
    _
  // Predicated region
  $region34: #{simple_net_forward.1} parent=0 // pred_check
    _
  $region35: #{simple_net_forward.1} parent=0 // pred_check_branch
    %33 = sbr.rel (0) target = $region37
  $region36: #{simple_net_forward.1} parent=0 // pred_region
    _
  $region37: #{simple_net_forward.1} parent=0 // pred_fallthru
    _
  // Predicated region
  $region38: #{simple_net_forward.1} parent=0 // pred_check
    _
  $region39: #{simple_net_forward.1} parent=0 // pred_check_branch
    %35 = sbr.rel (0) target = $region41
  $region40: #{simple_net_forward.1} parent=0 // pred_region
    _
  $region41: #{simple_net_forward.1} parent=0 // pred_fallthru
    _
  // Predicated region
  $region42: #{simple_net_forward.1} parent=0 // pred_check
    _
  $region43: #{simple_net_forward.1} parent=0 // pred_check_branch
    %37 = sbr.rel (0) target = $region45
  $region44: #{simple_net_forward.1} parent=0 // pred_region
    _
  $region45: #{simple_net_forward.1} parent=0 // pred_fallthru
    _
  %v38 = vld [vmem:[%s0] sm:$0xff]
  %v39 = vld [vmem:[%s0 + $0x8] sm:$0xff]
  %v40 = vld [vmem:[%s0 + $0x10] sm:$0xff]
  %v41 = vld [vmem:[%s0 + $0x18] sm:$0xff]
  %v42 = vld [vmem:[%s0 + $0x20] sm:$0xff]
  %v43 = vld [vmem:[%s0 + $0x28] sm:$0xff]
  %v44 = vld [vmem:[%s0 + $0x30] sm:$0xff]
  %v45 = vld [vmem:[%s0 + $0x38] sm:$0xff]
  %v46 = vld [vmem:[%s0 + $0x40] sm:$0xff]
  %v47 = vld [vmem:[%s0 + $0x48] sm:$0xff]
  %v48 = vld [vmem:[%s0 + $0x50] sm:$0xff]
  %v49 = vld [vmem:[%s0 + $0x58] sm:$0xff]
  %v50 = vld [vmem:[%s0 + $0x60] sm:$0xff]
  %v51 = vld [vmem:[%s0 + $0x68] sm:$0xff]
  %v52 = vld [vmem:[%s0 + $0x70] sm:$0xff]
  %v53 = vld [vmem:[%s0 + $0x78] sm:$0xff]
  %v54 = vld [vmem:[%s1] sm:$0xff]
  %v55 = vld [vmem:[%s1 + $0x8] sm:$0xff]
  %v56 = vld [vmem:[%s1 + $0x10] sm:$0xff]
  %v57 = vld [vmem:[%s1 + $0x18] sm:$0xff]
  %v58 = vld [vmem:[%s1 + $0x20] sm:$0xff]
  %v59 = vld [vmem:[%s1 + $0x28] sm:$0xff]
  %v60 = vld [vmem:[%s1 + $0x30] sm:$0xff]
  %v61 = vld [vmem:[%s1 + $0x38] sm:$0xff]
  %v62 = vld [vmem:[%s1 + $0x40] sm:$0xff]
  %v63 = vld [vmem:[%s1 + $0x48] sm:$0xff]
  %v64 = vld [vmem:[%s1 + $0x50] sm:$0xff]
  %v65 = vld [vmem:[%s1 + $0x58] sm:$0xff]
  %v66 = vld [vmem:[%s1 + $0x60] sm:$0xff]
  %v67 = vld [vmem:[%s1 + $0x68] sm:$0xff]
  %v68 = vld [vmem:[%s1 + $0x70] sm:$0xff]
  %v69 = vld [vmem:[%s1 + $0x78] sm:$0xff]
  %v70 = vld [vmem:[%s1 + $0x80] sm:$0xff]
  %v71 = vld [vmem:[%s1 + $0x88] sm:$0xff]
  %v72 = vld [vmem:[%s1 + $0x90] sm:$0xff]
  %v73 = vld [vmem:[%s1 + $0x98] sm:$0xff]
  %v74 = vld [vmem:[%s1 + $0xa0] sm:$0xff]
  %v75 = vld [vmem:[%s1 + $0xa8] sm:$0xff]
  %v76 = vld [vmem:[%s1 + $0xb0] sm:$0xff]
  %v77 = vld [vmem:[%s1 + $0xb8] sm:$0xff]
  %v78 = vld [vmem:[%s1 + $0xc0] sm:$0xff]
  %v79 = vld [vmem:[%s1 + $0xc8] sm:$0xff]
  %v80 = vld [vmem:[%s1 + $0xd0] sm:$0xff]
  %v81 = vld [vmem:[%s1 + $0xd8] sm:$0xff]
  %v82 = vld [vmem:[%s1 + $0xe0] sm:$0xff]
  %v83 = vld [vmem:[%s1 + $0xe8] sm:$0xff]
  %v84 = vld [vmem:[%s1 + $0xf0] sm:$0xff]
  %v85 = vld [vmem:[%s1 + $0xf8] sm:$0xff]
  %v86 = vld [vmem:[%s1 + $0x100] sm:$0xff]
  %v87 = vld [vmem:[%s1 + $0x108] sm:$0xff]
  %v88 = vld [vmem:[%s1 + $0x110] sm:$0xff]
  %v89 = vld [vmem:[%s1 + $0x118] sm:$0xff]
  %v90 = vld [vmem:[%s1 + $0x120] sm:$0xff]
  %v91 = vld [vmem:[%s1 + $0x128] sm:$0xff]
  %v92 = vld [vmem:[%s1 + $0x130] sm:$0xff]
  %v93 = vld [vmem:[%s1 + $0x138] sm:$0xff]
  %v94 = vld [vmem:[%s1 + $0x140] sm:$0xff]
  %v95 = vld [vmem:[%s1 + $0x148] sm:$0xff]
  %v96 = vld [vmem:[%s1 + $0x150] sm:$0xff]
  %v97 = vld [vmem:[%s1 + $0x158] sm:$0xff]
  %v98 = vld [vmem:[%s1 + $0x160] sm:$0xff]
  %v99 = vld [vmem:[%s1 + $0x168] sm:$0xff]
  %v100 = vld [vmem:[%s1 + $0x170] sm:$0xff]
  %v101 = vld [vmem:[%s1 + $0x178] sm:$0xff]
  %v102 = vld [vmem:[%s1 + $0x180] sm:$0xff]
  %v103 = vld [vmem:[%s1 + $0x188] sm:$0xff]
  %v104 = vld [vmem:[%s1 + $0x190] sm:$0xff]
  %v105 = vld [vmem:[%s1 + $0x198] sm:$0xff]
  %v106 = vld [vmem:[%s1 + $0x1a0] sm:$0xff]
  %v107 = vld [vmem:[%s1 + $0x1a8] sm:$0xff]
  %v108 = vld [vmem:[%s1 + $0x1b0] sm:$0xff]
  %v109 = vld [vmem:[%s1 + $0x1b8] sm:$0xff]
  %v110 = vld [vmem:[%s1 + $0x1c0] sm:$0xff]
  %v111 = vld [vmem:[%s1 + $0x1c8] sm:$0xff]
  %v112 = vld [vmem:[%s1 + $0x1d0] sm:$0xff]
  %v113 = vld [vmem:[%s1 + $0x1d8] sm:$0xff]
  %v114 = vld [vmem:[%s1 + $0x1e0] sm:$0xff]
  %v115 = vld [vmem:[%s1 + $0x1e8] sm:$0xff]
  %v116 = vld [vmem:[%s1 + $0x1f0] sm:$0xff]
  %v117 = vld [vmem:[%s1 + $0x1f8] sm:$0xff]
  %v118 = vld [vmem:[%s1 + $0x200] sm:$0xff]
  %v119 = vld [vmem:[%s1 + $0x208] sm:$0xff]
  %v120 = vld [vmem:[%s1 + $0x210] sm:$0xff]
  %v121 = vld [vmem:[%s1 + $0x218] sm:$0xff]
  %v122 = vld [vmem:[%s1 + $0x220] sm:$0xff]
  %v123 = vld [vmem:[%s1 + $0x228] sm:$0xff]
  %v124 = vld [vmem:[%s1 + $0x230] sm:$0xff]
  %v125 = vld [vmem:[%s1 + $0x238] sm:$0xff]
  %v126 = vld [vmem:[%s1 + $0x240] sm:$0xff]
  %v127 = vld [vmem:[%s1 + $0x248] sm:$0xff]
  %v128 = vld [vmem:[%s1 + $0x250] sm:$0xff]
  %v129 = vld [vmem:[%s1 + $0x258] sm:$0xff]
  %v130 = vld [vmem:[%s1 + $0x260] sm:$0xff]
  %v131 = vld [vmem:[%s1 + $0x268] sm:$0xff]
  %v132 = vld [vmem:[%s1 + $0x270] sm:$0xff]
  %v133 = vld [vmem:[%s1 + $0x278] sm:$0xff]
  %v134 = vld [vmem:[%s1 + $0x280] sm:$0xff]
  %v135 = vld [vmem:[%s1 + $0x288] sm:$0xff]
  %v136 = vld [vmem:[%s1 + $0x290] sm:$0xff]
  %v137 = vld [vmem:[%s1 + $0x298] sm:$0xff]
  %v138 = vld [vmem:[%s1 + $0x2a0] sm:$0xff]
  %v139 = vld [vmem:[%s1 + $0x2a8] sm:$0xff]
  %v140 = vld [vmem:[%s1 + $0x2b0] sm:$0xff]
  %v141 = vld [vmem:[%s1 + $0x2b8] sm:$0xff]
  %v142 = vld [vmem:[%s1 + $0x2c0] sm:$0xff]
  %v143 = vld [vmem:[%s1 + $0x2c8] sm:$0xff]
  %v144 = vld [vmem:[%s1 + $0x2d0] sm:$0xff]
  %v145 = vld [vmem:[%s1 + $0x2d8] sm:$0xff]
  %v146 = vld [vmem:[%s1 + $0x2e0] sm:$0xff]
  %v147 = vld [vmem:[%s1 + $0x2e8] sm:$0xff]
  %v148 = vld [vmem:[%s1 + $0x2f0] sm:$0xff]
  %v149 = vld [vmem:[%s1 + $0x2f8] sm:$0xff]
  %v150 = vld [vmem:[%s1 + $0x300] sm:$0xff]
  %v151 = vld [vmem:[%s1 + $0x308] sm:$0xff]
  %v152 = vld [vmem:[%s1 + $0x310] sm:$0xff]
  %v153 = vld [vmem:[%s1 + $0x318] sm:$0xff]
  %v154 = vld [vmem:[%s1 + $0x320] sm:$0xff]
  %v155 = vld [vmem:[%s1 + $0x328] sm:$0xff]
  %v156 = vld [vmem:[%s1 + $0x330] sm:$0xff]
  %v157 = vld [vmem:[%s1 + $0x338] sm:$0xff]
  %v158 = vld [vmem:[%s1 + $0x340] sm:$0xff]
  %v159 = vld [vmem:[%s1 + $0x348] sm:$0xff]
  %v160 = vld [vmem:[%s1 + $0x350] sm:$0xff]
  %v161 = vld [vmem:[%s1 + $0x358] sm:$0xff]
  %v162 = vld [vmem:[%s1 + $0x360] sm:$0xff]
  %v163 = vld [vmem:[%s1 + $0x368] sm:$0xff]
  %v164 = vld [vmem:[%s1 + $0x370] sm:$0xff]
  %v165 = vld [vmem:[%s1 + $0x378] sm:$0xff]
  %v166 = vld [vmem:[%s1 + $0x380] sm:$0xff]
  %v167 = vld [vmem:[%s1 + $0x388] sm:$0xff]
  %v168 = vld [vmem:[%s1 + $0x390] sm:$0xff]
  %v169 = vld [vmem:[%s1 + $0x398] sm:$0xff]
  %v170 = vld [vmem:[%s1 + $0x3a0] sm:$0xff]
  %v171 = vld [vmem:[%s1 + $0x3a8] sm:$0xff]
  %v172 = vld [vmem:[%s1 + $0x3b0] sm:$0xff]
  %v173 = vld [vmem:[%s1 + $0x3b8] sm:$0xff]
  %v174 = vld [vmem:[%s1 + $0x3c0] sm:$0xff]
  %v175 = vld [vmem:[%s1 + $0x3c8] sm:$0xff]
  %v176 = vld [vmem:[%s1 + $0x3d0] sm:$0xff]
  %v177 = vld [vmem:[%s1 + $0x3d8] sm:$0xff]
  %v178 = vld [vmem:[%s1 + $0x3e0] sm:$0xff]
  %v179 = vld [vmem:[%s1 + $0x3e8] sm:$0xff]
  %v180 = vld [vmem:[%s1 + $0x3f0] sm:$0xff]
  %v181 = vld [vmem:[%s1 + $0x3f8] sm:$0xff]
  %v182 = vld [vmem:[%s1 + $0x400] sm:$0xff]
  %v183 = vld [vmem:[%s1 + $0x408] sm:$0xff]
  %v184 = vld [vmem:[%s1 + $0x410] sm:$0xff]
  %v185 = vld [vmem:[%s1 + $0x418] sm:$0xff]
  %v186 = vld [vmem:[%s1 + $0x420] sm:$0xff]
  %v187 = vld [vmem:[%s1 + $0x428] sm:$0xff]
  %v188 = vld [vmem:[%s1 + $0x430] sm:$0xff]
  %v189 = vld [vmem:[%s1 + $0x438] sm:$0xff]
  %v190 = vld [vmem:[%s1 + $0x440] sm:$0xff]
  %v191 = vld [vmem:[%s1 + $0x448] sm:$0xff]
  %v192 = vld [vmem:[%s1 + $0x450] sm:$0xff]
  %v193 = vld [vmem:[%s1 + $0x458] sm:$0xff]
  %v194 = vld [vmem:[%s1 + $0x460] sm:$0xff]
  %v195 = vld [vmem:[%s1 + $0x468] sm:$0xff]
  %v196 = vld [vmem:[%s1 + $0x470] sm:$0xff]
  %v197 = vld [vmem:[%s1 + $0x478] sm:$0xff]
  %v198 = vld [vmem:[%s1 + $0x480] sm:$0xff]
  %v199 = vld [vmem:[%s1 + $0x488] sm:$0xff]
  %v200 = vld [vmem:[%s1 + $0x490] sm:$0xff]
  %v201 = vld [vmem:[%s1 + $0x498] sm:$0xff]
  %v202 = vld [vmem:[%s1 + $0x4a0] sm:$0xff]
  %v203 = vld [vmem:[%s1 + $0x4a8] sm:$0xff]
  %v204 = vld [vmem:[%s1 + $0x4b0] sm:$0xff]
  %v205 = vld [vmem:[%s1 + $0x4b8] sm:$0xff]
  %v206 = vld [vmem:[%s1 + $0x4c0] sm:$0xff]
  %v207 = vld [vmem:[%s1 + $0x4c8] sm:$0xff]
  %v208 = vld [vmem:[%s1 + $0x4d0] sm:$0xff]
  %v209 = vld [vmem:[%s1 + $0x4d8] sm:$0xff]
  %v210 = vld [vmem:[%s1 + $0x4e0] sm:$0xff]
  %v211 = vld [vmem:[%s1 + $0x4e8] sm:$0xff]
  %v212 = vld [vmem:[%s1 + $0x4f0] sm:$0xff]
  %v213 = vld [vmem:[%s1 + $0x4f8] sm:$0xff]
  %v214 = vld [vmem:[%s1 + $0x500] sm:$0xff]
  %v215 = vld [vmem:[%s1 + $0x508] sm:$0xff]
  %v216 = vld [vmem:[%s1 + $0x510] sm:$0xff]
  %v217 = vld [vmem:[%s1 + $0x518] sm:$0xff]
  %v218 = vld [vmem:[%s1 + $0x520] sm:$0xff]
  %v219 = vld [vmem:[%s1 + $0x528] sm:$0xff]
  %v220 = vld [vmem:[%s1 + $0x530] sm:$0xff]
  %v221 = vld [vmem:[%s1 + $0x538] sm:$0xff]
  %v222 = vld [vmem:[%s1 + $0x540] sm:$0xff]
  %v223 = vld [vmem:[%s1 + $0x548] sm:$0xff]
  %v224 = vld [vmem:[%s1 + $0x550] sm:$0xff]
  %v225 = vld [vmem:[%s1 + $0x558] sm:$0xff]
  %v226 = vld [vmem:[%s1 + $0x560] sm:$0xff]
  %v227 = vld [vmem:[%s1 + $0x568] sm:$0xff]
  %v228 = vld [vmem:[%s1 + $0x570] sm:$0xff]
  %v229 = vld [vmem:[%s1 + $0x578] sm:$0xff]
  %v230 = vld [vmem:[%s1 + $0x580] sm:$0xff]
  %v231 = vld [vmem:[%s1 + $0x588] sm:$0xff]
  %v232 = vld [vmem:[%s1 + $0x590] sm:$0xff]
  %v233 = vld [vmem:[%s1 + $0x598] sm:$0xff]
  %v234 = vld [vmem:[%s1 + $0x5a0] sm:$0xff]
  %v235 = vld [vmem:[%s1 + $0x5a8] sm:$0xff]
  %v236 = vld [vmem:[%s1 + $0x5b0] sm:$0xff]
  %v237 = vld [vmem:[%s1 + $0x5b8] sm:$0xff]
  %v238 = vld [vmem:[%s1 + $0x5c0] sm:$0xff]
  %v239 = vld [vmem:[%s1 + $0x5c8] sm:$0xff]
  %v240 = vld [vmem:[%s1 + $0x5d0] sm:$0xff]
  %v241 = vld [vmem:[%s1 + $0x5d8] sm:$0xff]
  %v242 = vld [vmem:[%s1 + $0x5e0] sm:$0xff]
  %v243 = vld [vmem:[%s1 + $0x5e8] sm:$0xff]
  %v244 = vld [vmem:[%s1 + $0x5f0] sm:$0xff]
  %v245 = vld [vmem:[%s1 + $0x5f8] sm:$0xff]
  %v246 = vld [vmem:[%s1 + $0x600] sm:$0xff]
  %v247 = vld [vmem:[%s1 + $0x608] sm:$0xff]
  %v248 = vld [vmem:[%s1 + $0x610] sm:$0xff]
  %v249 = vld [vmem:[%s1 + $0x618] sm:$0xff]
  %v250 = vld [vmem:[%s1 + $0x620] sm:$0xff]
  %v251 = vld [vmem:[%s1 + $0x628] sm:$0xff]
  %v252 = vld [vmem:[%s1 + $0x630] sm:$0xff]
  %v253 = vld [vmem:[%s1 + $0x638] sm:$0xff]
  %v254 = vld [vmem:[%s1 + $0x640] sm:$0xff]
  %v255 = vld [vmem:[%s1 + $0x648] sm:$0xff]
  %v256 = vld [vmem:[%s1 + $0x650] sm:$0xff]
  %v257 = vld [vmem:[%s1 + $0x658] sm:$0xff]
  %v258 = vld [vmem:[%s1 + $0x660] sm:$0xff]
  %v259 = vld [vmem:[%s1 + $0x668] sm:$0xff]
  %v260 = vld [vmem:[%s1 + $0x670] sm:$0xff]
  %v261 = vld [vmem:[%s1 + $0x678] sm:$0xff]
  %v262 = vld [vmem:[%s1 + $0x680] sm:$0xff]
  %v263 = vld [vmem:[%s1 + $0x688] sm:$0xff]
  %v264 = vld [vmem:[%s1 + $0x690] sm:$0xff]
  %v265 = vld [vmem:[%s1 + $0x698] sm:$0xff]
  %v266 = vld [vmem:[%s1 + $0x6a0] sm:$0xff]
  %v267 = vld [vmem:[%s1 + $0x6a8] sm:$0xff]
  %v268 = vld [vmem:[%s1 + $0x6b0] sm:$0xff]
  %v269 = vld [vmem:[%s1 + $0x6b8] sm:$0xff]
  %v270 = vld [vmem:[%s1 + $0x6c0] sm:$0xff]
  %v271 = vld [vmem:[%s1 + $0x6c8] sm:$0xff]
  %v272 = vld [vmem:[%s1 + $0x6d0] sm:$0xff]
  %v273 = vld [vmem:[%s1 + $0x6d8] sm:$0xff]
  %v274 = vld [vmem:[%s1 + $0x6e0] sm:$0xff]
  %v275 = vld [vmem:[%s1 + $0x6e8] sm:$0xff]
  %v276 = vld [vmem:[%s1 + $0x6f0] sm:$0xff]
  %v277 = vld [vmem:[%s1 + $0x6f8] sm:$0xff]
  %v278 = vld [vmem:[%s1 + $0x700] sm:$0xff]
  %v279 = vld [vmem:[%s1 + $0x708] sm:$0xff]
  %v280 = vld [vmem:[%s1 + $0x710] sm:$0xff]
  %v281 = vld [vmem:[%s1 + $0x718] sm:$0xff]
  %v282 = vld [vmem:[%s1 + $0x720] sm:$0xff]
  %v283 = vld [vmem:[%s1 + $0x728] sm:$0xff]
  %v284 = vld [vmem:[%s1 + $0x730] sm:$0xff]
  %v285 = vld [vmem:[%s1 + $0x738] sm:$0xff]
  %v286 = vld [vmem:[%s1 + $0x740] sm:$0xff]
  %v287 = vld [vmem:[%s1 + $0x748] sm:$0xff]
  %v288 = vld [vmem:[%s1 + $0x750] sm:$0xff]
  %v289 = vld [vmem:[%s1 + $0x758] sm:$0xff]
  %v290 = vld [vmem:[%s1 + $0x760] sm:$0xff]
  %v291 = vld [vmem:[%s1 + $0x768] sm:$0xff]
  %v292 = vld [vmem:[%s1 + $0x770] sm:$0xff]
  %v293 = vld [vmem:[%s1 + $0x778] sm:$0xff]
  %v294 = vld [vmem:[%s1 + $0x780] sm:$0xff]
  %v295 = vld [vmem:[%s1 + $0x788] sm:$0xff]
  %v296 = vld [vmem:[%s1 + $0x790] sm:$0xff]
  %v297 = vld [vmem:[%s1 + $0x798] sm:$0xff]
  %v298 = vld [vmem:[%s1 + $0x7a0] sm:$0xff]
  %v299 = vld [vmem:[%s1 + $0x7a8] sm:$0xff]
  %v300 = vld [vmem:[%s1 + $0x7b0] sm:$0xff]
  %v301 = vld [vmem:[%s1 + $0x7b8] sm:$0xff]
  %v302 = vld [vmem:[%s1 + $0x7c0] sm:$0xff]
  %v303 = vld [vmem:[%s1 + $0x7c8] sm:$0xff]
  %v304 = vld [vmem:[%s1 + $0x7d0] sm:$0xff]
  %v305 = vld [vmem:[%s1 + $0x7d8] sm:$0xff]
  %v306 = vld [vmem:[%s1 + $0x7e0] sm:$0xff]
  %v307 = vld [vmem:[%s1 + $0x7e8] sm:$0xff]
  %v308 = vld [vmem:[%s1 + $0x7f0] sm:$0xff]
  %v309 = vld [vmem:[%s1 + $0x7f8] sm:$0xff]
  %v310 = vld [vmem:[%s1 + $0x800] sm:$0xff]
  %v311 = vld [vmem:[%s1 + $0x808] sm:$0xff]
  %v312 = vld [vmem:[%s1 + $0x810] sm:$0xff]
  %v313 = vld [vmem:[%s1 + $0x818] sm:$0xff]
  %v314 = vld [vmem:[%s1 + $0x820] sm:$0xff]
  %v315 = vld [vmem:[%s1 + $0x828] sm:$0xff]
  %v316 = vld [vmem:[%s1 + $0x830] sm:$0xff]
  %v317 = vld [vmem:[%s1 + $0x838] sm:$0xff]
  %v318 = vld [vmem:[%s1 + $0x840] sm:$0xff]
  %v319 = vld [vmem:[%s1 + $0x848] sm:$0xff]
  %v320 = vld [vmem:[%s1 + $0x850] sm:$0xff]
  %v321 = vld [vmem:[%s1 + $0x858] sm:$0xff]
  %v322 = vld [vmem:[%s1 + $0x860] sm:$0xff]
  %v323 = vld [vmem:[%s1 + $0x868] sm:$0xff]
  %v324 = vld [vmem:[%s1 + $0x870] sm:$0xff]
  %v325 = vld [vmem:[%s1 + $0x878] sm:$0xff]
  %v326 = vld [vmem:[%s1 + $0x880] sm:$0xff]
  %v327 = vld [vmem:[%s1 + $0x888] sm:$0xff]
  %v328 = vld [vmem:[%s1 + $0x890] sm:$0xff]
  %v329 = vld [vmem:[%s1 + $0x898] sm:$0xff]
  %v330 = vld [vmem:[%s1 + $0x8a0] sm:$0xff]
  %v331 = vld [vmem:[%s1 + $0x8a8] sm:$0xff]
  %v332 = vld [vmem:[%s1 + $0x8b0] sm:$0xff]
  %v333 = vld [vmem:[%s1 + $0x8b8] sm:$0xff]
  %v334 = vld [vmem:[%s1 + $0x8c0] sm:$0xff]
  %v335 = vld [vmem:[%s1 + $0x8c8] sm:$0xff]
  %v336 = vld [vmem:[%s1 + $0x8d0] sm:$0xff]
  %v337 = vld [vmem:[%s1 + $0x8d8] sm:$0xff]
  %v338 = vld [vmem:[%s1 + $0x8e0] sm:$0xff]
  %v339 = vld [vmem:[%s1 + $0x8e8] sm:$0xff]
  %v340 = vld [vmem:[%s1 + $0x8f0] sm:$0xff]
  %v341 = vld [vmem:[%s1 + $0x8f8] sm:$0xff]
  %v342 = vld [vmem:[%s1 + $0x900] sm:$0xff]
  %v343 = vld [vmem:[%s1 + $0x908] sm:$0xff]
  %v344 = vld [vmem:[%s1 + $0x910] sm:$0xff]
  %v345 = vld [vmem:[%s1 + $0x918] sm:$0xff]
  %v346 = vld [vmem:[%s1 + $0x920] sm:$0xff]
  %v347 = vld [vmem:[%s1 + $0x928] sm:$0xff]
  %v348 = vld [vmem:[%s1 + $0x930] sm:$0xff]
  %v349 = vld [vmem:[%s1 + $0x938] sm:$0xff]
  %v350 = vld [vmem:[%s1 + $0x940] sm:$0xff]
  %v351 = vld [vmem:[%s1 + $0x948] sm:$0xff]
  %v352 = vld [vmem:[%s1 + $0x950] sm:$0xff]
  %v353 = vld [vmem:[%s1 + $0x958] sm:$0xff]
  %v354 = vld [vmem:[%s1 + $0x960] sm:$0xff]
  %v355 = vld [vmem:[%s1 + $0x968] sm:$0xff]
  %v356 = vld [vmem:[%s1 + $0x970] sm:$0xff]
  %v357 = vld [vmem:[%s1 + $0x978] sm:$0xff]
  %v358 = vld [vmem:[%s1 + $0x980] sm:$0xff]
  %v359 = vld [vmem:[%s1 + $0x988] sm:$0xff]
  %v360 = vld [vmem:[%s1 + $0x990] sm:$0xff]
  %v361 = vld [vmem:[%s1 + $0x998] sm:$0xff]
  %v362 = vld [vmem:[%s1 + $0x9a0] sm:$0xff]
  %v363 = vld [vmem:[%s1 + $0x9a8] sm:$0xff]
  %v364 = vld [vmem:[%s1 + $0x9b0] sm:$0xff]
  %v365 = vld [vmem:[%s1 + $0x9b8] sm:$0xff]
  %v366 = vld [vmem:[%s1 + $0x9c0] sm:$0xff]
  %v367 = vld [vmem:[%s1 + $0x9c8] sm:$0xff]
  %v368 = vld [vmem:[%s1 + $0x9d0] sm:$0xff]
  %v369 = vld [vmem:[%s1 + $0x9d8] sm:$0xff]
  %v370 = vld [vmem:[%s1 + $0x9e0] sm:$0xff]
  %v371 = vld [vmem:[%s1 + $0x9e8] sm:$0xff]
  %v372 = vld [vmem:[%s1 + $0x9f0] sm:$0xff]
  %v373 = vld [vmem:[%s1 + $0x9f8] sm:$0xff]
  %v374 = vld [vmem:[%s1 + $0xa00] sm:$0xff]
  %v375 = vld [vmem:[%s1 + $0xa08] sm:$0xff]
  %v376 = vld [vmem:[%s1 + $0xa10] sm:$0xff]
  %v377 = vld [vmem:[%s1 + $0xa18] sm:$0xff]
  %v378 = vld [vmem:[%s1 + $0xa20] sm:$0xff]
  %v379 = vld [vmem:[%s1 + $0xa28] sm:$0xff]
  %v380 = vld [vmem:[%s1 + $0xa30] sm:$0xff]
  %v381 = vld [vmem:[%s1 + $0xa38] sm:$0xff]
  %v382 = vld [vmem:[%s1 + $0xa40] sm:$0xff]
  %v383 = vld [vmem:[%s1 + $0xa48] sm:$0xff]
  %v384 = vld [vmem:[%s1 + $0xa50] sm:$0xff]
  %v385 = vld [vmem:[%s1 + $0xa58] sm:$0xff]
  %v386 = vld [vmem:[%s1 + $0xa60] sm:$0xff]
  %v387 = vld [vmem:[%s1 + $0xa68] sm:$0xff]
  %v388 = vld [vmem:[%s1 + $0xa70] sm:$0xff]
  %v389 = vld [vmem:[%s1 + $0xa78] sm:$0xff]
  %v390 = vld [vmem:[%s1 + $0xa80] sm:$0xff]
  %v391 = vld [vmem:[%s1 + $0xa88] sm:$0xff]
  %v392 = vld [vmem:[%s1 + $0xa90] sm:$0xff]
  %v393 = vld [vmem:[%s1 + $0xa98] sm:$0xff]
  %v394 = vld [vmem:[%s1 + $0xaa0] sm:$0xff]
  %v395 = vld [vmem:[%s1 + $0xaa8] sm:$0xff]
  %v396 = vld [vmem:[%s1 + $0xab0] sm:$0xff]
  %v397 = vld [vmem:[%s1 + $0xab8] sm:$0xff]
  %v398 = vld [vmem:[%s1 + $0xac0] sm:$0xff]
  %v399 = vld [vmem:[%s1 + $0xac8] sm:$0xff]
  %v400 = vld [vmem:[%s1 + $0xad0] sm:$0xff]
  %v401 = vld [vmem:[%s1 + $0xad8] sm:$0xff]
  %v402 = vld [vmem:[%s1 + $0xae0] sm:$0xff]
  %v403 = vld [vmem:[%s1 + $0xae8] sm:$0xff]
  %v404 = vld [vmem:[%s1 + $0xaf0] sm:$0xff]
  %v405 = vld [vmem:[%s1 + $0xaf8] sm:$0xff]
  %v406 = vld [vmem:[%s1 + $0xb00] sm:$0xff]
  %v407 = vld [vmem:[%s1 + $0xb08] sm:$0xff]
  %v408 = vld [vmem:[%s1 + $0xb10] sm:$0xff]
  %v409 = vld [vmem:[%s1 + $0xb18] sm:$0xff]
  %v410 = vld [vmem:[%s1 + $0xb20] sm:$0xff]
  %v411 = vld [vmem:[%s1 + $0xb28] sm:$0xff]
  %v412 = vld [vmem:[%s1 + $0xb30] sm:$0xff]
  %v413 = vld [vmem:[%s1 + $0xb38] sm:$0xff]
  %v414 = vld [vmem:[%s1 + $0xb40] sm:$0xff]
  %v415 = vld [vmem:[%s1 + $0xb48] sm:$0xff]
  %v416 = vld [vmem:[%s1 + $0xb50] sm:$0xff]
  %v417 = vld [vmem:[%s1 + $0xb58] sm:$0xff]
  %v418 = vld [vmem:[%s1 + $0xb60] sm:$0xff]
  %v419 = vld [vmem:[%s1 + $0xb68] sm:$0xff]
  %v420 = vld [vmem:[%s1 + $0xb70] sm:$0xff]
  %v421 = vld [vmem:[%s1 + $0xb78] sm:$0xff]
  %v422 = vld [vmem:[%s1 + $0xb80] sm:$0xff]
  %v423 = vld [vmem:[%s1 + $0xb88] sm:$0xff]
  %v424 = vld [vmem:[%s1 + $0xb90] sm:$0xff]
  %v425 = vld [vmem:[%s1 + $0xb98] sm:$0xff]
  %v426 = vld [vmem:[%s1 + $0xba0] sm:$0xff]
  %v427 = vld [vmem:[%s1 + $0xba8] sm:$0xff]
  %v428 = vld [vmem:[%s1 + $0xbb0] sm:$0xff]
  %v429 = vld [vmem:[%s1 + $0xbb8] sm:$0xff]
  %v430 = vld [vmem:[%s1 + $0xbc0] sm:$0xff]
  %v431 = vld [vmem:[%s1 + $0xbc8] sm:$0xff]
  %v432 = vld [vmem:[%s1 + $0xbd0] sm:$0xff]
  %v433 = vld [vmem:[%s1 + $0xbd8] sm:$0xff]
  %v434 = vld [vmem:[%s1 + $0xbe0] sm:$0xff]
  %v435 = vld [vmem:[%s1 + $0xbe8] sm:$0xff]
  %v436 = vld [vmem:[%s1 + $0xbf0] sm:$0xff]
  %v437 = vld [vmem:[%s1 + $0xbf8] sm:$0xff]
  %v438 = vld [vmem:[%s1 + $0xc00] sm:$0xff]
  %v439 = vld [vmem:[%s1 + $0xc08] sm:$0xff]
  %v440 = vld [vmem:[%s1 + $0xc10] sm:$0xff]
  %v441 = vld [vmem:[%s1 + $0xc18] sm:$0xff]
  %v442 = vld [vmem:[%s1 + $0xc20] sm:$0xff]
  %v443 = vld [vmem:[%s1 + $0xc28] sm:$0xff]
  %v444 = vld [vmem:[%s1 + $0xc30] sm:$0xff]
  %v445 = vld [vmem:[%s1 + $0xc38] sm:$0xff]
  %v446 = vld [vmem:[%s1 + $0xc40] sm:$0xff]
  %v447 = vld [vmem:[%s1 + $0xc48] sm:$0xff]
  %v448 = vld [vmem:[%s1 + $0xc50] sm:$0xff]
  %v449 = vld [vmem:[%s1 + $0xc58] sm:$0xff]
  %v450 = vld [vmem:[%s1 + $0xc60] sm:$0xff]
  %v451 = vld [vmem:[%s1 + $0xc68] sm:$0xff]
  %v452 = vld [vmem:[%s1 + $0xc70] sm:$0xff]
  %v453 = vld [vmem:[%s1 + $0xc78] sm:$0xff]
  %v454 = vld [vmem:[%s1 + $0xc80] sm:$0xff]
  %v455 = vld [vmem:[%s1 + $0xc88] sm:$0xff]
  %v456 = vld [vmem:[%s1 + $0xc90] sm:$0xff]
  %v457 = vld [vmem:[%s1 + $0xc98] sm:$0xff]
  %v458 = vld [vmem:[%s1 + $0xca0] sm:$0xff]
  %v459 = vld [vmem:[%s1 + $0xca8] sm:$0xff]
  %v460 = vld [vmem:[%s1 + $0xcb0] sm:$0xff]
  %v461 = vld [vmem:[%s1 + $0xcb8] sm:$0xff]
  %v462 = vld [vmem:[%s1 + $0xcc0] sm:$0xff]
  %v463 = vld [vmem:[%s1 + $0xcc8] sm:$0xff]
  %v464 = vld [vmem:[%s1 + $0xcd0] sm:$0xff]
  %v465 = vld [vmem:[%s1 + $0xcd8] sm:$0xff]
  %v466 = vld [vmem:[%s1 + $0xce0] sm:$0xff]
  %v467 = vld [vmem:[%s1 + $0xce8] sm:$0xff]
  %v468 = vld [vmem:[%s1 + $0xcf0] sm:$0xff]
  %v469 = vld [vmem:[%s1 + $0xcf8] sm:$0xff]
  %v470 = vld [vmem:[%s1 + $0xd00] sm:$0xff]
  %v471 = vld [vmem:[%s1 + $0xd08] sm:$0xff]
  %v472 = vld [vmem:[%s1 + $0xd10] sm:$0xff]
  %v473 = vld [vmem:[%s1 + $0xd18] sm:$0xff]
  %v474 = vld [vmem:[%s1 + $0xd20] sm:$0xff]
  %v475 = vld [vmem:[%s1 + $0xd28] sm:$0xff]
  %v476 = vld [vmem:[%s1 + $0xd30] sm:$0xff]
  %v477 = vld [vmem:[%s1 + $0xd38] sm:$0xff]
  %v478 = vld [vmem:[%s1 + $0xd40] sm:$0xff]
  %v479 = vld [vmem:[%s1 + $0xd48] sm:$0xff]
  %v480 = vld [vmem:[%s1 + $0xd50] sm:$0xff]
  %v481 = vld [vmem:[%s1 + $0xd58] sm:$0xff]
  %v482 = vld [vmem:[%s1 + $0xd60] sm:$0xff]
  %v483 = vld [vmem:[%s1 + $0xd68] sm:$0xff]
  %v484 = vld [vmem:[%s1 + $0xd70] sm:$0xff]
  %v485 = vld [vmem:[%s1 + $0xd78] sm:$0xff]
  %v486 = vld [vmem:[%s1 + $0xd80] sm:$0xff]
  %v487 = vld [vmem:[%s1 + $0xd88] sm:$0xff]
  %v488 = vld [vmem:[%s1 + $0xd90] sm:$0xff]
  %v489 = vld [vmem:[%s1 + $0xd98] sm:$0xff]
  %v490 = vld [vmem:[%s1 + $0xda0] sm:$0xff]
  %v491 = vld [vmem:[%s1 + $0xda8] sm:$0xff]
  %v492 = vld [vmem:[%s1 + $0xdb0] sm:$0xff]
  %v493 = vld [vmem:[%s1 + $0xdb8] sm:$0xff]
  %v494 = vld [vmem:[%s1 + $0xdc0] sm:$0xff]
  %v495 = vld [vmem:[%s1 + $0xdc8] sm:$0xff]
  %v496 = vld [vmem:[%s1 + $0xdd0] sm:$0xff]
  %v497 = vld [vmem:[%s1 + $0xdd8] sm:$0xff]
  %v498 = vld [vmem:[%s1 + $0xde0] sm:$0xff]
  %v499 = vld [vmem:[%s1 + $0xde8] sm:$0xff]
  %v500 = vld [vmem:[%s1 + $0xdf0] sm:$0xff]
  %v501 = vld [vmem:[%s1 + $0xdf8] sm:$0xff]
  %v502 = vld [vmem:[%s1 + $0xe00] sm:$0xff]
  %v503 = vld [vmem:[%s1 + $0xe08] sm:$0xff]
  %v504 = vld [vmem:[%s1 + $0xe10] sm:$0xff]
  %v505 = vld [vmem:[%s1 + $0xe18] sm:$0xff]
  %v506 = vld [vmem:[%s1 + $0xe20] sm:$0xff]
  %v507 = vld [vmem:[%s1 + $0xe28] sm:$0xff]
  %v508 = vld [vmem:[%s1 + $0xe30] sm:$0xff]
  %v509 = vld [vmem:[%s1 + $0xe38] sm:$0xff]
  %v510 = vld [vmem:[%s1 + $0xe40] sm:$0xff]
  %v511 = vld [vmem:[%s1 + $0xe48] sm:$0xff]
  %v512 = vld [vmem:[%s1 + $0xe50] sm:$0xff]
  %v513 = vld [vmem:[%s1 + $0xe58] sm:$0xff]
  %v514 = vld [vmem:[%s1 + $0xe60] sm:$0xff]
  %v515 = vld [vmem:[%s1 + $0xe68] sm:$0xff]
  %v516 = vld [vmem:[%s1 + $0xe70] sm:$0xff]
  %v517 = vld [vmem:[%s1 + $0xe78] sm:$0xff]
  %v518 = vld [vmem:[%s1 + $0xe80] sm:$0xff]
  %v519 = vld [vmem:[%s1 + $0xe88] sm:$0xff]
  %v520 = vld [vmem:[%s1 + $0xe90] sm:$0xff]
  %v521 = vld [vmem:[%s1 + $0xe98] sm:$0xff]
  %v522 = vld [vmem:[%s1 + $0xea0] sm:$0xff]
  %v523 = vld [vmem:[%s1 + $0xea8] sm:$0xff]
  %v524 = vld [vmem:[%s1 + $0xeb0] sm:$0xff]
  %v525 = vld [vmem:[%s1 + $0xeb8] sm:$0xff]
  %v526 = vld [vmem:[%s1 + $0xec0] sm:$0xff]
  %v527 = vld [vmem:[%s1 + $0xec8] sm:$0xff]
  %v528 = vld [vmem:[%s1 + $0xed0] sm:$0xff]
  %v529 = vld [vmem:[%s1 + $0xed8] sm:$0xff]
  %v530 = vld [vmem:[%s1 + $0xee0] sm:$0xff]
  %v531 = vld [vmem:[%s1 + $0xee8] sm:$0xff]
  %v532 = vld [vmem:[%s1 + $0xef0] sm:$0xff]
  %v533 = vld [vmem:[%s1 + $0xef8] sm:$0xff]
  %v534 = vld [vmem:[%s1 + $0xf00] sm:$0xff]
  %v535 = vld [vmem:[%s1 + $0xf08] sm:$0xff]
  %v536 = vld [vmem:[%s1 + $0xf10] sm:$0xff]
  %v537 = vld [vmem:[%s1 + $0xf18] sm:$0xff]
  %v538 = vld [vmem:[%s1 + $0xf20] sm:$0xff]
  %v539 = vld [vmem:[%s1 + $0xf28] sm:$0xff]
  %v540 = vld [vmem:[%s1 + $0xf30] sm:$0xff]
  %v541 = vld [vmem:[%s1 + $0xf38] sm:$0xff]
  %v542 = vld [vmem:[%s1 + $0xf40] sm:$0xff]
  %v543 = vld [vmem:[%s1 + $0xf48] sm:$0xff]
  %v544 = vld [vmem:[%s1 + $0xf50] sm:$0xff]
  %v545 = vld [vmem:[%s1 + $0xf58] sm:$0xff]
  %v546 = vld [vmem:[%s1 + $0xf60] sm:$0xff]
  %v547 = vld [vmem:[%s1 + $0xf68] sm:$0xff]
  %v548 = vld [vmem:[%s1 + $0xf70] sm:$0xff]
  %v549 = vld [vmem:[%s1 + $0xf78] sm:$0xff]
  %v550 = vld [vmem:[%s1 + $0xf80] sm:$0xff]
  %v551 = vld [vmem:[%s1 + $0xf88] sm:$0xff]
  %v552 = vld [vmem:[%s1 + $0xf90] sm:$0xff]
  %v553 = vld [vmem:[%s1 + $0xf98] sm:$0xff]
  %v554 = vld [vmem:[%s1 + $0xfa0] sm:$0xff]
  %v555 = vld [vmem:[%s1 + $0xfa8] sm:$0xff]
  %v556 = vld [vmem:[%s1 + $0xfb0] sm:$0xff]
  %v557 = vld [vmem:[%s1 + $0xfb8] sm:$0xff]
  %v558 = vld [vmem:[%s1 + $0xfc0] sm:$0xff]
  %v559 = vld [vmem:[%s1 + $0xfc8] sm:$0xff]
  %v560 = vld [vmem:[%s1 + $0xfd0] sm:$0xff]
  %v561 = vld [vmem:[%s1 + $0xfd8] sm:$0xff]
  %v562 = vld [vmem:[%s1 + $0xfe0] sm:$0xff]
  %v563 = vld [vmem:[%s1 + $0xfe8] sm:$0xff]
  %v564 = vld [vmem:[%s1 + $0xff0] sm:$0xff]
  %v565 = vld [vmem:[%s1 + $0xff8] sm:$0xff]
  %566 = vmatprep.subr.mxu0 %v115
  %567 = vmatpush1.msra.mxu0 %v114
  %568 = vmatprep.subr.mxu0 %v111
  %569 = vmatpush1.msra.mxu0 %v110
  %570 = vmatprep.subr.mxu0 %v107
  %571 = vmatpush1.msra.mxu0 %v106
  %572 = vmatprep.subr.mxu0 %v103
  %573 = vmatpush1.msra.mxu0 %v102
  %574 = vmatprep.subr.mxu0 %v99
  %575 = vmatpush1.msra.mxu0 %v98
  %576 = vmatprep.subr.mxu0 %v95
  %577 = vmatpush1.msra.mxu0 %v94
  %578 = vmatprep.subr.mxu0 %v91
  %579 = vmatpush1.msra.mxu0 %v90
  %580 = vmatprep.subr.mxu0 %v87
  %581 = vmatpush1.msra.mxu0 %v86
  %582 = vmatprep.subr.mxu0 %v83
  %583 = vmatpush1.msra.mxu0 %v82
  %584 = vmatprep.subr.mxu0 %v79
  %585 = vmatpush1.msra.mxu0 %v78
  %586 = vmatprep.subr.mxu0 %v75
  %587 = vmatpush1.msra.mxu0 %v74
  %588 = vmatprep.subr.mxu0 %v71
  %589 = vmatpush1.msra.mxu0 %v70
  %590 = vmatprep.subr.mxu0 %v67
  %591 = vmatpush1.msra.mxu0 %v66
  %592 = vmatprep.subr.mxu0 %v63
  %593 = vmatpush1.msra.mxu0 %v62
  %594 = vmatprep.subr.mxu0 %v59
  %595 = vmatpush1.msra.mxu0 %v58
  %596 = vmatprep.subr.mxu0 %v55
  %597 = vmatpush1.msra.mxu0 %v54
  %598 = vmatprep.subr.mxu0 %v179
  %599 = vmatpush2.msra.mxu0 %v178
  %600 = vmatprep.subr.mxu0 %v175
  %601 = vmatpush2.msra.mxu0 %v174
  %602 = vmatprep.subr.mxu0 %v171
  %603 = vmatpush2.msra.mxu0 %v170
  %604 = vmatprep.subr.mxu0 %v167
  %605 = vmatpush2.msra.mxu0 %v166
  %606 = vmatprep.subr.mxu0 %v163
  %607 = vmatpush2.msra.mxu0 %v162
  %608 = vmatprep.subr.mxu0 %v159
  %609 = vmatpush2.msra.mxu0 %v158
  %610 = vmatprep.subr.mxu0 %v155
  %611 = vmatpush2.msra.mxu0 %v154
  %612 = vmatprep.subr.mxu0 %v151
  %613 = vmatpush2.msra.mxu0 %v150
  %614 = vmatprep.subr.mxu0 %v147
  %615 = vmatpush2.msra.mxu0 %v146
  %616 = vmatprep.subr.mxu0 %v143
  %617 = vmatpush2.msra.mxu0 %v142
  %618 = vmatprep.subr.mxu0 %v139
  %619 = vmatpush2.msra.mxu0 %v138
  %620 = vmatprep.subr.mxu0 %v135
  %621 = vmatpush2.msra.mxu0 %v134
  %622 = vmatprep.subr.mxu0 %v131
  %623 = vmatpush2.msra.mxu0 %v130
  %624 = vmatprep.subr.mxu0 %v127
  %625 = vmatpush2.msra.mxu0 %v126
  %626 = vmatprep.subr.mxu0 %v123
  %627 = vmatpush2.msra.mxu0 %v122
  %628 = vmatprep.subr.mxu0 %v119
  %629 = vmatpush2.msra.mxu0 %v118
  %630 = vmatprep.mubr.f32.mxu0 %v39
  %631 = vmatmul.mubr.f32.gmra.mxu0 %v38
  %v632 = vpop.f32.mrf.mxu0
  %v633 = vadd.f32 0.0, %v632
  %v634 = vpop.f32.mrf.mxu0
  %v635 = vadd.f32 0.0, %v634
  %636 = vmatprep.mubr.f32.mxu0 %v47
  %637 = vmatmul.mubr.f32.gmra.mxu0 %v46
  %v638 = vpop.f32.mrf.mxu0
  %v639 = vadd.f32 0.0, %v638
  %v640 = vpop.f32.mrf.mxu0
  %v641 = vadd.f32 0.0, %v640
  %642 = vdwg.mxu0
  %643 = vmatprep.subr.mxu0 %v243
  %644 = vmatpush1.msra.mxu0 %v242
  %645 = vmatprep.subr.mxu0 %v239
  %646 = vmatpush1.msra.mxu0 %v238
  %647 = vmatprep.subr.mxu0 %v235
  %648 = vmatpush1.msra.mxu0 %v234
  %649 = vmatprep.subr.mxu0 %v231
  %650 = vmatpush1.msra.mxu0 %v230
  %651 = vmatprep.subr.mxu0 %v227
  %652 = vmatpush1.msra.mxu0 %v226
  %653 = vmatprep.subr.mxu0 %v223
  %654 = vmatpush1.msra.mxu0 %v222
  %655 = vmatprep.subr.mxu0 %v219
  %656 = vmatpush1.msra.mxu0 %v218
  %657 = vmatprep.subr.mxu0 %v215
  %658 = vmatpush1.msra.mxu0 %v214
  %659 = vmatprep.subr.mxu0 %v211
  %660 = vmatpush1.msra.mxu0 %v210
  %661 = vmatprep.subr.mxu0 %v207
  %662 = vmatpush1.msra.mxu0 %v206
  %663 = vmatprep.subr.mxu0 %v203
  %664 = vmatpush1.msra.mxu0 %v202
  %665 = vmatprep.subr.mxu0 %v199
  %666 = vmatpush1.msra.mxu0 %v198
  %667 = vmatprep.subr.mxu0 %v195
  %668 = vmatpush1.msra.mxu0 %v194
  %669 = vmatprep.subr.mxu0 %v191
  %670 = vmatpush1.msra.mxu0 %v190
  %671 = vmatprep.subr.mxu0 %v187
  %672 = vmatpush1.msra.mxu0 %v186
  %673 = vmatprep.subr.mxu0 %v183
  %674 = vmatpush1.msra.mxu0 %v182
  %675 = vmatprep.subr.mxu0 %v307
  %676 = vmatpush2.msra.mxu0 %v306
  %677 = vmatprep.subr.mxu0 %v303
  %678 = vmatpush2.msra.mxu0 %v302
  %679 = vmatprep.subr.mxu0 %v299
  %680 = vmatpush2.msra.mxu0 %v298
  %681 = vmatprep.subr.mxu0 %v295
  %682 = vmatpush2.msra.mxu0 %v294
  %683 = vmatprep.subr.mxu0 %v291
  %684 = vmatpush2.msra.mxu0 %v290
  %685 = vmatprep.subr.mxu0 %v287
  %686 = vmatpush2.msra.mxu0 %v286
  %687 = vmatprep.subr.mxu0 %v283
  %688 = vmatpush2.msra.mxu0 %v282
  %689 = vmatprep.subr.mxu0 %v279
  %690 = vmatpush2.msra.mxu0 %v278
  %691 = vmatprep.subr.mxu0 %v275
  %692 = vmatpush2.msra.mxu0 %v274
  %693 = vmatprep.subr.mxu0 %v271
  %694 = vmatpush2.msra.mxu0 %v270
  %695 = vmatprep.subr.mxu0 %v267
  %696 = vmatpush2.msra.mxu0 %v266
  %697 = vmatprep.subr.mxu0 %v263
  %698 = vmatpush2.msra.mxu0 %v262
  %699 = vmatprep.subr.mxu0 %v259
  %700 = vmatpush2.msra.mxu0 %v258
  %701 = vmatprep.subr.mxu0 %v255
  %702 = vmatpush2.msra.mxu0 %v254
  %703 = vmatprep.subr.mxu0 %v251
  %704 = vmatpush2.msra.mxu0 %v250
  %705 = vmatprep.subr.mxu0 %v247
  %706 = vmatpush2.msra.mxu0 %v246
  %707 = vmatprep.mubr.f32.mxu0 %v41
  %708 = vmatmul.mubr.f32.gmra.mxu0 %v40
  %v709 = vpop.f32.mrf.mxu0
  %v710 = vadd.f32 %v633, %v709
  %v711 = vpop.f32.mrf.mxu0
  %v712 = vadd.f32 %v635, %v711
  %713 = vmatprep.mubr.f32.mxu0 %v49
  %714 = vmatmul.mubr.f32.gmra.mxu0 %v48
  %v715 = vpop.f32.mrf.mxu0
  %v716 = vadd.f32 %v639, %v715
  %v717 = vpop.f32.mrf.mxu0
  %v718 = vadd.f32 %v641, %v717
  %719 = vdwg.mxu0
  %720 = vmatprep.subr.mxu0 %v371
  %721 = vmatpush1.msra.mxu0 %v370
  %722 = vmatprep.subr.mxu0 %v367
  %723 = vmatpush1.msra.mxu0 %v366
  %724 = vmatprep.subr.mxu0 %v363
  %725 = vmatpush1.msra.mxu0 %v362
  %726 = vmatprep.subr.mxu0 %v359
  %727 = vmatpush1.msra.mxu0 %v358
  %728 = vmatprep.subr.mxu0 %v355
  %729 = vmatpush1.msra.mxu0 %v354
  %730 = vmatprep.subr.mxu0 %v351
  %731 = vmatpush1.msra.mxu0 %v350
  %732 = vmatprep.subr.mxu0 %v347
  %733 = vmatpush1.msra.mxu0 %v346
  %734 = vmatprep.subr.mxu0 %v343
  %735 = vmatpush1.msra.mxu0 %v342
  %736 = vmatprep.subr.mxu0 %v339
  %737 = vmatpush1.msra.mxu0 %v338
  %738 = vmatprep.subr.mxu0 %v335
  %739 = vmatpush1.msra.mxu0 %v334
  %740 = vmatprep.subr.mxu0 %v331
  %741 = vmatpush1.msra.mxu0 %v330
  %742 = vmatprep.subr.mxu0 %v327
  %743 = vmatpush1.msra.mxu0 %v326
  %744 = vmatprep.subr.mxu0 %v323
  %745 = vmatpush1.msra.mxu0 %v322
  %746 = vmatprep.subr.mxu0 %v319
  %747 = vmatpush1.msra.mxu0 %v318
  %748 = vmatprep.subr.mxu0 %v315
  %749 = vmatpush1.msra.mxu0 %v314
  %750 = vmatprep.subr.mxu0 %v311
  %751 = vmatpush1.msra.mxu0 %v310
  %752 = vmatprep.subr.mxu0 %v435
  %753 = vmatpush2.msra.mxu0 %v434
  %754 = vmatprep.subr.mxu0 %v431
  %755 = vmatpush2.msra.mxu0 %v430
  %756 = vmatprep.subr.mxu0 %v427
  %757 = vmatpush2.msra.mxu0 %v426
  %758 = vmatprep.subr.mxu0 %v423
  %759 = vmatpush2.msra.mxu0 %v422
  %760 = vmatprep.subr.mxu0 %v419
  %761 = vmatpush2.msra.mxu0 %v418
  %762 = vmatprep.subr.mxu0 %v415
  %763 = vmatpush2.msra.mxu0 %v414
  %764 = vmatprep.subr.mxu0 %v411
  %765 = vmatpush2.msra.mxu0 %v410
  %766 = vmatprep.subr.mxu0 %v407
  %767 = vmatpush2.msra.mxu0 %v406
  %768 = vmatprep.subr.mxu0 %v403
  %769 = vmatpush2.msra.mxu0 %v402
  %770 = vmatprep.subr.mxu0 %v399
  %771 = vmatpush2.msra.mxu0 %v398
  %772 = vmatprep.subr.mxu0 %v395
  %773 = vmatpush2.msra.mxu0 %v394
  %774 = vmatprep.subr.mxu0 %v391
  %775 = vmatpush2.msra.mxu0 %v390
  %776 = vmatprep.subr.mxu0 %v387
  %777 = vmatpush2.msra.mxu0 %v386
  %778 = vmatprep.subr.mxu0 %v383
  %779 = vmatpush2.msra.mxu0 %v382
  %780 = vmatprep.subr.mxu0 %v379
  %781 = vmatpush2.msra.mxu0 %v378
  %782 = vmatprep.subr.mxu0 %v375
  %783 = vmatpush2.msra.mxu0 %v374
  %784 = vmatprep.mubr.f32.mxu0 %v43
  %785 = vmatmul.mubr.f32.gmra.mxu0 %v42
  %v786 = vpop.f32.mrf.mxu0
  %v787 = vadd.f32 %v710, %v786
  %v788 = vpop.f32.mrf.mxu0
  %v789 = vadd.f32 %v712, %v788
  %790 = vmatprep.mubr.f32.mxu0 %v51
  %791 = vmatmul.mubr.f32.gmra.mxu0 %v50
  %v792 = vpop.f32.mrf.mxu0
  %v793 = vadd.f32 %v716, %v792
  %v794 = vpop.f32.mrf.mxu0
  %v795 = vadd.f32 %v718, %v794
  %796 = vdwg.mxu0
  %797 = vmatprep.subr.mxu0 %v499
  %798 = vmatpush1.msra.mxu0 %v498
  %799 = vmatprep.subr.mxu0 %v495
  %800 = vmatpush1.msra.mxu0 %v494
  %801 = vmatprep.subr.mxu0 %v491
  %802 = vmatpush1.msra.mxu0 %v490
  %803 = vmatprep.subr.mxu0 %v487
  %804 = vmatpush1.msra.mxu0 %v486
  %805 = vmatprep.subr.mxu0 %v483
  %806 = vmatpush1.msra.mxu0 %v482
  %807 = vmatprep.subr.mxu0 %v479
  %808 = vmatpush1.msra.mxu0 %v478
  %809 = vmatprep.subr.mxu0 %v475
  %810 = vmatpush1.msra.mxu0 %v474
  %811 = vmatprep.subr.mxu0 %v471
  %812 = vmatpush1.msra.mxu0 %v470
  %813 = vmatprep.subr.mxu0 %v467
  %814 = vmatpush1.msra.mxu0 %v466
  %815 = vmatprep.subr.mxu0 %v463
  %816 = vmatpush1.msra.mxu0 %v462
  %817 = vmatprep.subr.mxu0 %v459
  %818 = vmatpush1.msra.mxu0 %v458
  %819 = vmatprep.subr.mxu0 %v455
  %820 = vmatpush1.msra.mxu0 %v454
  %821 = vmatprep.subr.mxu0 %v451
  %822 = vmatpush1.msra.mxu0 %v450
  %823 = vmatprep.subr.mxu0 %v447
  %824 = vmatpush1.msra.mxu0 %v446
  %825 = vmatprep.subr.mxu0 %v443
  %826 = vmatpush1.msra.mxu0 %v442
  %827 = vmatprep.subr.mxu0 %v439
  %828 = vmatpush1.msra.mxu0 %v438
  %829 = vmatprep.subr.mxu0 %v563
  %830 = vmatpush2.msra.mxu0 %v562
  %831 = vmatprep.subr.mxu0 %v559
  %832 = vmatpush2.msra.mxu0 %v558
  %833 = vmatprep.subr.mxu0 %v555
  %834 = vmatpush2.msra.mxu0 %v554
  %835 = vmatprep.subr.mxu0 %v551
  %836 = vmatpush2.msra.mxu0 %v550
  %837 = vmatprep.subr.mxu0 %v547
  %838 = vmatpush2.msra.mxu0 %v546
  %839 = vmatprep.subr.mxu0 %v543
  %840 = vmatpush2.msra.mxu0 %v542
  %841 = vmatprep.subr.mxu0 %v539
  %842 = vmatpush2.msra.mxu0 %v538
  %843 = vmatprep.subr.mxu0 %v535
  %844 = vmatpush2.msra.mxu0 %v534
  %845 = vmatprep.subr.mxu0 %v531
  %846 = vmatpush2.msra.mxu0 %v530
  %847 = vmatprep.subr.mxu0 %v527
  %848 = vmatpush2.msra.mxu0 %v526
  %849 = vmatprep.subr.mxu0 %v523
  %850 = vmatpush2.msra.mxu0 %v522
  %851 = vmatprep.subr.mxu0 %v519
  %852 = vmatpush2.msra.mxu0 %v518
  %853 = vmatprep.subr.mxu0 %v515
  %854 = vmatpush2.msra.mxu0 %v514
  %855 = vmatprep.subr.mxu0 %v511
  %856 = vmatpush2.msra.mxu0 %v510
  %857 = vmatprep.subr.mxu0 %v507
  %858 = vmatpush2.msra.mxu0 %v506
  %859 = vmatprep.subr.mxu0 %v503
  %860 = vmatpush2.msra.mxu0 %v502
  %861 = vmatprep.mubr.f32.mxu0 %v45
  %862 = vmatmul.mubr.f32.gmra.mxu0 %v44
  %v863 = vpop.f32.mrf.mxu0
  %v864 = vadd.f32 %v787, %v863
  %v865 = vpop.f32.mrf.mxu0
  %v866 = vadd.f32 %v789, %v865
  %867 = vmatprep.mubr.f32.mxu0 %v53
  %868 = vmatmul.mubr.f32.gmra.mxu0 %v52
  %v869 = vpop.f32.mrf.mxu0
  %v870 = vadd.f32 %v793, %v869
  %v871 = vpop.f32.mrf.mxu0
  %v872 = vadd.f32 %v795, %v871
  %873 = vdwg.mxu0
  %874 = vmatprep.subr.mxu0 %v117
  %875 = vmatpush1.msra.mxu0 %v116
  %876 = vmatprep.subr.mxu0 %v113
  %877 = vmatpush1.msra.mxu0 %v112
  %878 = vmatprep.subr.mxu0 %v109
  %879 = vmatpush1.msra.mxu0 %v108
  %880 = vmatprep.subr.mxu0 %v105
  %881 = vmatpush1.msra.mxu0 %v104
  %882 = vmatprep.subr.mxu0 %v101
  %883 = vmatpush1.msra.mxu0 %v100
  %884 = vmatprep.subr.mxu0 %v97
  %885 = vmatpush1.msra.mxu0 %v96
  %886 = vmatprep.subr.mxu0 %v93
  %887 = vmatpush1.msra.mxu0 %v92
  %888 = vmatprep.subr.mxu0 %v89
  %889 = vmatpush1.msra.mxu0 %v88
  %890 = vmatprep.subr.mxu0 %v85
  %891 = vmatpush1.msra.mxu0 %v84
  %892 = vmatprep.subr.mxu0 %v81
  %893 = vmatpush1.msra.mxu0 %v80
  %894 = vmatprep.subr.mxu0 %v77
  %895 = vmatpush1.msra.mxu0 %v76
  %896 = vmatprep.subr.mxu0 %v73
  %897 = vmatpush1.msra.mxu0 %v72
  %898 = vmatprep.subr.mxu0 %v69
  %899 = vmatpush1.msra.mxu0 %v68
  %900 = vmatprep.subr.mxu0 %v65
  %901 = vmatpush1.msra.mxu0 %v64
  %902 = vmatprep.subr.mxu0 %v61
  %903 = vmatpush1.msra.mxu0 %v60
  %904 = vmatprep.subr.mxu0 %v57
  %905 = vmatpush1.msra.mxu0 %v56
  %906 = vmatprep.subr.mxu0 %v181
  %907 = vmatpush2.msra.mxu0 %v180
  %908 = vmatprep.subr.mxu0 %v177
  %909 = vmatpush2.msra.mxu0 %v176
  %910 = vmatprep.subr.mxu0 %v173
  %911 = vmatpush2.msra.mxu0 %v172
  %912 = vmatprep.subr.mxu0 %v169
  %913 = vmatpush2.msra.mxu0 %v168
  %914 = vmatprep.subr.mxu0 %v165
  %915 = vmatpush2.msra.mxu0 %v164
  %916 = vmatprep.subr.mxu0 %v161
  %917 = vmatpush2.msra.mxu0 %v160
  %918 = vmatprep.subr.mxu0 %v157
  %919 = vmatpush2.msra.mxu0 %v156
  %920 = vmatprep.subr.mxu0 %v153
  %921 = vmatpush2.msra.mxu0 %v152
  %922 = vmatprep.subr.mxu0 %v149
  %923 = vmatpush2.msra.mxu0 %v148
  %924 = vmatprep.subr.mxu0 %v145
  %925 = vmatpush2.msra.mxu0 %v144
  %926 = vmatprep.subr.mxu0 %v141
  %927 = vmatpush2.msra.mxu0 %v140
  %928 = vmatprep.subr.mxu0 %v137
  %929 = vmatpush2.msra.mxu0 %v136
  %930 = vmatprep.subr.mxu0 %v133
  %931 = vmatpush2.msra.mxu0 %v132
  %932 = vmatprep.subr.mxu0 %v129
  %933 = vmatpush2.msra.mxu0 %v128
  %934 = vmatprep.subr.mxu0 %v125
  %935 = vmatpush2.msra.mxu0 %v124
  %936 = vmatprep.subr.mxu0 %v121
  %937 = vmatpush2.msra.mxu0 %v120
  %938 = vmatprep.mubr.f32.mxu0 %v39
  %939 = vmatmul.mubr.f32.gmra.mxu0 %v38
  %v940 = vpop.f32.mrf.mxu0
  %v941 = vadd.f32 0.0, %v940
  %v942 = vpop.f32.mrf.mxu0
  %v943 = vadd.f32 0.0, %v942
  %944 = vmatprep.mubr.f32.mxu0 %v47
  %945 = vmatmul.mubr.f32.gmra.mxu0 %v46
  %v946 = vpop.f32.mrf.mxu0
  %v947 = vadd.f32 0.0, %v946
  %v948 = vpop.f32.mrf.mxu0
  %v949 = vadd.f32 0.0, %v948
  %950 = vdwg.mxu0
  %951 = vmatprep.subr.mxu0 %v245
  %952 = vmatpush1.msra.mxu0 %v244
  %953 = vmatprep.subr.mxu0 %v241
  %954 = vmatpush1.msra.mxu0 %v240
  %955 = vmatprep.subr.mxu0 %v237
  %956 = vmatpush1.msra.mxu0 %v236
  %957 = vmatprep.subr.mxu0 %v233
  %958 = vmatpush1.msra.mxu0 %v232
  %959 = vmatprep.subr.mxu0 %v229
  %960 = vmatpush1.msra.mxu0 %v228
  %961 = vmatprep.subr.mxu0 %v225
  %962 = vmatpush1.msra.mxu0 %v224
  %963 = vmatprep.subr.mxu0 %v221
  %964 = vmatpush1.msra.mxu0 %v220
  %965 = vmatprep.subr.mxu0 %v217
  %966 = vmatpush1.msra.mxu0 %v216
  %967 = vmatprep.subr.mxu0 %v213
  %968 = vmatpush1.msra.mxu0 %v212
  %969 = vmatprep.subr.mxu0 %v209
  %970 = vmatpush1.msra.mxu0 %v208
  %971 = vmatprep.subr.mxu0 %v205
  %972 = vmatpush1.msra.mxu0 %v204
  %973 = vmatprep.subr.mxu0 %v201
  %974 = vmatpush1.msra.mxu0 %v200
  %975 = vmatprep.subr.mxu0 %v197
  %976 = vmatpush1.msra.mxu0 %v196
  %977 = vmatprep.subr.mxu0 %v193
  %978 = vmatpush1.msra.mxu0 %v192
  %979 = vmatprep.subr.mxu0 %v189
  %980 = vmatpush1.msra.mxu0 %v188
  %981 = vmatprep.subr.mxu0 %v185
  %982 = vmatpush1.msra.mxu0 %v184
  %983 = vmatprep.subr.mxu0 %v309
  %984 = vmatpush2.msra.mxu0 %v308
  %985 = vmatprep.subr.mxu0 %v305
  %986 = vmatpush2.msra.mxu0 %v304
  %987 = vmatprep.subr.mxu0 %v301
  %988 = vmatpush2.msra.mxu0 %v300
  %989 = vmatprep.subr.mxu0 %v297
  %990 = vmatpush2.msra.mxu0 %v296
  %991 = vmatprep.subr.mxu0 %v293
  %992 = vmatpush2.msra.mxu0 %v292
  %993 = vmatprep.subr.mxu0 %v289
  %994 = vmatpush2.msra.mxu0 %v288
  %995 = vmatprep.subr.mxu0 %v285
  %996 = vmatpush2.msra.mxu0 %v284
  %997 = vmatprep.subr.mxu0 %v281
  %998 = vmatpush2.msra.mxu0 %v280
  %999 = vmatprep.subr.mxu0 %v277
  %1000 = vmatpush2.msra.mxu0 %v276
  %1001 = vmatprep.subr.mxu0 %v273
  %1002 = vmatpush2.msra.mxu0 %v272
  %1003 = vmatprep.subr.mxu0 %v269
  %1004 = vmatpush2.msra.mxu0 %v268
  %1005 = vmatprep.subr.mxu0 %v265
  %1006 = vmatpush2.msra.mxu0 %v264
  %1007 = vmatprep.subr.mxu0 %v261
  %1008 = vmatpush2.msra.mxu0 %v260
  %1009 = vmatprep.subr.mxu0 %v257
  %1010 = vmatpush2.msra.mxu0 %v256
  %1011 = vmatprep.subr.mxu0 %v253
  %1012 = vmatpush2.msra.mxu0 %v252
  %1013 = vmatprep.subr.mxu0 %v249
  %1014 = vmatpush2.msra.mxu0 %v248
  %1015 = vmatprep.mubr.f32.mxu0 %v41
  %1016 = vmatmul.mubr.f32.gmra.mxu0 %v40
  %v1017 = vpop.f32.mrf.mxu0
  %v1018 = vadd.f32 %v941, %v1017
  %v1019 = vpop.f32.mrf.mxu0
  %v1020 = vadd.f32 %v943, %v1019
  %1021 = vmatprep.mubr.f32.mxu0 %v49
  %1022 = vmatmul.mubr.f32.gmra.mxu0 %v48
  %v1023 = vpop.f32.mrf.mxu0
  %v1024 = vadd.f32 %v947, %v1023
  %v1025 = vpop.f32.mrf.mxu0
  %v1026 = vadd.f32 %v949, %v1025
  %1027 = vdwg.mxu0
  %1028 = vmatprep.subr.mxu0 %v373
  %1029 = vmatpush1.msra.mxu0 %v372
  %1030 = vmatprep.subr.mxu0 %v369
  %1031 = vmatpush1.msra.mxu0 %v368
  %1032 = vmatprep.subr.mxu0 %v365
  %1033 = vmatpush1.msra.mxu0 %v364
  %1034 = vmatprep.subr.mxu0 %v361
  %1035 = vmatpush1.msra.mxu0 %v360
  %1036 = vmatprep.subr.mxu0 %v357
  %1037 = vmatpush1.msra.mxu0 %v356
  %1038 = vmatprep.subr.mxu0 %v353
  %1039 = vmatpush1.msra.mxu0 %v352
  %1040 = vmatprep.subr.mxu0 %v349
  %1041 = vmatpush1.msra.mxu0 %v348
  %1042 = vmatprep.subr.mxu0 %v345
  %1043 = vmatpush1.msra.mxu0 %v344
  %1044 = vmatprep.subr.mxu0 %v341
  %1045 = vmatpush1.msra.mxu0 %v340
  %1046 = vmatprep.subr.mxu0 %v337
  %1047 = vmatpush1.msra.mxu0 %v336
  %1048 = vmatprep.subr.mxu0 %v333
  %1049 = vmatpush1.msra.mxu0 %v332
  %1050 = vmatprep.subr.mxu0 %v329
  %1051 = vmatpush1.msra.mxu0 %v328
  %1052 = vmatprep.subr.mxu0 %v325
  %1053 = vmatpush1.msra.mxu0 %v324
  %1054 = vmatprep.subr.mxu0 %v321
  %1055 = vmatpush1.msra.mxu0 %v320
  %1056 = vmatprep.subr.mxu0 %v317
  %1057 = vmatpush1.msra.mxu0 %v316
  %1058 = vmatprep.subr.mxu0 %v313
  %1059 = vmatpush1.msra.mxu0 %v312
  %1060 = vmatprep.subr.mxu0 %v437
  %1061 = vmatpush2.msra.mxu0 %v436
  %1062 = vmatprep.subr.mxu0 %v433
  %1063 = vmatpush2.msra.mxu0 %v432
  %1064 = vmatprep.subr.mxu0 %v429
  %1065 = vmatpush2.msra.mxu0 %v428
  %1066 = vmatprep.subr.mxu0 %v425
  %1067 = vmatpush2.msra.mxu0 %v424
  %1068 = vmatprep.subr.mxu0 %v421
  %1069 = vmatpush2.msra.mxu0 %v420
  %1070 = vmatprep.subr.mxu0 %v417
  %1071 = vmatpush2.msra.mxu0 %v416
  %1072 = vmatprep.subr.mxu0 %v413
  %1073 = vmatpush2.msra.mxu0 %v412
  %1074 = vmatprep.subr.mxu0 %v409
  %1075 = vmatpush2.msra.mxu0 %v408
  %1076 = vmatprep.subr.mxu0 %v405
  %1077 = vmatpush2.msra.mxu0 %v404
  %1078 = vmatprep.subr.mxu0 %v401
  %1079 = vmatpush2.msra.mxu0 %v400
  %1080 = vmatprep.subr.mxu0 %v397
  %1081 = vmatpush2.msra.mxu0 %v396
  %1082 = vmatprep.subr.mxu0 %v393
  %1083 = vmatpush2.msra.mxu0 %v392
  %1084 = vmatprep.subr.mxu0 %v389
  %1085 = vmatpush2.msra.mxu0 %v388
  %1086 = vmatprep.subr.mxu0 %v385
  %1087 = vmatpush2.msra.mxu0 %v384
  %1088 = vmatprep.subr.mxu0 %v381
  %1089 = vmatpush2.msra.mxu0 %v380
  %1090 = vmatprep.subr.mxu0 %v377
  %1091 = vmatpush2.msra.mxu0 %v376
  %1092 = vmatprep.mubr.f32.mxu0 %v43
  %1093 = vmatmul.mubr.f32.gmra.mxu0 %v42
  %v1094 = vpop.f32.mrf.mxu0
  %v1095 = vadd.f32 %v1018, %v1094
  %v1096 = vpop.f32.mrf.mxu0
  %v1097 = vadd.f32 %v1020, %v1096
  %1098 = vmatprep.mubr.f32.mxu0 %v51
  %1099 = vmatmul.mubr.f32.gmra.mxu0 %v50
  %v1100 = vpop.f32.mrf.mxu0
  %v1101 = vadd.f32 %v1024, %v1100
  %v1102 = vpop.f32.mrf.mxu0
  %v1103 = vadd.f32 %v1026, %v1102
  %1104 = vdwg.mxu0
  %1105 = vmatprep.subr.mxu0 %v501
  %1106 = vmatpush1.msra.mxu0 %v500
  %1107 = vmatprep.subr.mxu0 %v497
  %1108 = vmatpush1.msra.mxu0 %v496
  %1109 = vmatprep.subr.mxu0 %v493
  %1110 = vmatpush1.msra.mxu0 %v492
  %1111 = vmatprep.subr.mxu0 %v489
  %1112 = vmatpush1.msra.mxu0 %v488
  %1113 = vmatprep.subr.mxu0 %v485
  %1114 = vmatpush1.msra.mxu0 %v484
  %1115 = vmatprep.subr.mxu0 %v481
  %1116 = vmatpush1.msra.mxu0 %v480
  %1117 = vmatprep.subr.mxu0 %v477
  %1118 = vmatpush1.msra.mxu0 %v476
  %1119 = vmatprep.subr.mxu0 %v473
  %1120 = vmatpush1.msra.mxu0 %v472
  %1121 = vmatprep.subr.mxu0 %v469
  %1122 = vmatpush1.msra.mxu0 %v468
  %1123 = vmatprep.subr.mxu0 %v465
  %1124 = vmatpush1.msra.mxu0 %v464
  %1125 = vmatprep.subr.mxu0 %v461
  %1126 = vmatpush1.msra.mxu0 %v460
  %1127 = vmatprep.subr.mxu0 %v457
  %1128 = vmatpush1.msra.mxu0 %v456
  %1129 = vmatprep.subr.mxu0 %v453
  %1130 = vmatpush1.msra.mxu0 %v452
  %1131 = vmatprep.subr.mxu0 %v449
  %1132 = vmatpush1.msra.mxu0 %v448
  %1133 = vmatprep.subr.mxu0 %v445
  %1134 = vmatpush1.msra.mxu0 %v444
  %1135 = vmatprep.subr.mxu0 %v441
  %1136 = vmatpush1.msra.mxu0 %v440
  %1137 = vmatprep.subr.mxu0 %v565
  %1138 = vmatpush2.msra.mxu0 %v564
  %1139 = vmatprep.subr.mxu0 %v561
  %1140 = vmatpush2.msra.mxu0 %v560
  %1141 = vmatprep.subr.mxu0 %v557
  %1142 = vmatpush2.msra.mxu0 %v556
  %1143 = vmatprep.subr.mxu0 %v553
  %1144 = vmatpush2.msra.mxu0 %v552
  %1145 = vmatprep.subr.mxu0 %v549
  %1146 = vmatpush2.msra.mxu0 %v548
  %1147 = vmatprep.subr.mxu0 %v545
  %1148 = vmatpush2.msra.mxu0 %v544
  %1149 = vmatprep.subr.mxu0 %v541
  %1150 = vmatpush2.msra.mxu0 %v540
  %1151 = vmatprep.subr.mxu0 %v537
  %1152 = vmatpush2.msra.mxu0 %v536
  %1153 = vmatprep.subr.mxu0 %v533
  %1154 = vmatpush2.msra.mxu0 %v532
  %1155 = vmatprep.subr.mxu0 %v529
  %1156 = vmatpush2.msra.mxu0 %v528
  %1157 = vmatprep.subr.mxu0 %v525
  %1158 = vmatpush2.msra.mxu0 %v524
  %1159 = vmatprep.subr.mxu0 %v521
  %1160 = vmatpush2.msra.mxu0 %v520
  %1161 = vmatprep.subr.mxu0 %v517
  %1162 = vmatpush2.msra.mxu0 %v516
  %1163 = vmatprep.subr.mxu0 %v513
  %1164 = vmatpush2.msra.mxu0 %v512
  %1165 = vmatprep.subr.mxu0 %v509
  %1166 = vmatpush2.msra.mxu0 %v508
  %1167 = vmatprep.subr.mxu0 %v505
  %1168 = vmatpush2.msra.mxu0 %v504
  %1169 = vmatprep.mubr.f32.mxu0 %v45
  %1170 = vmatmul.mubr.f32.gmra.mxu0 %v44
  %v1171 = vpop.f32.mrf.mxu0
  %v1172 = vadd.f32 %v1095, %v1171
  %v1173 = vpop.f32.mrf.mxu0
  %v1174 = vadd.f32 %v1097, %v1173
  %1175 = vmatprep.mubr.f32.mxu0 %v53
  %1176 = vmatmul.mubr.f32.gmra.mxu0 %v52
  %v1177 = vpop.f32.mrf.mxu0
  %v1178 = vadd.f32 %v1101, %v1177
  %v1179 = vpop.f32.mrf.mxu0
  %v1180 = vadd.f32 %v1103, %v1179
  %1181 = vdwg.mxu0
  %s1182 = scalar_lea.vmem %s1, 4096
  %v1183 = vld [vmem:[%s1182] sm:$0xff]
  %v1184 = vld [vmem:[%s1182 + $0x8] sm:$0xff]
  %v1185 = vld [vmem:[%s1182 + $0x10] sm:$0xff]
  %v1186 = vld [vmem:[%s1182 + $0x18] sm:$0xff]
  %v1187 = vld [vmem:[%s1182 + $0x20] sm:$0xff]
  %v1188 = vld [vmem:[%s1182 + $0x28] sm:$0xff]
  %v1189 = vld [vmem:[%s1182 + $0x30] sm:$0xff]
  %v1190 = vld [vmem:[%s1182 + $0x38] sm:$0xff]
  %v1191 = vld [vmem:[%s1182 + $0x40] sm:$0xff]
  %v1192 = vld [vmem:[%s1182 + $0x48] sm:$0xff]
  %v1193 = vld [vmem:[%s1182 + $0x50] sm:$0xff]
  %v1194 = vld [vmem:[%s1182 + $0x58] sm:$0xff]
  %v1195 = vld [vmem:[%s1182 + $0x60] sm:$0xff]
  %v1196 = vld [vmem:[%s1182 + $0x68] sm:$0xff]
  %v1197 = vld [vmem:[%s1182 + $0x70] sm:$0xff]
  %v1198 = vld [vmem:[%s1182 + $0x78] sm:$0xff]
  %v1199 = vld [vmem:[%s1182 + $0x80] sm:$0xff]
  %v1200 = vld [vmem:[%s1182 + $0x88] sm:$0xff]
  %v1201 = vld [vmem:[%s1182 + $0x90] sm:$0xff]
  %v1202 = vld [vmem:[%s1182 + $0x98] sm:$0xff]
  %v1203 = vld [vmem:[%s1182 + $0xa0] sm:$0xff]
  %v1204 = vld [vmem:[%s1182 + $0xa8] sm:$0xff]
  %v1205 = vld [vmem:[%s1182 + $0xb0] sm:$0xff]
  %v1206 = vld [vmem:[%s1182 + $0xb8] sm:$0xff]
  %v1207 = vld [vmem:[%s1182 + $0xc0] sm:$0xff]
  %v1208 = vld [vmem:[%s1182 + $0xc8] sm:$0xff]
  %v1209 = vld [vmem:[%s1182 + $0xd0] sm:$0xff]
  %v1210 = vld [vmem:[%s1182 + $0xd8] sm:$0xff]
  %v1211 = vld [vmem:[%s1182 + $0xe0] sm:$0xff]
  %v1212 = vld [vmem:[%s1182 + $0xe8] sm:$0xff]
  %v1213 = vld [vmem:[%s1182 + $0xf0] sm:$0xff]
  %v1214 = vld [vmem:[%s1182 + $0xf8] sm:$0xff]
  %v1215 = vld [vmem:[%s1182 + $0x100] sm:$0xff]
  %v1216 = vld [vmem:[%s1182 + $0x108] sm:$0xff]
  %v1217 = vld [vmem:[%s1182 + $0x110] sm:$0xff]
  %v1218 = vld [vmem:[%s1182 + $0x118] sm:$0xff]
  %v1219 = vld [vmem:[%s1182 + $0x120] sm:$0xff]
  %v1220 = vld [vmem:[%s1182 + $0x128] sm:$0xff]
  %v1221 = vld [vmem:[%s1182 + $0x130] sm:$0xff]
  %v1222 = vld [vmem:[%s1182 + $0x138] sm:$0xff]
  %v1223 = vld [vmem:[%s1182 + $0x140] sm:$0xff]
  %v1224 = vld [vmem:[%s1182 + $0x148] sm:$0xff]
  %v1225 = vld [vmem:[%s1182 + $0x150] sm:$0xff]
  %v1226 = vld [vmem:[%s1182 + $0x158] sm:$0xff]
  %v1227 = vld [vmem:[%s1182 + $0x160] sm:$0xff]
  %v1228 = vld [vmem:[%s1182 + $0x168] sm:$0xff]
  %v1229 = vld [vmem:[%s1182 + $0x170] sm:$0xff]
  %v1230 = vld [vmem:[%s1182 + $0x178] sm:$0xff]
  %v1231 = vld [vmem:[%s1182 + $0x180] sm:$0xff]
  %v1232 = vld [vmem:[%s1182 + $0x188] sm:$0xff]
  %v1233 = vld [vmem:[%s1182 + $0x190] sm:$0xff]
  %v1234 = vld [vmem:[%s1182 + $0x198] sm:$0xff]
  %v1235 = vld [vmem:[%s1182 + $0x1a0] sm:$0xff]
  %v1236 = vld [vmem:[%s1182 + $0x1a8] sm:$0xff]
  %v1237 = vld [vmem:[%s1182 + $0x1b0] sm:$0xff]
  %v1238 = vld [vmem:[%s1182 + $0x1b8] sm:$0xff]
  %v1239 = vld [vmem:[%s1182 + $0x1c0] sm:$0xff]
  %v1240 = vld [vmem:[%s1182 + $0x1c8] sm:$0xff]
  %v1241 = vld [vmem:[%s1182 + $0x1d0] sm:$0xff]
  %v1242 = vld [vmem:[%s1182 + $0x1d8] sm:$0xff]
  %v1243 = vld [vmem:[%s1182 + $0x1e0] sm:$0xff]
  %v1244 = vld [vmem:[%s1182 + $0x1e8] sm:$0xff]
  %v1245 = vld [vmem:[%s1182 + $0x1f0] sm:$0xff]
  %v1246 = vld [vmem:[%s1182 + $0x1f8] sm:$0xff]
  %v1247 = vld [vmem:[%s1182 + $0x200] sm:$0xff]
  %v1248 = vld [vmem:[%s1182 + $0x208] sm:$0xff]
  %v1249 = vld [vmem:[%s1182 + $0x210] sm:$0xff]
  %v1250 = vld [vmem:[%s1182 + $0x218] sm:$0xff]
  %v1251 = vld [vmem:[%s1182 + $0x220] sm:$0xff]
  %v1252 = vld [vmem:[%s1182 + $0x228] sm:$0xff]
  %v1253 = vld [vmem:[%s1182 + $0x230] sm:$0xff]
  %v1254 = vld [vmem:[%s1182 + $0x238] sm:$0xff]
  %v1255 = vld [vmem:[%s1182 + $0x240] sm:$0xff]
  %v1256 = vld [vmem:[%s1182 + $0x248] sm:$0xff]
  %v1257 = vld [vmem:[%s1182 + $0x250] sm:$0xff]
  %v1258 = vld [vmem:[%s1182 + $0x258] sm:$0xff]
  %v1259 = vld [vmem:[%s1182 + $0x260] sm:$0xff]
  %v1260 = vld [vmem:[%s1182 + $0x268] sm:$0xff]
  %v1261 = vld [vmem:[%s1182 + $0x270] sm:$0xff]
  %v1262 = vld [vmem:[%s1182 + $0x278] sm:$0xff]
  %v1263 = vld [vmem:[%s1182 + $0x280] sm:$0xff]
  %v1264 = vld [vmem:[%s1182 + $0x288] sm:$0xff]
  %v1265 = vld [vmem:[%s1182 + $0x290] sm:$0xff]
  %v1266 = vld [vmem:[%s1182 + $0x298] sm:$0xff]
  %v1267 = vld [vmem:[%s1182 + $0x2a0] sm:$0xff]
  %v1268 = vld [vmem:[%s1182 + $0x2a8] sm:$0xff]
  %v1269 = vld [vmem:[%s1182 + $0x2b0] sm:$0xff]
  %v1270 = vld [vmem:[%s1182 + $0x2b8] sm:$0xff]
  %v1271 = vld [vmem:[%s1182 + $0x2c0] sm:$0xff]
  %v1272 = vld [vmem:[%s1182 + $0x2c8] sm:$0xff]
  %v1273 = vld [vmem:[%s1182 + $0x2d0] sm:$0xff]
  %v1274 = vld [vmem:[%s1182 + $0x2d8] sm:$0xff]
  %v1275 = vld [vmem:[%s1182 + $0x2e0] sm:$0xff]
  %v1276 = vld [vmem:[%s1182 + $0x2e8] sm:$0xff]
  %v1277 = vld [vmem:[%s1182 + $0x2f0] sm:$0xff]
  %v1278 = vld [vmem:[%s1182 + $0x2f8] sm:$0xff]
  %v1279 = vld [vmem:[%s1182 + $0x300] sm:$0xff]
  %v1280 = vld [vmem:[%s1182 + $0x308] sm:$0xff]
  %v1281 = vld [vmem:[%s1182 + $0x310] sm:$0xff]
  %v1282 = vld [vmem:[%s1182 + $0x318] sm:$0xff]
  %v1283 = vld [vmem:[%s1182 + $0x320] sm:$0xff]
  %v1284 = vld [vmem:[%s1182 + $0x328] sm:$0xff]
  %v1285 = vld [vmem:[%s1182 + $0x330] sm:$0xff]
  %v1286 = vld [vmem:[%s1182 + $0x338] sm:$0xff]
  %v1287 = vld [vmem:[%s1182 + $0x340] sm:$0xff]
  %v1288 = vld [vmem:[%s1182 + $0x348] sm:$0xff]
  %v1289 = vld [vmem:[%s1182 + $0x350] sm:$0xff]
  %v1290 = vld [vmem:[%s1182 + $0x358] sm:$0xff]
  %v1291 = vld [vmem:[%s1182 + $0x360] sm:$0xff]
  %v1292 = vld [vmem:[%s1182 + $0x368] sm:$0xff]
  %v1293 = vld [vmem:[%s1182 + $0x370] sm:$0xff]
  %v1294 = vld [vmem:[%s1182 + $0x378] sm:$0xff]
  %v1295 = vld [vmem:[%s1182 + $0x380] sm:$0xff]
  %v1296 = vld [vmem:[%s1182 + $0x388] sm:$0xff]
  %v1297 = vld [vmem:[%s1182 + $0x390] sm:$0xff]
  %v1298 = vld [vmem:[%s1182 + $0x398] sm:$0xff]
  %v1299 = vld [vmem:[%s1182 + $0x3a0] sm:$0xff]
  %v1300 = vld [vmem:[%s1182 + $0x3a8] sm:$0xff]
  %v1301 = vld [vmem:[%s1182 + $0x3b0] sm:$0xff]
  %v1302 = vld [vmem:[%s1182 + $0x3b8] sm:$0xff]
  %v1303 = vld [vmem:[%s1182 + $0x3c0] sm:$0xff]
  %v1304 = vld [vmem:[%s1182 + $0x3c8] sm:$0xff]
  %v1305 = vld [vmem:[%s1182 + $0x3d0] sm:$0xff]
  %v1306 = vld [vmem:[%s1182 + $0x3d8] sm:$0xff]
  %v1307 = vld [vmem:[%s1182 + $0x3e0] sm:$0xff]
  %v1308 = vld [vmem:[%s1182 + $0x3e8] sm:$0xff]
  %v1309 = vld [vmem:[%s1182 + $0x3f0] sm:$0xff]
  %v1310 = vld [vmem:[%s1182 + $0x3f8] sm:$0xff]
  %v1311 = vld [vmem:[%s1182 + $0x400] sm:$0xff]
  %v1312 = vld [vmem:[%s1182 + $0x408] sm:$0xff]
  %v1313 = vld [vmem:[%s1182 + $0x410] sm:$0xff]
  %v1314 = vld [vmem:[%s1182 + $0x418] sm:$0xff]
  %v1315 = vld [vmem:[%s1182 + $0x420] sm:$0xff]
  %v1316 = vld [vmem:[%s1182 + $0x428] sm:$0xff]
  %v1317 = vld [vmem:[%s1182 + $0x430] sm:$0xff]
  %v1318 = vld [vmem:[%s1182 + $0x438] sm:$0xff]
  %v1319 = vld [vmem:[%s1182 + $0x440] sm:$0xff]
  %v1320 = vld [vmem:[%s1182 + $0x448] sm:$0xff]
  %v1321 = vld [vmem:[%s1182 + $0x450] sm:$0xff]
  %v1322 = vld [vmem:[%s1182 + $0x458] sm:$0xff]
  %v1323 = vld [vmem:[%s1182 + $0x460] sm:$0xff]
  %v1324 = vld [vmem:[%s1182 + $0x468] sm:$0xff]
  %v1325 = vld [vmem:[%s1182 + $0x470] sm:$0xff]
  %v1326 = vld [vmem:[%s1182 + $0x478] sm:$0xff]
  %v1327 = vld [vmem:[%s1182 + $0x480] sm:$0xff]
  %v1328 = vld [vmem:[%s1182 + $0x488] sm:$0xff]
  %v1329 = vld [vmem:[%s1182 + $0x490] sm:$0xff]
  %v1330 = vld [vmem:[%s1182 + $0x498] sm:$0xff]
  %v1331 = vld [vmem:[%s1182 + $0x4a0] sm:$0xff]
  %v1332 = vld [vmem:[%s1182 + $0x4a8] sm:$0xff]
  %v1333 = vld [vmem:[%s1182 + $0x4b0] sm:$0xff]
  %v1334 = vld [vmem:[%s1182 + $0x4b8] sm:$0xff]
  %v1335 = vld [vmem:[%s1182 + $0x4c0] sm:$0xff]
  %v1336 = vld [vmem:[%s1182 + $0x4c8] sm:$0xff]
  %v1337 = vld [vmem:[%s1182 + $0x4d0] sm:$0xff]
  %v1338 = vld [vmem:[%s1182 + $0x4d8] sm:$0xff]
  %v1339 = vld [vmem:[%s1182 + $0x4e0] sm:$0xff]
  %v1340 = vld [vmem:[%s1182 + $0x4e8] sm:$0xff]
  %v1341 = vld [vmem:[%s1182 + $0x4f0] sm:$0xff]
  %v1342 = vld [vmem:[%s1182 + $0x4f8] sm:$0xff]
  %v1343 = vld [vmem:[%s1182 + $0x500] sm:$0xff]
  %v1344 = vld [vmem:[%s1182 + $0x508] sm:$0xff]
  %v1345 = vld [vmem:[%s1182 + $0x510] sm:$0xff]
  %v1346 = vld [vmem:[%s1182 + $0x518] sm:$0xff]
  %v1347 = vld [vmem:[%s1182 + $0x520] sm:$0xff]
  %v1348 = vld [vmem:[%s1182 + $0x528] sm:$0xff]
  %v1349 = vld [vmem:[%s1182 + $0x530] sm:$0xff]
  %v1350 = vld [vmem:[%s1182 + $0x538] sm:$0xff]
  %v1351 = vld [vmem:[%s1182 + $0x540] sm:$0xff]
  %v1352 = vld [vmem:[%s1182 + $0x548] sm:$0xff]
  %v1353 = vld [vmem:[%s1182 + $0x550] sm:$0xff]
  %v1354 = vld [vmem:[%s1182 + $0x558] sm:$0xff]
  %v1355 = vld [vmem:[%s1182 + $0x560] sm:$0xff]
  %v1356 = vld [vmem:[%s1182 + $0x568] sm:$0xff]
  %v1357 = vld [vmem:[%s1182 + $0x570] sm:$0xff]
  %v1358 = vld [vmem:[%s1182 + $0x578] sm:$0xff]
  %v1359 = vld [vmem:[%s1182 + $0x580] sm:$0xff]
  %v1360 = vld [vmem:[%s1182 + $0x588] sm:$0xff]
  %v1361 = vld [vmem:[%s1182 + $0x590] sm:$0xff]
  %v1362 = vld [vmem:[%s1182 + $0x598] sm:$0xff]
  %v1363 = vld [vmem:[%s1182 + $0x5a0] sm:$0xff]
  %v1364 = vld [vmem:[%s1182 + $0x5a8] sm:$0xff]
  %v1365 = vld [vmem:[%s1182 + $0x5b0] sm:$0xff]
  %v1366 = vld [vmem:[%s1182 + $0x5b8] sm:$0xff]
  %v1367 = vld [vmem:[%s1182 + $0x5c0] sm:$0xff]
  %v1368 = vld [vmem:[%s1182 + $0x5c8] sm:$0xff]
  %v1369 = vld [vmem:[%s1182 + $0x5d0] sm:$0xff]
  %v1370 = vld [vmem:[%s1182 + $0x5d8] sm:$0xff]
  %v1371 = vld [vmem:[%s1182 + $0x5e0] sm:$0xff]
  %v1372 = vld [vmem:[%s1182 + $0x5e8] sm:$0xff]
  %v1373 = vld [vmem:[%s1182 + $0x5f0] sm:$0xff]
  %v1374 = vld [vmem:[%s1182 + $0x5f8] sm:$0xff]
  %v1375 = vld [vmem:[%s1182 + $0x600] sm:$0xff]
  %v1376 = vld [vmem:[%s1182 + $0x608] sm:$0xff]
  %v1377 = vld [vmem:[%s1182 + $0x610] sm:$0xff]
  %v1378 = vld [vmem:[%s1182 + $0x618] sm:$0xff]
  %v1379 = vld [vmem:[%s1182 + $0x620] sm:$0xff]
  %v1380 = vld [vmem:[%s1182 + $0x628] sm:$0xff]
  %v1381 = vld [vmem:[%s1182 + $0x630] sm:$0xff]
  %v1382 = vld [vmem:[%s1182 + $0x638] sm:$0xff]
  %v1383 = vld [vmem:[%s1182 + $0x640] sm:$0xff]
  %v1384 = vld [vmem:[%s1182 + $0x648] sm:$0xff]
  %v1385 = vld [vmem:[%s1182 + $0x650] sm:$0xff]
  %v1386 = vld [vmem:[%s1182 + $0x658] sm:$0xff]
  %v1387 = vld [vmem:[%s1182 + $0x660] sm:$0xff]
  %v1388 = vld [vmem:[%s1182 + $0x668] sm:$0xff]
  %v1389 = vld [vmem:[%s1182 + $0x670] sm:$0xff]
  %v1390 = vld [vmem:[%s1182 + $0x678] sm:$0xff]
  %v1391 = vld [vmem:[%s1182 + $0x680] sm:$0xff]
  %v1392 = vld [vmem:[%s1182 + $0x688] sm:$0xff]
  %v1393 = vld [vmem:[%s1182 + $0x690] sm:$0xff]
  %v1394 = vld [vmem:[%s1182 + $0x698] sm:$0xff]
  %v1395 = vld [vmem:[%s1182 + $0x6a0] sm:$0xff]
  %v1396 = vld [vmem:[%s1182 + $0x6a8] sm:$0xff]
  %v1397 = vld [vmem:[%s1182 + $0x6b0] sm:$0xff]
  %v1398 = vld [vmem:[%s1182 + $0x6b8] sm:$0xff]
  %v1399 = vld [vmem:[%s1182 + $0x6c0] sm:$0xff]
  %v1400 = vld [vmem:[%s1182 + $0x6c8] sm:$0xff]
  %v1401 = vld [vmem:[%s1182 + $0x6d0] sm:$0xff]
  %v1402 = vld [vmem:[%s1182 + $0x6d8] sm:$0xff]
  %v1403 = vld [vmem:[%s1182 + $0x6e0] sm:$0xff]
  %v1404 = vld [vmem:[%s1182 + $0x6e8] sm:$0xff]
  %v1405 = vld [vmem:[%s1182 + $0x6f0] sm:$0xff]
  %v1406 = vld [vmem:[%s1182 + $0x6f8] sm:$0xff]
  %v1407 = vld [vmem:[%s1182 + $0x700] sm:$0xff]
  %v1408 = vld [vmem:[%s1182 + $0x708] sm:$0xff]
  %v1409 = vld [vmem:[%s1182 + $0x710] sm:$0xff]
  %v1410 = vld [vmem:[%s1182 + $0x718] sm:$0xff]
  %v1411 = vld [vmem:[%s1182 + $0x720] sm:$0xff]
  %v1412 = vld [vmem:[%s1182 + $0x728] sm:$0xff]
  %v1413 = vld [vmem:[%s1182 + $0x730] sm:$0xff]
  %v1414 = vld [vmem:[%s1182 + $0x738] sm:$0xff]
  %v1415 = vld [vmem:[%s1182 + $0x740] sm:$0xff]
  %v1416 = vld [vmem:[%s1182 + $0x748] sm:$0xff]
  %v1417 = vld [vmem:[%s1182 + $0x750] sm:$0xff]
  %v1418 = vld [vmem:[%s1182 + $0x758] sm:$0xff]
  %v1419 = vld [vmem:[%s1182 + $0x760] sm:$0xff]
  %v1420 = vld [vmem:[%s1182 + $0x768] sm:$0xff]
  %v1421 = vld [vmem:[%s1182 + $0x770] sm:$0xff]
  %v1422 = vld [vmem:[%s1182 + $0x778] sm:$0xff]
  %v1423 = vld [vmem:[%s1182 + $0x780] sm:$0xff]
  %v1424 = vld [vmem:[%s1182 + $0x788] sm:$0xff]
  %v1425 = vld [vmem:[%s1182 + $0x790] sm:$0xff]
  %v1426 = vld [vmem:[%s1182 + $0x798] sm:$0xff]
  %v1427 = vld [vmem:[%s1182 + $0x7a0] sm:$0xff]
  %v1428 = vld [vmem:[%s1182 + $0x7a8] sm:$0xff]
  %v1429 = vld [vmem:[%s1182 + $0x7b0] sm:$0xff]
  %v1430 = vld [vmem:[%s1182 + $0x7b8] sm:$0xff]
  %v1431 = vld [vmem:[%s1182 + $0x7c0] sm:$0xff]
  %v1432 = vld [vmem:[%s1182 + $0x7c8] sm:$0xff]
  %v1433 = vld [vmem:[%s1182 + $0x7d0] sm:$0xff]
  %v1434 = vld [vmem:[%s1182 + $0x7d8] sm:$0xff]
  %v1435 = vld [vmem:[%s1182 + $0x7e0] sm:$0xff]
  %v1436 = vld [vmem:[%s1182 + $0x7e8] sm:$0xff]
  %v1437 = vld [vmem:[%s1182 + $0x7f0] sm:$0xff]
  %v1438 = vld [vmem:[%s1182 + $0x7f8] sm:$0xff]
  %v1439 = vld [vmem:[%s1182 + $0x800] sm:$0xff]
  %v1440 = vld [vmem:[%s1182 + $0x808] sm:$0xff]
  %v1441 = vld [vmem:[%s1182 + $0x810] sm:$0xff]
  %v1442 = vld [vmem:[%s1182 + $0x818] sm:$0xff]
  %v1443 = vld [vmem:[%s1182 + $0x820] sm:$0xff]
  %v1444 = vld [vmem:[%s1182 + $0x828] sm:$0xff]
  %v1445 = vld [vmem:[%s1182 + $0x830] sm:$0xff]
  %v1446 = vld [vmem:[%s1182 + $0x838] sm:$0xff]
  %v1447 = vld [vmem:[%s1182 + $0x840] sm:$0xff]
  %v1448 = vld [vmem:[%s1182 + $0x848] sm:$0xff]
  %v1449 = vld [vmem:[%s1182 + $0x850] sm:$0xff]
  %v1450 = vld [vmem:[%s1182 + $0x858] sm:$0xff]
  %v1451 = vld [vmem:[%s1182 + $0x860] sm:$0xff]
  %v1452 = vld [vmem:[%s1182 + $0x868] sm:$0xff]
  %v1453 = vld [vmem:[%s1182 + $0x870] sm:$0xff]
  %v1454 = vld [vmem:[%s1182 + $0x878] sm:$0xff]
  %v1455 = vld [vmem:[%s1182 + $0x880] sm:$0xff]
  %v1456 = vld [vmem:[%s1182 + $0x888] sm:$0xff]
  %v1457 = vld [vmem:[%s1182 + $0x890] sm:$0xff]
  %v1458 = vld [vmem:[%s1182 + $0x898] sm:$0xff]
  %v1459 = vld [vmem:[%s1182 + $0x8a0] sm:$0xff]
  %v1460 = vld [vmem:[%s1182 + $0x8a8] sm:$0xff]
  %v1461 = vld [vmem:[%s1182 + $0x8b0] sm:$0xff]
  %v1462 = vld [vmem:[%s1182 + $0x8b8] sm:$0xff]
  %v1463 = vld [vmem:[%s1182 + $0x8c0] sm:$0xff]
  %v1464 = vld [vmem:[%s1182 + $0x8c8] sm:$0xff]
  %v1465 = vld [vmem:[%s1182 + $0x8d0] sm:$0xff]
  %v1466 = vld [vmem:[%s1182 + $0x8d8] sm:$0xff]
  %v1467 = vld [vmem:[%s1182 + $0x8e0] sm:$0xff]
  %v1468 = vld [vmem:[%s1182 + $0x8e8] sm:$0xff]
  %v1469 = vld [vmem:[%s1182 + $0x8f0] sm:$0xff]
  %v1470 = vld [vmem:[%s1182 + $0x8f8] sm:$0xff]
  %v1471 = vld [vmem:[%s1182 + $0x900] sm:$0xff]
  %v1472 = vld [vmem:[%s1182 + $0x908] sm:$0xff]
  %v1473 = vld [vmem:[%s1182 + $0x910] sm:$0xff]
  %v1474 = vld [vmem:[%s1182 + $0x918] sm:$0xff]
  %v1475 = vld [vmem:[%s1182 + $0x920] sm:$0xff]
  %v1476 = vld [vmem:[%s1182 + $0x928] sm:$0xff]
  %v1477 = vld [vmem:[%s1182 + $0x930] sm:$0xff]
  %v1478 = vld [vmem:[%s1182 + $0x938] sm:$0xff]
  %v1479 = vld [vmem:[%s1182 + $0x940] sm:$0xff]
  %v1480 = vld [vmem:[%s1182 + $0x948] sm:$0xff]
  %v1481 = vld [vmem:[%s1182 + $0x950] sm:$0xff]
  %v1482 = vld [vmem:[%s1182 + $0x958] sm:$0xff]
  %v1483 = vld [vmem:[%s1182 + $0x960] sm:$0xff]
  %v1484 = vld [vmem:[%s1182 + $0x968] sm:$0xff]
  %v1485 = vld [vmem:[%s1182 + $0x970] sm:$0xff]
  %v1486 = vld [vmem:[%s1182 + $0x978] sm:$0xff]
  %v1487 = vld [vmem:[%s1182 + $0x980] sm:$0xff]
  %v1488 = vld [vmem:[%s1182 + $0x988] sm:$0xff]
  %v1489 = vld [vmem:[%s1182 + $0x990] sm:$0xff]
  %v1490 = vld [vmem:[%s1182 + $0x998] sm:$0xff]
  %v1491 = vld [vmem:[%s1182 + $0x9a0] sm:$0xff]
  %v1492 = vld [vmem:[%s1182 + $0x9a8] sm:$0xff]
  %v1493 = vld [vmem:[%s1182 + $0x9b0] sm:$0xff]
  %v1494 = vld [vmem:[%s1182 + $0x9b8] sm:$0xff]
  %v1495 = vld [vmem:[%s1182 + $0x9c0] sm:$0xff]
  %v1496 = vld [vmem:[%s1182 + $0x9c8] sm:$0xff]
  %v1497 = vld [vmem:[%s1182 + $0x9d0] sm:$0xff]
  %v1498 = vld [vmem:[%s1182 + $0x9d8] sm:$0xff]
  %v1499 = vld [vmem:[%s1182 + $0x9e0] sm:$0xff]
  %v1500 = vld [vmem:[%s1182 + $0x9e8] sm:$0xff]
  %v1501 = vld [vmem:[%s1182 + $0x9f0] sm:$0xff]
  %v1502 = vld [vmem:[%s1182 + $0x9f8] sm:$0xff]
  %v1503 = vld [vmem:[%s1182 + $0xa00] sm:$0xff]
  %v1504 = vld [vmem:[%s1182 + $0xa08] sm:$0xff]
  %v1505 = vld [vmem:[%s1182 + $0xa10] sm:$0xff]
  %v1506 = vld [vmem:[%s1182 + $0xa18] sm:$0xff]
  %v1507 = vld [vmem:[%s1182 + $0xa20] sm:$0xff]
  %v1508 = vld [vmem:[%s1182 + $0xa28] sm:$0xff]
  %v1509 = vld [vmem:[%s1182 + $0xa30] sm:$0xff]
  %v1510 = vld [vmem:[%s1182 + $0xa38] sm:$0xff]
  %v1511 = vld [vmem:[%s1182 + $0xa40] sm:$0xff]
  %v1512 = vld [vmem:[%s1182 + $0xa48] sm:$0xff]
  %v1513 = vld [vmem:[%s1182 + $0xa50] sm:$0xff]
  %v1514 = vld [vmem:[%s1182 + $0xa58] sm:$0xff]
  %v1515 = vld [vmem:[%s1182 + $0xa60] sm:$0xff]
  %v1516 = vld [vmem:[%s1182 + $0xa68] sm:$0xff]
  %v1517 = vld [vmem:[%s1182 + $0xa70] sm:$0xff]
  %v1518 = vld [vmem:[%s1182 + $0xa78] sm:$0xff]
  %v1519 = vld [vmem:[%s1182 + $0xa80] sm:$0xff]
  %v1520 = vld [vmem:[%s1182 + $0xa88] sm:$0xff]
  %v1521 = vld [vmem:[%s1182 + $0xa90] sm:$0xff]
  %v1522 = vld [vmem:[%s1182 + $0xa98] sm:$0xff]
  %v1523 = vld [vmem:[%s1182 + $0xaa0] sm:$0xff]
  %v1524 = vld [vmem:[%s1182 + $0xaa8] sm:$0xff]
  %v1525 = vld [vmem:[%s1182 + $0xab0] sm:$0xff]
  %v1526 = vld [vmem:[%s1182 + $0xab8] sm:$0xff]
  %v1527 = vld [vmem:[%s1182 + $0xac0] sm:$0xff]
  %v1528 = vld [vmem:[%s1182 + $0xac8] sm:$0xff]
  %v1529 = vld [vmem:[%s1182 + $0xad0] sm:$0xff]
  %v1530 = vld [vmem:[%s1182 + $0xad8] sm:$0xff]
  %v1531 = vld [vmem:[%s1182 + $0xae0] sm:$0xff]
  %v1532 = vld [vmem:[%s1182 + $0xae8] sm:$0xff]
  %v1533 = vld [vmem:[%s1182 + $0xaf0] sm:$0xff]
  %v1534 = vld [vmem:[%s1182 + $0xaf8] sm:$0xff]
  %v1535 = vld [vmem:[%s1182 + $0xb00] sm:$0xff]
  %v1536 = vld [vmem:[%s1182 + $0xb08] sm:$0xff]
  %v1537 = vld [vmem:[%s1182 + $0xb10] sm:$0xff]
  %v1538 = vld [vmem:[%s1182 + $0xb18] sm:$0xff]
  %v1539 = vld [vmem:[%s1182 + $0xb20] sm:$0xff]
  %v1540 = vld [vmem:[%s1182 + $0xb28] sm:$0xff]
  %v1541 = vld [vmem:[%s1182 + $0xb30] sm:$0xff]
  %v1542 = vld [vmem:[%s1182 + $0xb38] sm:$0xff]
  %v1543 = vld [vmem:[%s1182 + $0xb40] sm:$0xff]
  %v1544 = vld [vmem:[%s1182 + $0xb48] sm:$0xff]
  %v1545 = vld [vmem:[%s1182 + $0xb50] sm:$0xff]
  %v1546 = vld [vmem:[%s1182 + $0xb58] sm:$0xff]
  %v1547 = vld [vmem:[%s1182 + $0xb60] sm:$0xff]
  %v1548 = vld [vmem:[%s1182 + $0xb68] sm:$0xff]
  %v1549 = vld [vmem:[%s1182 + $0xb70] sm:$0xff]
  %v1550 = vld [vmem:[%s1182 + $0xb78] sm:$0xff]
  %v1551 = vld [vmem:[%s1182 + $0xb80] sm:$0xff]
  %v1552 = vld [vmem:[%s1182 + $0xb88] sm:$0xff]
  %v1553 = vld [vmem:[%s1182 + $0xb90] sm:$0xff]
  %v1554 = vld [vmem:[%s1182 + $0xb98] sm:$0xff]
  %v1555 = vld [vmem:[%s1182 + $0xba0] sm:$0xff]
  %v1556 = vld [vmem:[%s1182 + $0xba8] sm:$0xff]
  %v1557 = vld [vmem:[%s1182 + $0xbb0] sm:$0xff]
  %v1558 = vld [vmem:[%s1182 + $0xbb8] sm:$0xff]
  %v1559 = vld [vmem:[%s1182 + $0xbc0] sm:$0xff]
  %v1560 = vld [vmem:[%s1182 + $0xbc8] sm:$0xff]
  %v1561 = vld [vmem:[%s1182 + $0xbd0] sm:$0xff]
  %v1562 = vld [vmem:[%s1182 + $0xbd8] sm:$0xff]
  %v1563 = vld [vmem:[%s1182 + $0xbe0] sm:$0xff]
  %v1564 = vld [vmem:[%s1182 + $0xbe8] sm:$0xff]
  %v1565 = vld [vmem:[%s1182 + $0xbf0] sm:$0xff]
  %v1566 = vld [vmem:[%s1182 + $0xbf8] sm:$0xff]
  %v1567 = vld [vmem:[%s1182 + $0xc00] sm:$0xff]
  %v1568 = vld [vmem:[%s1182 + $0xc08] sm:$0xff]
  %v1569 = vld [vmem:[%s1182 + $0xc10] sm:$0xff]
  %v1570 = vld [vmem:[%s1182 + $0xc18] sm:$0xff]
  %v1571 = vld [vmem:[%s1182 + $0xc20] sm:$0xff]
  %v1572 = vld [vmem:[%s1182 + $0xc28] sm:$0xff]
  %v1573 = vld [vmem:[%s1182 + $0xc30] sm:$0xff]
  %v1574 = vld [vmem:[%s1182 + $0xc38] sm:$0xff]
  %v1575 = vld [vmem:[%s1182 + $0xc40] sm:$0xff]
  %v1576 = vld [vmem:[%s1182 + $0xc48] sm:$0xff]
  %v1577 = vld [vmem:[%s1182 + $0xc50] sm:$0xff]
  %v1578 = vld [vmem:[%s1182 + $0xc58] sm:$0xff]
  %v1579 = vld [vmem:[%s1182 + $0xc60] sm:$0xff]
  %v1580 = vld [vmem:[%s1182 + $0xc68] sm:$0xff]
  %v1581 = vld [vmem:[%s1182 + $0xc70] sm:$0xff]
  %v1582 = vld [vmem:[%s1182 + $0xc78] sm:$0xff]
  %v1583 = vld [vmem:[%s1182 + $0xc80] sm:$0xff]
  %v1584 = vld [vmem:[%s1182 + $0xc88] sm:$0xff]
  %v1585 = vld [vmem:[%s1182 + $0xc90] sm:$0xff]
  %v1586 = vld [vmem:[%s1182 + $0xc98] sm:$0xff]
  %v1587 = vld [vmem:[%s1182 + $0xca0] sm:$0xff]
  %v1588 = vld [vmem:[%s1182 + $0xca8] sm:$0xff]
  %v1589 = vld [vmem:[%s1182 + $0xcb0] sm:$0xff]
  %v1590 = vld [vmem:[%s1182 + $0xcb8] sm:$0xff]
  %v1591 = vld [vmem:[%s1182 + $0xcc0] sm:$0xff]
  %v1592 = vld [vmem:[%s1182 + $0xcc8] sm:$0xff]
  %v1593 = vld [vmem:[%s1182 + $0xcd0] sm:$0xff]
  %v1594 = vld [vmem:[%s1182 + $0xcd8] sm:$0xff]
  %v1595 = vld [vmem:[%s1182 + $0xce0] sm:$0xff]
  %v1596 = vld [vmem:[%s1182 + $0xce8] sm:$0xff]
  %v1597 = vld [vmem:[%s1182 + $0xcf0] sm:$0xff]
  %v1598 = vld [vmem:[%s1182 + $0xcf8] sm:$0xff]
  %v1599 = vld [vmem:[%s1182 + $0xd00] sm:$0xff]
  %v1600 = vld [vmem:[%s1182 + $0xd08] sm:$0xff]
  %v1601 = vld [vmem:[%s1182 + $0xd10] sm:$0xff]
  %v1602 = vld [vmem:[%s1182 + $0xd18] sm:$0xff]
  %v1603 = vld [vmem:[%s1182 + $0xd20] sm:$0xff]
  %v1604 = vld [vmem:[%s1182 + $0xd28] sm:$0xff]
  %v1605 = vld [vmem:[%s1182 + $0xd30] sm:$0xff]
  %v1606 = vld [vmem:[%s1182 + $0xd38] sm:$0xff]
  %v1607 = vld [vmem:[%s1182 + $0xd40] sm:$0xff]
  %v1608 = vld [vmem:[%s1182 + $0xd48] sm:$0xff]
  %v1609 = vld [vmem:[%s1182 + $0xd50] sm:$0xff]
  %v1610 = vld [vmem:[%s1182 + $0xd58] sm:$0xff]
  %v1611 = vld [vmem:[%s1182 + $0xd60] sm:$0xff]
  %v1612 = vld [vmem:[%s1182 + $0xd68] sm:$0xff]
  %v1613 = vld [vmem:[%s1182 + $0xd70] sm:$0xff]
  %v1614 = vld [vmem:[%s1182 + $0xd78] sm:$0xff]
  %v1615 = vld [vmem:[%s1182 + $0xd80] sm:$0xff]
  %v1616 = vld [vmem:[%s1182 + $0xd88] sm:$0xff]
  %v1617 = vld [vmem:[%s1182 + $0xd90] sm:$0xff]
  %v1618 = vld [vmem:[%s1182 + $0xd98] sm:$0xff]
  %v1619 = vld [vmem:[%s1182 + $0xda0] sm:$0xff]
  %v1620 = vld [vmem:[%s1182 + $0xda8] sm:$0xff]
  %v1621 = vld [vmem:[%s1182 + $0xdb0] sm:$0xff]
  %v1622 = vld [vmem:[%s1182 + $0xdb8] sm:$0xff]
  %v1623 = vld [vmem:[%s1182 + $0xdc0] sm:$0xff]
  %v1624 = vld [vmem:[%s1182 + $0xdc8] sm:$0xff]
  %v1625 = vld [vmem:[%s1182 + $0xdd0] sm:$0xff]
  %v1626 = vld [vmem:[%s1182 + $0xdd8] sm:$0xff]
  %v1627 = vld [vmem:[%s1182 + $0xde0] sm:$0xff]
  %v1628 = vld [vmem:[%s1182 + $0xde8] sm:$0xff]
  %v1629 = vld [vmem:[%s1182 + $0xdf0] sm:$0xff]
  %v1630 = vld [vmem:[%s1182 + $0xdf8] sm:$0xff]
  %v1631 = vld [vmem:[%s1182 + $0xe00] sm:$0xff]
  %v1632 = vld [vmem:[%s1182 + $0xe08] sm:$0xff]
  %v1633 = vld [vmem:[%s1182 + $0xe10] sm:$0xff]
  %v1634 = vld [vmem:[%s1182 + $0xe18] sm:$0xff]
  %v1635 = vld [vmem:[%s1182 + $0xe20] sm:$0xff]
  %v1636 = vld [vmem:[%s1182 + $0xe28] sm:$0xff]
  %v1637 = vld [vmem:[%s1182 + $0xe30] sm:$0xff]
  %v1638 = vld [vmem:[%s1182 + $0xe38] sm:$0xff]
  %v1639 = vld [vmem:[%s1182 + $0xe40] sm:$0xff]
  %v1640 = vld [vmem:[%s1182 + $0xe48] sm:$0xff]
  %v1641 = vld [vmem:[%s1182 + $0xe50] sm:$0xff]
  %v1642 = vld [vmem:[%s1182 + $0xe58] sm:$0xff]
  %v1643 = vld [vmem:[%s1182 + $0xe60] sm:$0xff]
  %v1644 = vld [vmem:[%s1182 + $0xe68] sm:$0xff]
  %v1645 = vld [vmem:[%s1182 + $0xe70] sm:$0xff]
  %v1646 = vld [vmem:[%s1182 + $0xe78] sm:$0xff]
  %v1647 = vld [vmem:[%s1182 + $0xe80] sm:$0xff]
  %v1648 = vld [vmem:[%s1182 + $0xe88] sm:$0xff]
  %v1649 = vld [vmem:[%s1182 + $0xe90] sm:$0xff]
  %v1650 = vld [vmem:[%s1182 + $0xe98] sm:$0xff]
  %v1651 = vld [vmem:[%s1182 + $0xea0] sm:$0xff]
  %v1652 = vld [vmem:[%s1182 + $0xea8] sm:$0xff]
  %v1653 = vld [vmem:[%s1182 + $0xeb0] sm:$0xff]
  %v1654 = vld [vmem:[%s1182 + $0xeb8] sm:$0xff]
  %v1655 = vld [vmem:[%s1182 + $0xec0] sm:$0xff]
  %v1656 = vld [vmem:[%s1182 + $0xec8] sm:$0xff]
  %v1657 = vld [vmem:[%s1182 + $0xed0] sm:$0xff]
  %v1658 = vld [vmem:[%s1182 + $0xed8] sm:$0xff]
  %v1659 = vld [vmem:[%s1182 + $0xee0] sm:$0xff]
  %v1660 = vld [vmem:[%s1182 + $0xee8] sm:$0xff]
  %v1661 = vld [vmem:[%s1182 + $0xef0] sm:$0xff]
  %v1662 = vld [vmem:[%s1182 + $0xef8] sm:$0xff]
  %v1663 = vld [vmem:[%s1182 + $0xf00] sm:$0xff]
  %v1664 = vld [vmem:[%s1182 + $0xf08] sm:$0xff]
  %v1665 = vld [vmem:[%s1182 + $0xf10] sm:$0xff]
  %v1666 = vld [vmem:[%s1182 + $0xf18] sm:$0xff]
  %v1667 = vld [vmem:[%s1182 + $0xf20] sm:$0xff]
  %v1668 = vld [vmem:[%s1182 + $0xf28] sm:$0xff]
  %v1669 = vld [vmem:[%s1182 + $0xf30] sm:$0xff]
  %v1670 = vld [vmem:[%s1182 + $0xf38] sm:$0xff]
  %v1671 = vld [vmem:[%s1182 + $0xf40] sm:$0xff]
  %v1672 = vld [vmem:[%s1182 + $0xf48] sm:$0xff]
  %v1673 = vld [vmem:[%s1182 + $0xf50] sm:$0xff]
  %v1674 = vld [vmem:[%s1182 + $0xf58] sm:$0xff]
  %v1675 = vld [vmem:[%s1182 + $0xf60] sm:$0xff]
  %v1676 = vld [vmem:[%s1182 + $0xf68] sm:$0xff]
  %v1677 = vld [vmem:[%s1182 + $0xf70] sm:$0xff]
  %v1678 = vld [vmem:[%s1182 + $0xf78] sm:$0xff]
  %v1679 = vld [vmem:[%s1182 + $0xf80] sm:$0xff]
  %v1680 = vld [vmem:[%s1182 + $0xf88] sm:$0xff]
  %v1681 = vld [vmem:[%s1182 + $0xf90] sm:$0xff]
  %v1682 = vld [vmem:[%s1182 + $0xf98] sm:$0xff]
  %v1683 = vld [vmem:[%s1182 + $0xfa0] sm:$0xff]
  %v1684 = vld [vmem:[%s1182 + $0xfa8] sm:$0xff]
  %v1685 = vld [vmem:[%s1182 + $0xfb0] sm:$0xff]
  %v1686 = vld [vmem:[%s1182 + $0xfb8] sm:$0xff]
  %v1687 = vld [vmem:[%s1182 + $0xfc0] sm:$0xff]
  %v1688 = vld [vmem:[%s1182 + $0xfc8] sm:$0xff]
  %v1689 = vld [vmem:[%s1182 + $0xfd0] sm:$0xff]
  %v1690 = vld [vmem:[%s1182 + $0xfd8] sm:$0xff]
  %v1691 = vld [vmem:[%s1182 + $0xfe0] sm:$0xff]
  %v1692 = vld [vmem:[%s1182 + $0xfe8] sm:$0xff]
  %v1693 = vld [vmem:[%s1182 + $0xff0] sm:$0xff]
  %v1694 = vld [vmem:[%s1182 + $0xff8] sm:$0xff]
  %1695 = vmatprep.subr.mxu0 %v1244
  %1696 = vmatpush1.msra.mxu0 %v1243
  %1697 = vmatprep.subr.mxu0 %v1240
  %1698 = vmatpush1.msra.mxu0 %v1239
  %1699 = vmatprep.subr.mxu0 %v1236
  %1700 = vmatpush1.msra.mxu0 %v1235
  %1701 = vmatprep.subr.mxu0 %v1232
  %1702 = vmatpush1.msra.mxu0 %v1231
  %1703 = vmatprep.subr.mxu0 %v1228
  %1704 = vmatpush1.msra.mxu0 %v1227
  %1705 = vmatprep.subr.mxu0 %v1224
  %1706 = vmatpush1.msra.mxu0 %v1223
  %1707 = vmatprep.subr.mxu0 %v1220
  %1708 = vmatpush1.msra.mxu0 %v1219
  %1709 = vmatprep.subr.mxu0 %v1216
  %1710 = vmatpush1.msra.mxu0 %v1215
  %1711 = vmatprep.subr.mxu0 %v1212
  %1712 = vmatpush1.msra.mxu0 %v1211
  %1713 = vmatprep.subr.mxu0 %v1208
  %1714 = vmatpush1.msra.mxu0 %v1207
  %1715 = vmatprep.subr.mxu0 %v1204
  %1716 = vmatpush1.msra.mxu0 %v1203
  %1717 = vmatprep.subr.mxu0 %v1200
  %1718 = vmatpush1.msra.mxu0 %v1199
  %1719 = vmatprep.subr.mxu0 %v1196
  %1720 = vmatpush1.msra.mxu0 %v1195
  %1721 = vmatprep.subr.mxu0 %v1192
  %1722 = vmatpush1.msra.mxu0 %v1191
  %1723 = vmatprep.subr.mxu0 %v1188
  %1724 = vmatpush1.msra.mxu0 %v1187
  %1725 = vmatprep.subr.mxu0 %v1184
  %1726 = vmatpush1.msra.mxu0 %v1183
  %1727 = vmatprep.subr.mxu0 %v1308
  %1728 = vmatpush2.msra.mxu0 %v1307
  %1729 = vmatprep.subr.mxu0 %v1304
  %1730 = vmatpush2.msra.mxu0 %v1303
  %1731 = vmatprep.subr.mxu0 %v1300
  %1732 = vmatpush2.msra.mxu0 %v1299
  %1733 = vmatprep.subr.mxu0 %v1296
  %1734 = vmatpush2.msra.mxu0 %v1295
  %1735 = vmatprep.subr.mxu0 %v1292
  %1736 = vmatpush2.msra.mxu0 %v1291
  %1737 = vmatprep.subr.mxu0 %v1288
  %1738 = vmatpush2.msra.mxu0 %v1287
  %1739 = vmatprep.subr.mxu0 %v1284
  %1740 = vmatpush2.msra.mxu0 %v1283
  %1741 = vmatprep.subr.mxu0 %v1280
  %1742 = vmatpush2.msra.mxu0 %v1279
  %1743 = vmatprep.subr.mxu0 %v1276
  %1744 = vmatpush2.msra.mxu0 %v1275
  %1745 = vmatprep.subr.mxu0 %v1272
  %1746 = vmatpush2.msra.mxu0 %v1271
  %1747 = vmatprep.subr.mxu0 %v1268
  %1748 = vmatpush2.msra.mxu0 %v1267
  %1749 = vmatprep.subr.mxu0 %v1264
  %1750 = vmatpush2.msra.mxu0 %v1263
  %1751 = vmatprep.subr.mxu0 %v1260
  %1752 = vmatpush2.msra.mxu0 %v1259
  %1753 = vmatprep.subr.mxu0 %v1256
  %1754 = vmatpush2.msra.mxu0 %v1255
  %1755 = vmatprep.subr.mxu0 %v1252
  %1756 = vmatpush2.msra.mxu0 %v1251
  %1757 = vmatprep.subr.mxu0 %v1248
  %1758 = vmatpush2.msra.mxu0 %v1247
  %1759 = vmatprep.mubr.f32.mxu0 %v39
  %1760 = vmatmul.mubr.f32.gmra.mxu0 %v38
  %v1761 = vpop.f32.mrf.mxu0
  %v1762 = vadd.f32 0.0, %v1761
  %v1763 = vpop.f32.mrf.mxu0
  %v1764 = vadd.f32 0.0, %v1763
  %1765 = vmatprep.mubr.f32.mxu0 %v47
  %1766 = vmatmul.mubr.f32.gmra.mxu0 %v46
  %v1767 = vpop.f32.mrf.mxu0
  %v1768 = vadd.f32 0.0, %v1767
  %v1769 = vpop.f32.mrf.mxu0
  %v1770 = vadd.f32 0.0, %v1769
  %1771 = vdwg.mxu0
  %1772 = vmatprep.subr.mxu0 %v1372
  %1773 = vmatpush1.msra.mxu0 %v1371
  %1774 = vmatprep.subr.mxu0 %v1368
  %1775 = vmatpush1.msra.mxu0 %v1367
  %1776 = vmatprep.subr.mxu0 %v1364
  %1777 = vmatpush1.msra.mxu0 %v1363
  %1778 = vmatprep.subr.mxu0 %v1360
  %1779 = vmatpush1.msra.mxu0 %v1359
  %1780 = vmatprep.subr.mxu0 %v1356
  %1781 = vmatpush1.msra.mxu0 %v1355
  %1782 = vmatprep.subr.mxu0 %v1352
  %1783 = vmatpush1.msra.mxu0 %v1351
  %1784 = vmatprep.subr.mxu0 %v1348
  %1785 = vmatpush1.msra.mxu0 %v1347
  %1786 = vmatprep.subr.mxu0 %v1344
  %1787 = vmatpush1.msra.mxu0 %v1343
  %1788 = vmatprep.subr.mxu0 %v1340
  %1789 = vmatpush1.msra.mxu0 %v1339
  %1790 = vmatprep.subr.mxu0 %v1336
  %1791 = vmatpush1.msra.mxu0 %v1335
  %1792 = vmatprep.subr.mxu0 %v1332
  %1793 = vmatpush1.msra.mxu0 %v1331
  %1794 = vmatprep.subr.mxu0 %v1328
  %1795 = vmatpush1.msra.mxu0 %v1327
  %1796 = vmatprep.subr.mxu0 %v1324
  %1797 = vmatpush1.msra.mxu0 %v1323
  %1798 = vmatprep.subr.mxu0 %v1320
  %1799 = vmatpush1.msra.mxu0 %v1319
  %1800 = vmatprep.subr.mxu0 %v1316
  %1801 = vmatpush1.msra.mxu0 %v1315
  %1802 = vmatprep.subr.mxu0 %v1312
  %1803 = vmatpush1.msra.mxu0 %v1311
  %1804 = vmatprep.subr.mxu0 %v1436
  %1805 = vmatpush2.msra.mxu0 %v1435
  %1806 = vmatprep.subr.mxu0 %v1432
  %1807 = vmatpush2.msra.mxu0 %v1431
  %1808 = vmatprep.subr.mxu0 %v1428
  %1809 = vmatpush2.msra.mxu0 %v1427
  %1810 = vmatprep.subr.mxu0 %v1424
  %1811 = vmatpush2.msra.mxu0 %v1423
  %1812 = vmatprep.subr.mxu0 %v1420
  %1813 = vmatpush2.msra.mxu0 %v1419
  %1814 = vmatprep.subr.mxu0 %v1416
  %1815 = vmatpush2.msra.mxu0 %v1415
  %1816 = vmatprep.subr.mxu0 %v1412
  %1817 = vmatpush2.msra.mxu0 %v1411
  %1818 = vmatprep.subr.mxu0 %v1408
  %1819 = vmatpush2.msra.mxu0 %v1407
  %1820 = vmatprep.subr.mxu0 %v1404
  %1821 = vmatpush2.msra.mxu0 %v1403
  %1822 = vmatprep.subr.mxu0 %v1400
  %1823 = vmatpush2.msra.mxu0 %v1399
  %1824 = vmatprep.subr.mxu0 %v1396
  %1825 = vmatpush2.msra.mxu0 %v1395
  %1826 = vmatprep.subr.mxu0 %v1392
  %1827 = vmatpush2.msra.mxu0 %v1391
  %1828 = vmatprep.subr.mxu0 %v1388
  %1829 = vmatpush2.msra.mxu0 %v1387
  %1830 = vmatprep.subr.mxu0 %v1384
  %1831 = vmatpush2.msra.mxu0 %v1383
  %1832 = vmatprep.subr.mxu0 %v1380
  %1833 = vmatpush2.msra.mxu0 %v1379
  %1834 = vmatprep.subr.mxu0 %v1376
  %1835 = vmatpush2.msra.mxu0 %v1375
  %1836 = vmatprep.mubr.f32.mxu0 %v41
  %1837 = vmatmul.mubr.f32.gmra.mxu0 %v40
  %v1838 = vpop.f32.mrf.mxu0
  %v1839 = vadd.f32 %v1762, %v1838
  %v1840 = vpop.f32.mrf.mxu0
  %v1841 = vadd.f32 %v1764, %v1840
  %1842 = vmatprep.mubr.f32.mxu0 %v49
  %1843 = vmatmul.mubr.f32.gmra.mxu0 %v48
  %v1844 = vpop.f32.mrf.mxu0
  %v1845 = vadd.f32 %v1768, %v1844
  %v1846 = vpop.f32.mrf.mxu0
  %v1847 = vadd.f32 %v1770, %v1846
  %1848 = vdwg.mxu0
  %1849 = vmatprep.subr.mxu0 %v1500
  %1850 = vmatpush1.msra.mxu0 %v1499
  %1851 = vmatprep.subr.mxu0 %v1496
  %1852 = vmatpush1.msra.mxu0 %v1495
  %1853 = vmatprep.subr.mxu0 %v1492
  %1854 = vmatpush1.msra.mxu0 %v1491
  %1855 = vmatprep.subr.mxu0 %v1488
  %1856 = vmatpush1.msra.mxu0 %v1487
  %1857 = vmatprep.subr.mxu0 %v1484
  %1858 = vmatpush1.msra.mxu0 %v1483
  %1859 = vmatprep.subr.mxu0 %v1480
  %1860 = vmatpush1.msra.mxu0 %v1479
  %1861 = vmatprep.subr.mxu0 %v1476
  %1862 = vmatpush1.msra.mxu0 %v1475
  %1863 = vmatprep.subr.mxu0 %v1472
  %1864 = vmatpush1.msra.mxu0 %v1471
  %1865 = vmatprep.subr.mxu0 %v1468
  %1866 = vmatpush1.msra.mxu0 %v1467
  %1867 = vmatprep.subr.mxu0 %v1464
  %1868 = vmatpush1.msra.mxu0 %v1463
  %1869 = vmatprep.subr.mxu0 %v1460
  %1870 = vmatpush1.msra.mxu0 %v1459
  %1871 = vmatprep.subr.mxu0 %v1456
  %1872 = vmatpush1.msra.mxu0 %v1455
  %1873 = vmatprep.subr.mxu0 %v1452
  %1874 = vmatpush1.msra.mxu0 %v1451
  %1875 = vmatprep.subr.mxu0 %v1448
  %1876 = vmatpush1.msra.mxu0 %v1447
  %1877 = vmatprep.subr.mxu0 %v1444
  %1878 = vmatpush1.msra.mxu0 %v1443
  %1879 = vmatprep.subr.mxu0 %v1440
  %1880 = vmatpush1.msra.mxu0 %v1439
  %1881 = vmatprep.subr.mxu0 %v1564
  %1882 = vmatpush2.msra.mxu0 %v1563
  %1883 = vmatprep.subr.mxu0 %v1560
  %1884 = vmatpush2.msra.mxu0 %v1559
  %1885 = vmatprep.subr.mxu0 %v1556
  %1886 = vmatpush2.msra.mxu0 %v1555
  %1887 = vmatprep.subr.mxu0 %v1552
  %1888 = vmatpush2.msra.mxu0 %v1551
  %1889 = vmatprep.subr.mxu0 %v1548
  %1890 = vmatpush2.msra.mxu0 %v1547
  %1891 = vmatprep.subr.mxu0 %v1544
  %1892 = vmatpush2.msra.mxu0 %v1543
  %1893 = vmatprep.subr.mxu0 %v1540
  %1894 = vmatpush2.msra.mxu0 %v1539
  %1895 = vmatprep.subr.mxu0 %v1536
  %1896 = vmatpush2.msra.mxu0 %v1535
  %1897 = vmatprep.subr.mxu0 %v1532
  %1898 = vmatpush2.msra.mxu0 %v1531
  %1899 = vmatprep.subr.mxu0 %v1528
  %1900 = vmatpush2.msra.mxu0 %v1527
  %1901 = vmatprep.subr.mxu0 %v1524
  %1902 = vmatpush2.msra.mxu0 %v1523
  %1903 = vmatprep.subr.mxu0 %v1520
  %1904 = vmatpush2.msra.mxu0 %v1519
  %1905 = vmatprep.subr.mxu0 %v1516
  %1906 = vmatpush2.msra.mxu0 %v1515
  %1907 = vmatprep.subr.mxu0 %v1512
  %1908 = vmatpush2.msra.mxu0 %v1511
  %1909 = vmatprep.subr.mxu0 %v1508
  %1910 = vmatpush2.msra.mxu0 %v1507
  %1911 = vmatprep.subr.mxu0 %v1504
  %1912 = vmatpush2.msra.mxu0 %v1503
  %1913 = vmatprep.mubr.f32.mxu0 %v43
  %1914 = vmatmul.mubr.f32.gmra.mxu0 %v42
  %v1915 = vpop.f32.mrf.mxu0
  %v1916 = vadd.f32 %v1839, %v1915
  %v1917 = vpop.f32.mrf.mxu0
  %v1918 = vadd.f32 %v1841, %v1917
  %1919 = vmatprep.mubr.f32.mxu0 %v51
  %1920 = vmatmul.mubr.f32.gmra.mxu0 %v50
  %v1921 = vpop.f32.mrf.mxu0
  %v1922 = vadd.f32 %v1845, %v1921
  %v1923 = vpop.f32.mrf.mxu0
  %v1924 = vadd.f32 %v1847, %v1923
  %1925 = vdwg.mxu0
  %1926 = vmatprep.subr.mxu0 %v1628
  %1927 = vmatpush1.msra.mxu0 %v1627
  %1928 = vmatprep.subr.mxu0 %v1624
  %1929 = vmatpush1.msra.mxu0 %v1623
  %1930 = vmatprep.subr.mxu0 %v1620
  %1931 = vmatpush1.msra.mxu0 %v1619
  %1932 = vmatprep.subr.mxu0 %v1616
  %1933 = vmatpush1.msra.mxu0 %v1615
  %1934 = vmatprep.subr.mxu0 %v1612
  %1935 = vmatpush1.msra.mxu0 %v1611
  %1936 = vmatprep.subr.mxu0 %v1608
  %1937 = vmatpush1.msra.mxu0 %v1607
  %1938 = vmatprep.subr.mxu0 %v1604
  %1939 = vmatpush1.msra.mxu0 %v1603
  %1940 = vmatprep.subr.mxu0 %v1600
  %1941 = vmatpush1.msra.mxu0 %v1599
  %1942 = vmatprep.subr.mxu0 %v1596
  %1943 = vmatpush1.msra.mxu0 %v1595
  %1944 = vmatprep.subr.mxu0 %v1592
  %1945 = vmatpush1.msra.mxu0 %v1591
  %1946 = vmatprep.subr.mxu0 %v1588
  %1947 = vmatpush1.msra.mxu0 %v1587
  %1948 = vmatprep.subr.mxu0 %v1584
  %1949 = vmatpush1.msra.mxu0 %v1583
  %1950 = vmatprep.subr.mxu0 %v1580
  %1951 = vmatpush1.msra.mxu0 %v1579
  %1952 = vmatprep.subr.mxu0 %v1576
  %1953 = vmatpush1.msra.mxu0 %v1575
  %1954 = vmatprep.subr.mxu0 %v1572
  %1955 = vmatpush1.msra.mxu0 %v1571
  %1956 = vmatprep.subr.mxu0 %v1568
  %1957 = vmatpush1.msra.mxu0 %v1567
  %1958 = vmatprep.subr.mxu0 %v1692
  %1959 = vmatpush2.msra.mxu0 %v1691
  %1960 = vmatprep.subr.mxu0 %v1688
  %1961 = vmatpush2.msra.mxu0 %v1687
  %1962 = vmatprep.subr.mxu0 %v1684
  %1963 = vmatpush2.msra.mxu0 %v1683
  %1964 = vmatprep.subr.mxu0 %v1680
  %1965 = vmatpush2.msra.mxu0 %v1679
  %1966 = vmatprep.subr.mxu0 %v1676
  %1967 = vmatpush2.msra.mxu0 %v1675
  %1968 = vmatprep.subr.mxu0 %v1672
  %1969 = vmatpush2.msra.mxu0 %v1671
  %1970 = vmatprep.subr.mxu0 %v1668
  %1971 = vmatpush2.msra.mxu0 %v1667
  %1972 = vmatprep.subr.mxu0 %v1664
  %1973 = vmatpush2.msra.mxu0 %v1663
  %1974 = vmatprep.subr.mxu0 %v1660
  %1975 = vmatpush2.msra.mxu0 %v1659
  %1976 = vmatprep.subr.mxu0 %v1656
  %1977 = vmatpush2.msra.mxu0 %v1655
  %1978 = vmatprep.subr.mxu0 %v1652
  %1979 = vmatpush2.msra.mxu0 %v1651
  %1980 = vmatprep.subr.mxu0 %v1648
  %1981 = vmatpush2.msra.mxu0 %v1647
  %1982 = vmatprep.subr.mxu0 %v1644
  %1983 = vmatpush2.msra.mxu0 %v1643
  %1984 = vmatprep.subr.mxu0 %v1640
  %1985 = vmatpush2.msra.mxu0 %v1639
  %1986 = vmatprep.subr.mxu0 %v1636
  %1987 = vmatpush2.msra.mxu0 %v1635
  %1988 = vmatprep.subr.mxu0 %v1632
  %1989 = vmatpush2.msra.mxu0 %v1631
  %1990 = vmatprep.mubr.f32.mxu0 %v45
  %1991 = vmatmul.mubr.f32.gmra.mxu0 %v44
  %v1992 = vpop.f32.mrf.mxu0
  %v1993 = vadd.f32 %v1916, %v1992
  %v1994 = vpop.f32.mrf.mxu0
  %v1995 = vadd.f32 %v1918, %v1994
  %1996 = vmatprep.mubr.f32.mxu0 %v53
  %1997 = vmatmul.mubr.f32.gmra.mxu0 %v52
  %v1998 = vpop.f32.mrf.mxu0
  %v1999 = vadd.f32 %v1922, %v1998
  %v2000 = vpop.f32.mrf.mxu0
  %v2001 = vadd.f32 %v1924, %v2000
  %2002 = vdwg.mxu0
  %2003 = vmatprep.subr.mxu0 %v1246
  %2004 = vmatpush1.msra.mxu0 %v1245
  %2005 = vmatprep.subr.mxu0 %v1242
  %2006 = vmatpush1.msra.mxu0 %v1241
  %2007 = vmatprep.subr.mxu0 %v1238
  %2008 = vmatpush1.msra.mxu0 %v1237
  %2009 = vmatprep.subr.mxu0 %v1234
  %2010 = vmatpush1.msra.mxu0 %v1233
  %2011 = vmatprep.subr.mxu0 %v1230
  %2012 = vmatpush1.msra.mxu0 %v1229
  %2013 = vmatprep.subr.mxu0 %v1226
  %2014 = vmatpush1.msra.mxu0 %v1225
  %2015 = vmatprep.subr.mxu0 %v1222
  %2016 = vmatpush1.msra.mxu0 %v1221
  %2017 = vmatprep.subr.mxu0 %v1218
  %2018 = vmatpush1.msra.mxu0 %v1217
  %2019 = vmatprep.subr.mxu0 %v1214
  %2020 = vmatpush1.msra.mxu0 %v1213
  %2021 = vmatprep.subr.mxu0 %v1210
  %2022 = vmatpush1.msra.mxu0 %v1209
  %2023 = vmatprep.subr.mxu0 %v1206
  %2024 = vmatpush1.msra.mxu0 %v1205
  %2025 = vmatprep.subr.mxu0 %v1202
  %2026 = vmatpush1.msra.mxu0 %v1201
  %2027 = vmatprep.subr.mxu0 %v1198
  %2028 = vmatpush1.msra.mxu0 %v1197
  %2029 = vmatprep.subr.mxu0 %v1194
  %2030 = vmatpush1.msra.mxu0 %v1193
  %2031 = vmatprep.subr.mxu0 %v1190
  %2032 = vmatpush1.msra.mxu0 %v1189
  %2033 = vmatprep.subr.mxu0 %v1186
  %2034 = vmatpush1.msra.mxu0 %v1185
  %2035 = vmatprep.subr.mxu0 %v1310
  %2036 = vmatpush2.msra.mxu0 %v1309
  %2037 = vmatprep.subr.mxu0 %v1306
  %2038 = vmatpush2.msra.mxu0 %v1305
  %2039 = vmatprep.subr.mxu0 %v1302
  %2040 = vmatpush2.msra.mxu0 %v1301
  %2041 = vmatprep.subr.mxu0 %v1298
  %2042 = vmatpush2.msra.mxu0 %v1297
  %2043 = vmatprep.subr.mxu0 %v1294
  %2044 = vmatpush2.msra.mxu0 %v1293
  %2045 = vmatprep.subr.mxu0 %v1290
  %2046 = vmatpush2.msra.mxu0 %v1289
  %2047 = vmatprep.subr.mxu0 %v1286
  %2048 = vmatpush2.msra.mxu0 %v1285
  %2049 = vmatprep.subr.mxu0 %v1282
  %2050 = vmatpush2.msra.mxu0 %v1281
  %2051 = vmatprep.subr.mxu0 %v1278
  %2052 = vmatpush2.msra.mxu0 %v1277
  %2053 = vmatprep.subr.mxu0 %v1274
  %2054 = vmatpush2.msra.mxu0 %v1273
  %2055 = vmatprep.subr.mxu0 %v1270
  %2056 = vmatpush2.msra.mxu0 %v1269
  %2057 = vmatprep.subr.mxu0 %v1266
  %2058 = vmatpush2.msra.mxu0 %v1265
  %2059 = vmatprep.subr.mxu0 %v1262
  %2060 = vmatpush2.msra.mxu0 %v1261
  %2061 = vmatprep.subr.mxu0 %v1258
  %2062 = vmatpush2.msra.mxu0 %v1257
  %2063 = vmatprep.subr.mxu0 %v1254
  %2064 = vmatpush2.msra.mxu0 %v1253
  %2065 = vmatprep.subr.mxu0 %v1250
  %2066 = vmatpush2.msra.mxu0 %v1249
  %2067 = vmatprep.mubr.f32.mxu0 %v39
  %2068 = vmatmul.mubr.f32.gmra.mxu0 %v38
  %v2069 = vpop.f32.mrf.mxu0
  %v2070 = vadd.f32 0.0, %v2069
  %v2071 = vpop.f32.mrf.mxu0
  %v2072 = vadd.f32 0.0, %v2071
  %2073 = vmatprep.mubr.f32.mxu0 %v47
  %2074 = vmatmul.mubr.f32.gmra.mxu0 %v46
  %v2075 = vpop.f32.mrf.mxu0
  %v2076 = vadd.f32 0.0, %v2075
  %v2077 = vpop.f32.mrf.mxu0
  %v2078 = vadd.f32 0.0, %v2077
  %2079 = vdwg.mxu0
  %2080 = vmatprep.subr.mxu0 %v1374
  %2081 = vmatpush1.msra.mxu0 %v1373
  %2082 = vmatprep.subr.mxu0 %v1370
  %2083 = vmatpush1.msra.mxu0 %v1369
  %2084 = vmatprep.subr.mxu0 %v1366
  %2085 = vmatpush1.msra.mxu0 %v1365
  %2086 = vmatprep.subr.mxu0 %v1362
  %2087 = vmatpush1.msra.mxu0 %v1361
  %2088 = vmatprep.subr.mxu0 %v1358
  %2089 = vmatpush1.msra.mxu0 %v1357
  %2090 = vmatprep.subr.mxu0 %v1354
  %2091 = vmatpush1.msra.mxu0 %v1353
  %2092 = vmatprep.subr.mxu0 %v1350
  %2093 = vmatpush1.msra.mxu0 %v1349
  %2094 = vmatprep.subr.mxu0 %v1346
  %2095 = vmatpush1.msra.mxu0 %v1345
  %2096 = vmatprep.subr.mxu0 %v1342
  %2097 = vmatpush1.msra.mxu0 %v1341
  %2098 = vmatprep.subr.mxu0 %v1338
  %2099 = vmatpush1.msra.mxu0 %v1337
  %2100 = vmatprep.subr.mxu0 %v1334
  %2101 = vmatpush1.msra.mxu0 %v1333
  %2102 = vmatprep.subr.mxu0 %v1330
  %2103 = vmatpush1.msra.mxu0 %v1329
  %2104 = vmatprep.subr.mxu0 %v1326
  %2105 = vmatpush1.msra.mxu0 %v1325
  %2106 = vmatprep.subr.mxu0 %v1322
  %2107 = vmatpush1.msra.mxu0 %v1321
  %2108 = vmatprep.subr.mxu0 %v1318
  %2109 = vmatpush1.msra.mxu0 %v1317
  %2110 = vmatprep.subr.mxu0 %v1314
  %2111 = vmatpush1.msra.mxu0 %v1313
  %2112 = vmatprep.subr.mxu0 %v1438
  %2113 = vmatpush2.msra.mxu0 %v1437
  %2114 = vmatprep.subr.mxu0 %v1434
  %2115 = vmatpush2.msra.mxu0 %v1433
  %2116 = vmatprep.subr.mxu0 %v1430
  %2117 = vmatpush2.msra.mxu0 %v1429
  %2118 = vmatprep.subr.mxu0 %v1426
  %2119 = vmatpush2.msra.mxu0 %v1425
  %2120 = vmatprep.subr.mxu0 %v1422
  %2121 = vmatpush2.msra.mxu0 %v1421
  %2122 = vmatprep.subr.mxu0 %v1418
  %2123 = vmatpush2.msra.mxu0 %v1417
  %2124 = vmatprep.subr.mxu0 %v1414
  %2125 = vmatpush2.msra.mxu0 %v1413
  %2126 = vmatprep.subr.mxu0 %v1410
  %2127 = vmatpush2.msra.mxu0 %v1409
  %2128 = vmatprep.subr.mxu0 %v1406
  %2129 = vmatpush2.msra.mxu0 %v1405
  %2130 = vmatprep.subr.mxu0 %v1402
  %2131 = vmatpush2.msra.mxu0 %v1401
  %2132 = vmatprep.subr.mxu0 %v1398
  %2133 = vmatpush2.msra.mxu0 %v1397
  %2134 = vmatprep.subr.mxu0 %v1394
  %2135 = vmatpush2.msra.mxu0 %v1393
  %2136 = vmatprep.subr.mxu0 %v1390
  %2137 = vmatpush2.msra.mxu0 %v1389
  %2138 = vmatprep.subr.mxu0 %v1386
  %2139 = vmatpush2.msra.mxu0 %v1385
  %2140 = vmatprep.subr.mxu0 %v1382
  %2141 = vmatpush2.msra.mxu0 %v1381
  %2142 = vmatprep.subr.mxu0 %v1378
  %2143 = vmatpush2.msra.mxu0 %v1377
  %2144 = vmatprep.mubr.f32.mxu0 %v41
  %2145 = vmatmul.mubr.f32.gmra.mxu0 %v40
  %v2146 = vpop.f32.mrf.mxu0
  %v2147 = vadd.f32 %v2070, %v2146
  %v2148 = vpop.f32.mrf.mxu0
  %v2149 = vadd.f32 %v2072, %v2148
  %2150 = vmatprep.mubr.f32.mxu0 %v49
  %2151 = vmatmul.mubr.f32.gmra.mxu0 %v48
  %v2152 = vpop.f32.mrf.mxu0
  %v2153 = vadd.f32 %v2076, %v2152
  %v2154 = vpop.f32.mrf.mxu0
  %v2155 = vadd.f32 %v2078, %v2154
  %2156 = vdwg.mxu0
  %2157 = vmatprep.subr.mxu0 %v1502
  %2158 = vmatpush1.msra.mxu0 %v1501
  %2159 = vmatprep.subr.mxu0 %v1498
  %2160 = vmatpush1.msra.mxu0 %v1497
  %2161 = vmatprep.subr.mxu0 %v1494
  %2162 = vmatpush1.msra.mxu0 %v1493
  %2163 = vmatprep.subr.mxu0 %v1490
  %2164 = vmatpush1.msra.mxu0 %v1489
  %2165 = vmatprep.subr.mxu0 %v1486
  %2166 = vmatpush1.msra.mxu0 %v1485
  %2167 = vmatprep.subr.mxu0 %v1482
  %2168 = vmatpush1.msra.mxu0 %v1481
  %2169 = vmatprep.subr.mxu0 %v1478
  %2170 = vmatpush1.msra.mxu0 %v1477
  %2171 = vmatprep.subr.mxu0 %v1474
  %2172 = vmatpush1.msra.mxu0 %v1473
  %2173 = vmatprep.subr.mxu0 %v1470
  %2174 = vmatpush1.msra.mxu0 %v1469
  %2175 = vmatprep.subr.mxu0 %v1466
  %2176 = vmatpush1.msra.mxu0 %v1465
  %2177 = vmatprep.subr.mxu0 %v1462
  %2178 = vmatpush1.msra.mxu0 %v1461
  %2179 = vmatprep.subr.mxu0 %v1458
  %2180 = vmatpush1.msra.mxu0 %v1457
  %2181 = vmatprep.subr.mxu0 %v1454
  %2182 = vmatpush1.msra.mxu0 %v1453
  %2183 = vmatprep.subr.mxu0 %v1450
  %2184 = vmatpush1.msra.mxu0 %v1449
  %2185 = vmatprep.subr.mxu0 %v1446
  %2186 = vmatpush1.msra.mxu0 %v1445
  %2187 = vmatprep.subr.mxu0 %v1442
  %2188 = vmatpush1.msra.mxu0 %v1441
  %2189 = vmatprep.subr.mxu0 %v1566
  %2190 = vmatpush2.msra.mxu0 %v1565
  %2191 = vmatprep.subr.mxu0 %v1562
  %2192 = vmatpush2.msra.mxu0 %v1561
  %2193 = vmatprep.subr.mxu0 %v1558
  %2194 = vmatpush2.msra.mxu0 %v1557
  %2195 = vmatprep.subr.mxu0 %v1554
  %2196 = vmatpush2.msra.mxu0 %v1553
  %2197 = vmatprep.subr.mxu0 %v1550
  %2198 = vmatpush2.msra.mxu0 %v1549
  %2199 = vmatprep.subr.mxu0 %v1546
  %2200 = vmatpush2.msra.mxu0 %v1545
  %2201 = vmatprep.subr.mxu0 %v1542
  %2202 = vmatpush2.msra.mxu0 %v1541
  %2203 = vmatprep.subr.mxu0 %v1538
  %2204 = vmatpush2.msra.mxu0 %v1537
  %2205 = vmatprep.subr.mxu0 %v1534
  %2206 = vmatpush2.msra.mxu0 %v1533
  %2207 = vmatprep.subr.mxu0 %v1530
  %2208 = vmatpush2.msra.mxu0 %v1529
  %2209 = vmatprep.subr.mxu0 %v1526
  %2210 = vmatpush2.msra.mxu0 %v1525
  %2211 = vmatprep.subr.mxu0 %v1522
  %2212 = vmatpush2.msra.mxu0 %v1521
  %2213 = vmatprep.subr.mxu0 %v1518
  %2214 = vmatpush2.msra.mxu0 %v1517
  %2215 = vmatprep.subr.mxu0 %v1514
  %2216 = vmatpush2.msra.mxu0 %v1513
  %2217 = vmatprep.subr.mxu0 %v1510
  %2218 = vmatpush2.msra.mxu0 %v1509
  %2219 = vmatprep.subr.mxu0 %v1506
  %2220 = vmatpush2.msra.mxu0 %v1505
  %2221 = vmatprep.mubr.f32.mxu0 %v43
  %2222 = vmatmul.mubr.f32.gmra.mxu0 %v42
  %v2223 = vpop.f32.mrf.mxu0
  %v2224 = vadd.f32 %v2147, %v2223
  %v2225 = vpop.f32.mrf.mxu0
  %v2226 = vadd.f32 %v2149, %v2225
  %2227 = vmatprep.mubr.f32.mxu0 %v51
  %2228 = vmatmul.mubr.f32.gmra.mxu0 %v50
  %v2229 = vpop.f32.mrf.mxu0
  %v2230 = vadd.f32 %v2153, %v2229
  %v2231 = vpop.f32.mrf.mxu0
  %v2232 = vadd.f32 %v2155, %v2231
  %2233 = vdwg.mxu0
  %2234 = vmatprep.subr.mxu0 %v1630
  %2235 = vmatpush1.msra.mxu0 %v1629
  %2236 = vmatprep.subr.mxu0 %v1626
  %2237 = vmatpush1.msra.mxu0 %v1625
  %2238 = vmatprep.subr.mxu0 %v1622
  %2239 = vmatpush1.msra.mxu0 %v1621
  %2240 = vmatprep.subr.mxu0 %v1618
  %2241 = vmatpush1.msra.mxu0 %v1617
  %2242 = vmatprep.subr.mxu0 %v1614
  %2243 = vmatpush1.msra.mxu0 %v1613
  %2244 = vmatprep.subr.mxu0 %v1610
  %2245 = vmatpush1.msra.mxu0 %v1609
  %2246 = vmatprep.subr.mxu0 %v1606
  %2247 = vmatpush1.msra.mxu0 %v1605
  %2248 = vmatprep.subr.mxu0 %v1602
  %2249 = vmatpush1.msra.mxu0 %v1601
  %2250 = vmatprep.subr.mxu0 %v1598
  %2251 = vmatpush1.msra.mxu0 %v1597
  %2252 = vmatprep.subr.mxu0 %v1594
  %2253 = vmatpush1.msra.mxu0 %v1593
  %2254 = vmatprep.subr.mxu0 %v1590
  %2255 = vmatpush1.msra.mxu0 %v1589
  %2256 = vmatprep.subr.mxu0 %v1586
  %2257 = vmatpush1.msra.mxu0 %v1585
  %2258 = vmatprep.subr.mxu0 %v1582
  %2259 = vmatpush1.msra.mxu0 %v1581
  %2260 = vmatprep.subr.mxu0 %v1578
  %2261 = vmatpush1.msra.mxu0 %v1577
  %2262 = vmatprep.subr.mxu0 %v1574
  %2263 = vmatpush1.msra.mxu0 %v1573
  %2264 = vmatprep.subr.mxu0 %v1570
  %2265 = vmatpush1.msra.mxu0 %v1569
  %2266 = vmatprep.subr.mxu0 %v1694
  %2267 = vmatpush2.msra.mxu0 %v1693
  %2268 = vmatprep.subr.mxu0 %v1690
  %2269 = vmatpush2.msra.mxu0 %v1689
  %2270 = vmatprep.subr.mxu0 %v1686
  %2271 = vmatpush2.msra.mxu0 %v1685
  %2272 = vmatprep.subr.mxu0 %v1682
  %2273 = vmatpush2.msra.mxu0 %v1681
  %2274 = vmatprep.subr.mxu0 %v1678
  %2275 = vmatpush2.msra.mxu0 %v1677
  %2276 = vmatprep.subr.mxu0 %v1674
  %2277 = vmatpush2.msra.mxu0 %v1673
  %2278 = vmatprep.subr.mxu0 %v1670
  %2279 = vmatpush2.msra.mxu0 %v1669
  %2280 = vmatprep.subr.mxu0 %v1666
  %2281 = vmatpush2.msra.mxu0 %v1665
  %2282 = vmatprep.subr.mxu0 %v1662
  %2283 = vmatpush2.msra.mxu0 %v1661
  %2284 = vmatprep.subr.mxu0 %v1658
  %2285 = vmatpush2.msra.mxu0 %v1657
  %2286 = vmatprep.subr.mxu0 %v1654
  %2287 = vmatpush2.msra.mxu0 %v1653
  %2288 = vmatprep.subr.mxu0 %v1650
  %2289 = vmatpush2.msra.mxu0 %v1649
  %2290 = vmatprep.subr.mxu0 %v1646
  %2291 = vmatpush2.msra.mxu0 %v1645
  %2292 = vmatprep.subr.mxu0 %v1642
  %2293 = vmatpush2.msra.mxu0 %v1641
  %2294 = vmatprep.subr.mxu0 %v1638
  %2295 = vmatpush2.msra.mxu0 %v1637
  %2296 = vmatprep.subr.mxu0 %v1634
  %2297 = vmatpush2.msra.mxu0 %v1633
  %2298 = vmatprep.mubr.f32.mxu0 %v45
  %2299 = vmatmul.mubr.f32.gmra.mxu0 %v44
  %v2300 = vpop.f32.mrf.mxu0
  %v2301 = vadd.f32 %v2224, %v2300
  %v2302 = vpop.f32.mrf.mxu0
  %v2303 = vadd.f32 %v2226, %v2302
  %2304 = vmatprep.mubr.f32.mxu0 %v53
  %2305 = vmatmul.mubr.f32.gmra.mxu0 %v52
  %v2306 = vpop.f32.mrf.mxu0
  %v2307 = vadd.f32 %v2230, %v2306
  %v2308 = vpop.f32.mrf.mxu0
  %v2309 = vadd.f32 %v2232, %v2308
  %2310 = vdwg.mxu0
  %v2311 = vmax.f32 %v864, %v1993
  %v2312 = vmax.f32 %v866, %v1995
  %v2313 = vmax.f32 %v1172, %v2301
  %v2314 = vmax.f32 %v1174, %v2303
  %v2315 = vmax.f32 %v870, %v1999
  %v2316 = vmax.f32 %v872, %v2001
  %v2317 = vmax.f32 %v1178, %v2307
  %v2318 = vmax.f32 %v1180, %v2309
  %v2319 = vld [vmem:[%s2] sm:$0xf]
  %v2321 = vlaneseq
  %v2322 = vshrl.u32 %v2321, 7
  %v2323 = vsub.s32 0, %v2322
  %v2324 = vrot.slane %v2319, %v2323
  %v2325 = vlaneseq
  %v2326 = vshrl.u32 %v2325, 7
  %v2327 = vsub.s32 1, %v2326
  %v2328 = vrot.slane %v2319, %v2327
  %v2329 = vlaneseq
  %v2330 = vshrl.u32 %v2329, 7
  %v2331 = vsub.s32 2, %v2330
  %v2332 = vrot.slane %v2319, %v2331
  %v2333 = vlaneseq
  %v2334 = vshrl.u32 %v2333, 7
  %v2335 = vsub.s32 3, %v2334
  %v2336 = vrot.slane %v2319, %v2335
  %v2341 = vadd.f32 %v2311, %v2324
  %v2342 = vadd.f32 %v2312, %v2328
  %v2343 = vadd.f32 %v2313, %v2332
  %v2344 = vadd.f32 %v2314, %v2336
  %v2345 = vadd.f32 %v2315, %v2324
  %v2346 = vadd.f32 %v2316, %v2328
  %v2347 = vadd.f32 %v2317, %v2332
  %v2348 = vadd.f32 %v2318, %v2336
  %v2349 = vmax.f32 %v2341, 0.0
  %v2350 = vmax.f32 %v2342, 0.0
  %v2351 = vmax.f32 %v2343, 0.0
  %v2352 = vmax.f32 %v2344, 0.0
  %v2353 = vmax.f32 %v2345, 0.0
  %v2354 = vmax.f32 %v2346, 0.0
  %v2355 = vmax.f32 %v2347, 0.0
  %v2356 = vmax.f32 %v2348, 0.0
  %2365 = vrot.lane.b32.xlu0 %v2349, 122
  %v2366 = vpop.permute.xlu0 %2365
  %2367 = vrot.lane.b32.xlu0 %v2350, 122
  %v2368 = vpop.permute.xlu0 %2367
  %2369 = vrot.lane.b32.xlu0 %v2351, 122
  %v2370 = vpop.permute.xlu0 %2369
  %2371 = vrot.lane.b32.xlu0 %v2352, 122
  %v2372 = vpop.permute.xlu0 %2371
  %2373 = vrot.lane.b32.xlu0 %v2353, 122
  %v2374 = vpop.permute.xlu0 %2373
  %2375 = vrot.lane.b32.xlu0 %v2354, 122
  %v2376 = vpop.permute.xlu0 %2375
  %2377 = vrot.lane.b32.xlu0 %v2355, 122
  %v2378 = vpop.permute.xlu0 %2377
  %2379 = vrot.lane.b32.xlu0 %v2356, 122
  %v2380 = vpop.permute.xlu0 %2379
  %vm2381 = vcmask 998400
  %v2382 = vsel %vm2381, %v2366, %v2368
  %v2383 = vsel %vm2381, %v2368, %v2370
  %v2384 = vsel %vm2381, %v2370, %v2372
  %v2385 = vsel %vm2381, %v2374, %v2376
  %v2386 = vsel %vm2381, %v2376, %v2378
  %v2387 = vsel %vm2381, %v2378, %v2380
  %v2396 = vmax.f32 %v2349, %v2382
  %v2397 = vmax.f32 %v2350, %v2383
  %v2398 = vmax.f32 %v2351, %v2384
  %v2399 = vmax.f32 %v2352, %v2372
  %v2400 = vmax.f32 %v2353, %v2385
  %v2401 = vmax.f32 %v2354, %v2386
  %v2402 = vmax.f32 %v2355, %v2387
  %v2403 = vmax.f32 %v2356, %v2380
  %v2404 = vld [vmem:[%s3] sm:$0xff]
  %v2405 = vld [vmem:[%s3 + $0x8] sm:$0xff]
  %v2406 = vld [vmem:[%s3 + $0x10] sm:$0xff]
  %v2407 = vld [vmem:[%s3 + $0x18] sm:$0xff]
  %v2408 = vld [vmem:[%s3 + $0x20] sm:$0xff]
  %v2409 = vld [vmem:[%s3 + $0x28] sm:$0xff]
  %v2410 = vld [vmem:[%s3 + $0x30] sm:$0xff]
  %v2411 = vld [vmem:[%s3 + $0x38] sm:$0xff]
  %v2412 = vld [vmem:[%s3 + $0x40] sm:$0xff]
  %v2413 = vld [vmem:[%s3 + $0x48] sm:$0xff]
  %v2414 = vld [vmem:[%s3 + $0x50] sm:$0xff]
  %v2415 = vld [vmem:[%s3 + $0x58] sm:$0xff]
  %v2416 = vld [vmem:[%s3 + $0x60] sm:$0xff]
  %v2417 = vld [vmem:[%s3 + $0x68] sm:$0xff]
  %v2418 = vld [vmem:[%s3 + $0x70] sm:$0xff]
  %v2419 = vld [vmem:[%s3 + $0x78] sm:$0xff]
  %v2420 = vld [vmem:[%s3 + $0x80] sm:$0xff]
  %v2421 = vld [vmem:[%s3 + $0x88] sm:$0xff]
  %v2422 = vld [vmem:[%s3 + $0x90] sm:$0xff]
  %v2423 = vld [vmem:[%s3 + $0x98] sm:$0xff]
  %v2424 = vld [vmem:[%s3 + $0xa0] sm:$0xff]
  %v2425 = vld [vmem:[%s3 + $0xa8] sm:$0xff]
  %v2426 = vld [vmem:[%s3 + $0xb0] sm:$0xff]
  %v2427 = vld [vmem:[%s3 + $0xb8] sm:$0xff]
  %v2428 = vld [vmem:[%s3 + $0xc0] sm:$0xff]
  %v2429 = vld [vmem:[%s3 + $0xc8] sm:$0xff]
  %v2430 = vld [vmem:[%s3 + $0xd0] sm:$0xff]
  %v2431 = vld [vmem:[%s3 + $0xd8] sm:$0xff]
  %v2432 = vld [vmem:[%s3 + $0xe0] sm:$0xff]
  %v2433 = vld [vmem:[%s3 + $0xe8] sm:$0xff]
  %v2434 = vld [vmem:[%s3 + $0xf0] sm:$0xff]
  %v2435 = vld [vmem:[%s3 + $0xf8] sm:$0xff]
  %v2436 = vld [vmem:[%s3 + $0x100] sm:$0xff]
  %v2437 = vld [vmem:[%s3 + $0x108] sm:$0xff]
  %v2438 = vld [vmem:[%s3 + $0x110] sm:$0xff]
  %v2439 = vld [vmem:[%s3 + $0x118] sm:$0xff]
  %v2440 = vld [vmem:[%s3 + $0x120] sm:$0xff]
  %v2441 = vld [vmem:[%s3 + $0x128] sm:$0xff]
  %v2442 = vld [vmem:[%s3 + $0x130] sm:$0xff]
  %v2443 = vld [vmem:[%s3 + $0x138] sm:$0xff]
  %v2444 = vld [vmem:[%s3 + $0x140] sm:$0xff]
  %v2445 = vld [vmem:[%s3 + $0x148] sm:$0xff]
  %v2446 = vld [vmem:[%s3 + $0x150] sm:$0xff]
  %v2447 = vld [vmem:[%s3 + $0x158] sm:$0xff]
  %v2448 = vld [vmem:[%s3 + $0x160] sm:$0xff]
  %v2449 = vld [vmem:[%s3 + $0x168] sm:$0xff]
  %v2450 = vld [vmem:[%s3 + $0x170] sm:$0xff]
  %v2451 = vld [vmem:[%s3 + $0x178] sm:$0xff]
  %v2452 = vld [vmem:[%s3 + $0x180] sm:$0xff]
  %v2453 = vld [vmem:[%s3 + $0x188] sm:$0xff]
  %v2454 = vld [vmem:[%s3 + $0x190] sm:$0xff]
  %v2455 = vld [vmem:[%s3 + $0x198] sm:$0xff]
  %v2456 = vld [vmem:[%s3 + $0x1a0] sm:$0xff]
  %v2457 = vld [vmem:[%s3 + $0x1a8] sm:$0x3]
  %v2458 = vld [vmem:[%s4] sm:$0x1]
  %v2460 = vlaneseq
  %v2461 = vshrl.u32 %v2460, 7
  %v2462 = vsub.s32 0, %v2461
  %v2463 = vrot.slane %v2458, %v2462
  %vm2465 = vcmask 343040
  %v2467 = vsel %vm2465, %v2399, 0
  %v2470 = vsel %vm2465, %v2403, 0
  %vm2472 = vcmask 1041408
  %v2474 = vsel %vm2472, %v2457, 0
  %2476 = vmatprep.subr.mxu0 0.0
  %2477 = vmatpush1.msra.mxu0 %v2419
  %2478 = vmatprep.subr.mxu0 0.0
  %2479 = vmatpush1.msra.mxu0 %v2418
  %2480 = vmatprep.subr.mxu0 0.0
  %2481 = vmatpush1.msra.mxu0 %v2417
  %2482 = vmatprep.subr.mxu0 0.0
  %2483 = vmatpush1.msra.mxu0 %v2416
  %2484 = vmatprep.subr.mxu0 0.0
  %2485 = vmatpush1.msra.mxu0 %v2415
  %2486 = vmatprep.subr.mxu0 0.0
  %2487 = vmatpush1.msra.mxu0 %v2414
  %2488 = vmatprep.subr.mxu0 0.0
  %2489 = vmatpush1.msra.mxu0 %v2413
  %2490 = vmatprep.subr.mxu0 0.0
  %2491 = vmatpush1.msra.mxu0 %v2412
  %2492 = vmatprep.subr.mxu0 0.0
  %2493 = vmatpush1.msra.mxu0 %v2411
  %2494 = vmatprep.subr.mxu0 0.0
  %2495 = vmatpush1.msra.mxu0 %v2410
  %2496 = vmatprep.subr.mxu0 0.0
  %2497 = vmatpush1.msra.mxu0 %v2409
  %2498 = vmatprep.subr.mxu0 0.0
  %2499 = vmatpush1.msra.mxu0 %v2408
  %2500 = vmatprep.subr.mxu0 0.0
  %2501 = vmatpush1.msra.mxu0 %v2407
  %2502 = vmatprep.subr.mxu0 0.0
  %2503 = vmatpush1.msra.mxu0 %v2406
  %2504 = vmatprep.subr.mxu0 0.0
  %2505 = vmatpush1.msra.mxu0 %v2405
  %2506 = vmatprep.subr.mxu0 0.0
  %2507 = vmatpush1.msra.mxu0 %v2404
  %2508 = vmatprep.subr.mxu0 0.0
  %2509 = vmatpush2.msra.mxu0 %v2435
  %2510 = vmatprep.subr.mxu0 0.0
  %2511 = vmatpush2.msra.mxu0 %v2434
  %2512 = vmatprep.subr.mxu0 0.0
  %2513 = vmatpush2.msra.mxu0 %v2433
  %2514 = vmatprep.subr.mxu0 0.0
  %2515 = vmatpush2.msra.mxu0 %v2432
  %2516 = vmatprep.subr.mxu0 0.0
  %2517 = vmatpush2.msra.mxu0 %v2431
  %2518 = vmatprep.subr.mxu0 0.0
  %2519 = vmatpush2.msra.mxu0 %v2430
  %2520 = vmatprep.subr.mxu0 0.0
  %2521 = vmatpush2.msra.mxu0 %v2429
  %2522 = vmatprep.subr.mxu0 0.0
  %2523 = vmatpush2.msra.mxu0 %v2428
  %2524 = vmatprep.subr.mxu0 0.0
  %2525 = vmatpush2.msra.mxu0 %v2427
  %2526 = vmatprep.subr.mxu0 0.0
  %2527 = vmatpush2.msra.mxu0 %v2426
  %2528 = vmatprep.subr.mxu0 0.0
  %2529 = vmatpush2.msra.mxu0 %v2425
  %2530 = vmatprep.subr.mxu0 0.0
  %2531 = vmatpush2.msra.mxu0 %v2424
  %2532 = vmatprep.subr.mxu0 0.0
  %2533 = vmatpush2.msra.mxu0 %v2423
  %2534 = vmatprep.subr.mxu0 0.0
  %2535 = vmatpush2.msra.mxu0 %v2422
  %2536 = vmatprep.subr.mxu0 0.0
  %2537 = vmatpush2.msra.mxu0 %v2421
  %2538 = vmatprep.subr.mxu0 0.0
  %2539 = vmatpush2.msra.mxu0 %v2420
  %2540 = vmatprep.mubr.f32.mxu0 %v2397
  %2541 = vmatmul.mubr.f32.gmra.mxu0 %v2396
  %v2542 = vpop.f32.mrf.mxu0
  %v2543 = vadd.f32 %v2463, %v2542
  %v2544 = vpop.f32.mrf.mxu0
  %2545 = vmatprep.mubr.f32.mxu0 %v2401
  %2546 = vmatmul.mubr.f32.gmra.mxu0 %v2400
  %v2547 = vpop.f32.mrf.mxu0
  %v2548 = vadd.f32 %v2463, %v2547
  %v2549 = vpop.f32.mrf.mxu0
  %2550 = vdwg.mxu0
  %2551 = vmatprep.subr.mxu0 0.0
  %2552 = vmatpush1.msra.mxu0 %v2451
  %2553 = vmatprep.subr.mxu0 0.0
  %2554 = vmatpush1.msra.mxu0 %v2450
  %2555 = vmatprep.subr.mxu0 0.0
  %2556 = vmatpush1.msra.mxu0 %v2449
  %2557 = vmatprep.subr.mxu0 0.0
  %2558 = vmatpush1.msra.mxu0 %v2448
  %2559 = vmatprep.subr.mxu0 0.0
  %2560 = vmatpush1.msra.mxu0 %v2447
  %2561 = vmatprep.subr.mxu0 0.0
  %2562 = vmatpush1.msra.mxu0 %v2446
  %2563 = vmatprep.subr.mxu0 0.0
  %2564 = vmatpush1.msra.mxu0 %v2445
  %2565 = vmatprep.subr.mxu0 0.0
  %2566 = vmatpush1.msra.mxu0 %v2444
  %2567 = vmatprep.subr.mxu0 0.0
  %2568 = vmatpush1.msra.mxu0 %v2443
  %2569 = vmatprep.subr.mxu0 0.0
  %2570 = vmatpush1.msra.mxu0 %v2442
  %2571 = vmatprep.subr.mxu0 0.0
  %2572 = vmatpush1.msra.mxu0 %v2441
  %2573 = vmatprep.subr.mxu0 0.0
  %2574 = vmatpush1.msra.mxu0 %v2440
  %2575 = vmatprep.subr.mxu0 0.0
  %2576 = vmatpush1.msra.mxu0 %v2439
  %2577 = vmatprep.subr.mxu0 0.0
  %2578 = vmatpush1.msra.mxu0 %v2438
  %2579 = vmatprep.subr.mxu0 0.0
  %2580 = vmatpush1.msra.mxu0 %v2437
  %2581 = vmatprep.subr.mxu0 0.0
  %2582 = vmatpush1.msra.mxu0 %v2436
  %2583 = vmatprep.subr.mxu0 0.0
  %2584 = vmatpush2.msra.mxu0 0.0
  %2585 = vmatprep.subr.mxu0 0.0
  %2586 = vmatpush2.msra.mxu0 0.0
  %2587 = vmatprep.subr.mxu0 0.0
  %2588 = vmatpush2.msra.mxu0 0.0
  %2589 = vmatprep.subr.mxu0 0.0
  %2590 = vmatpush2.msra.mxu0 0.0
  %2591 = vmatprep.subr.mxu0 0.0
  %2592 = vmatpush2.msra.mxu0 0.0
  %2593 = vmatprep.subr.mxu0 0.0
  %2594 = vmatpush2.msra.mxu0 0.0
  %2595 = vmatprep.subr.mxu0 0.0
  %2596 = vmatpush2.msra.mxu0 0.0
  %2597 = vmatprep.subr.mxu0 0.0
  %2598 = vmatpush2.msra.mxu0 0.0
  %2599 = vmatprep.subr.mxu0 0.0
  %2600 = vmatpush2.msra.mxu0 0.0
  %2601 = vmatprep.subr.mxu0 0.0
  %2602 = vmatpush2.msra.mxu0 0.0
  %2603 = vmatprep.subr.mxu0 0.0
  %2604 = vmatpush2.msra.mxu0 %v2474
  %2605 = vmatprep.subr.mxu0 0.0
  %2606 = vmatpush2.msra.mxu0 %v2456
  %2607 = vmatprep.subr.mxu0 0.0
  %2608 = vmatpush2.msra.mxu0 %v2455
  %2609 = vmatprep.subr.mxu0 0.0
  %2610 = vmatpush2.msra.mxu0 %v2454
  %2611 = vmatprep.subr.mxu0 0.0
  %2612 = vmatpush2.msra.mxu0 %v2453
  %2613 = vmatprep.subr.mxu0 0.0
  %2614 = vmatpush2.msra.mxu0 %v2452
  %2615 = vmatprep.mubr.f32.mxu0 %v2467
  %2616 = vmatmul.mubr.f32.gmra.mxu0 %v2398
  %v2617 = vpop.f32.mrf.mxu0
  %v2618 = vadd.f32 %v2543, %v2617
  %v2619 = vpop.f32.mrf.mxu0
  %2620 = vmatprep.mubr.f32.mxu0 %v2470
  %2621 = vmatmul.mubr.f32.gmra.mxu0 %v2402
  %v2622 = vpop.f32.mrf.mxu0
  %v2623 = vadd.f32 %v2548, %v2622
  %v2624 = vpop.f32.mrf.mxu0
  %2625 = vdwg.mxu0
  %v2626 = vmax.f32 %v2618, 0.0
  %v2627 = vmax.f32 %v2623, 0.0
  %2630 = vrot.lane.b32.xlu0 %v2626, 96
  %v2631 = vpop.permute.xlu0 %2630
  %2632 = vrot.lane.b32.xlu0 %v2627, 96
  %v2633 = vpop.permute.xlu0 %2632
  %v2636 = vmax.f32 %v2626, %v2631
  %v2637 = vmax.f32 %v2627, %v2633
  %2640 = vrot.lane.b32.xlu0 %v2636, 112
  %v2641 = vpop.permute.xlu0 %2640
  %2642 = vrot.lane.b32.xlu0 %v2637, 112
  %v2643 = vpop.permute.xlu0 %2642
  %v2646 = vmax.f32 %v2636, %v2641
  %v2647 = vmax.f32 %v2637, %v2643
  %v2648 = vld [vmem:[%s5] sm:$0xff]
  %v2649 = vld [vmem:[%s5 + $0x8] sm:$0xff]
  %v2650 = vld [vmem:[%s6] sm:$0x1]
  %v2652 = vlaneseq
  %v2653 = vshrl.u32 %v2652, 7
  %v2654 = vsub.s32 0, %v2653
  %v2655 = vrot.slane %v2650, %v2654
  %vm2657 = vcmask 130048
  %v2659 = vsel %vm2657, %v2646, 0
  %v2662 = vsel %vm2657, %v2647, 0
  %2664 = vmatprep.subr.mxu0 0.0
  %2665 = vmatpush1.msra.mxu0 0.0
  %2666 = vmatprep.subr.mxu0 0.0
  %2667 = vmatpush1.msra.mxu0 0.0
  %2668 = vmatprep.subr.mxu0 0.0
  %2669 = vmatpush1.msra.mxu0 0.0
  %2670 = vmatprep.subr.mxu0 0.0
  %2671 = vmatpush1.msra.mxu0 0.0
  %2672 = vmatprep.subr.mxu0 0.0
  %2673 = vmatpush1.msra.mxu0 0.0
  %2674 = vmatprep.subr.mxu0 0.0
  %2675 = vmatpush1.msra.mxu0 0.0
  %2676 = vmatprep.subr.mxu0 0.0
  %2677 = vmatpush1.msra.mxu0 0.0
  %2678 = vmatprep.subr.mxu0 0.0
  %2679 = vmatpush1.msra.mxu0 0.0
  %2680 = vmatprep.subr.mxu0 0.0
  %2681 = vmatpush1.msra.mxu0 0.0
  %2682 = vmatprep.subr.mxu0 0.0
  %2683 = vmatpush1.msra.mxu0 0.0
  %2684 = vmatprep.subr.mxu0 0.0
  %2685 = vmatpush1.msra.mxu0 0.0
  %2686 = vmatprep.subr.mxu0 0.0
  %2687 = vmatpush1.msra.mxu0 0.0
  %2688 = vmatprep.subr.mxu0 0.0
  %2689 = vmatpush1.msra.mxu0 0.0
  %2690 = vmatprep.subr.mxu0 0.0
  %2691 = vmatpush1.msra.mxu0 0.0
  %2692 = vmatprep.subr.mxu0 0.0
  %2693 = vmatpush1.msra.mxu0 %v2649
  %2694 = vmatprep.subr.mxu0 0.0
  %2695 = vmatpush1.msra.mxu0 %v2648
  %2696 = vmatprep.subr.mxu0 0.0
  %2697 = vmatpush2.msra.mxu0 0.0
  %2698 = vmatprep.subr.mxu0 0.0
  %2699 = vmatpush2.msra.mxu0 0.0
  %2700 = vmatprep.subr.mxu0 0.0
  %2701 = vmatpush2.msra.mxu0 0.0
  %2702 = vmatprep.subr.mxu0 0.0
  %2703 = vmatpush2.msra.mxu0 0.0
  %2704 = vmatprep.subr.mxu0 0.0
  %2705 = vmatpush2.msra.mxu0 0.0
  %2706 = vmatprep.subr.mxu0 0.0
  %2707 = vmatpush2.msra.mxu0 0.0
  %2708 = vmatprep.subr.mxu0 0.0
  %2709 = vmatpush2.msra.mxu0 0.0
  %2710 = vmatprep.subr.mxu0 0.0
  %2711 = vmatpush2.msra.mxu0 0.0
  %2712 = vmatprep.subr.mxu0 0.0
  %2713 = vmatpush2.msra.mxu0 0.0
  %2714 = vmatprep.subr.mxu0 0.0
  %2715 = vmatpush2.msra.mxu0 0.0
  %2716 = vmatprep.subr.mxu0 0.0
  %2717 = vmatpush2.msra.mxu0 0.0
  %2718 = vmatprep.subr.mxu0 0.0
  %2719 = vmatpush2.msra.mxu0 0.0
  %2720 = vmatprep.subr.mxu0 0.0
  %2721 = vmatpush2.msra.mxu0 0.0
  %2722 = vmatprep.subr.mxu0 0.0
  %2723 = vmatpush2.msra.mxu0 0.0
  %2724 = vmatprep.subr.mxu0 0.0
  %2725 = vmatpush2.msra.mxu0 0.0
  %2726 = vmatprep.subr.mxu0 0.0
  %2727 = vmatpush2.msra.mxu0 0.0
  %2728 = vmatprep.mubr.f32.mxu0 0.0
  %2729 = vmatmul.mubr.f32.gmra.mxu0 %v2659
  %v2730 = vpop.f32.mrf.mxu0
  %v2731 = vadd.f32 %v2655, %v2730
  %v2732 = vpop.f32.mrf.mxu0
  %2733 = vmatprep.mubr.f32.mxu0 0.0
  %2734 = vmatmul.mubr.f32.gmra.mxu0 %v2662
  %v2735 = vpop.f32.mrf.mxu0
  %v2736 = vadd.f32 %v2655, %v2735
  %v2737 = vpop.f32.mrf.mxu0
  %2738 = vdwg.mxu0
  %v2739 = vmax.f32 %v2731, 0.0
  %v2740 = vmax.f32 %v2736, 0.0
  %v2741 = vld [vmem:[%s7] sm:$0xff]
  %v2742 = vld [vmem:[%s7 + $0x8] sm:$0xff]
  %v2743 = vld [vmem:[%s7 + $0x10] sm:$0xff]
  %v2744 = vld [vmem:[%s7 + $0x18] sm:$0xff]
  %v2745 = vld [vmem:[%s7 + $0x20] sm:$0xff]
  %v2746 = vld [vmem:[%s7 + $0x28] sm:$0xff]
  %v2747 = vld [vmem:[%s7 + $0x30] sm:$0xff]
  %v2748 = vld [vmem:[%s7 + $0x38] sm:$0xff]
  %v2749 = vld [vmem:[%s7 + $0x40] sm:$0xff]
  %v2750 = vld [vmem:[%s7 + $0x48] sm:$0xff]
  %v2751 = vld [vmem:[%s7 + $0x50] sm:$0xff]
  %v2752 = vld [vmem:[%s7 + $0x58] sm:$0xff]
  %v2753 = vld [vmem:[%s7 + $0x60] sm:$0xff]
  %v2754 = vld [vmem:[%s7 + $0x68] sm:$0xff]
  %v2755 = vld [vmem:[%s7 + $0x70] sm:$0xff]
  %v2756 = vld [vmem:[%s8] sm:$0x1]
  %v2758 = vlaneseq
  %v2759 = vshrl.u32 %v2758, 7
  %v2760 = vsub.s32 0, %v2759
  %v2761 = vrot.slane %v2756, %v2760
  %vm2763 = vcmask 982016
  %v2765 = vsel %vm2763, %v2739, 0
  %v2768 = vsel %vm2763, %v2740, 0
  %2770 = vmatprep.subr.mxu0 0.0
  %2771 = vmatpush1.msra.mxu0 0.0
  %2772 = vmatprep.subr.mxu0 0.0
  %2773 = vmatpush1.msra.mxu0 %v2755
  %2774 = vmatprep.subr.mxu0 0.0
  %2775 = vmatpush1.msra.mxu0 %v2754
  %2776 = vmatprep.subr.mxu0 0.0
  %2777 = vmatpush1.msra.mxu0 %v2753
  %2778 = vmatprep.subr.mxu0 0.0
  %2779 = vmatpush1.msra.mxu0 %v2752
  %2780 = vmatprep.subr.mxu0 0.0
  %2781 = vmatpush1.msra.mxu0 %v2751
  %2782 = vmatprep.subr.mxu0 0.0
  %2783 = vmatpush1.msra.mxu0 %v2750
  %2784 = vmatprep.subr.mxu0 0.0
  %2785 = vmatpush1.msra.mxu0 %v2749
  %2786 = vmatprep.subr.mxu0 0.0
  %2787 = vmatpush1.msra.mxu0 %v2748
  %2788 = vmatprep.subr.mxu0 0.0
  %2789 = vmatpush1.msra.mxu0 %v2747
  %2790 = vmatprep.subr.mxu0 0.0
  %2791 = vmatpush1.msra.mxu0 %v2746
  %2792 = vmatprep.subr.mxu0 0.0
  %2793 = vmatpush1.msra.mxu0 %v2745
  %2794 = vmatprep.subr.mxu0 0.0
  %2795 = vmatpush1.msra.mxu0 %v2744
  %2796 = vmatprep.subr.mxu0 0.0
  %2797 = vmatpush1.msra.mxu0 %v2743
  %2798 = vmatprep.subr.mxu0 0.0
  %2799 = vmatpush1.msra.mxu0 %v2742
  %2800 = vmatprep.subr.mxu0 0.0
  %2801 = vmatpush1.msra.mxu0 %v2741
  %2802 = vmatprep.subr.mxu0 0.0
  %2803 = vmatpush2.msra.mxu0 0.0
  %2804 = vmatprep.subr.mxu0 0.0
  %2805 = vmatpush2.msra.mxu0 0.0
  %2806 = vmatprep.subr.mxu0 0.0
  %2807 = vmatpush2.msra.mxu0 0.0
  %2808 = vmatprep.subr.mxu0 0.0
  %2809 = vmatpush2.msra.mxu0 0.0
  %2810 = vmatprep.subr.mxu0 0.0
  %2811 = vmatpush2.msra.mxu0 0.0
  %2812 = vmatprep.subr.mxu0 0.0
  %2813 = vmatpush2.msra.mxu0 0.0
  %2814 = vmatprep.subr.mxu0 0.0
  %2815 = vmatpush2.msra.mxu0 0.0
  %2816 = vmatprep.subr.mxu0 0.0
  %2817 = vmatpush2.msra.mxu0 0.0
  %2818 = vmatprep.subr.mxu0 0.0
  %2819 = vmatpush2.msra.mxu0 0.0
  %2820 = vmatprep.subr.mxu0 0.0
  %2821 = vmatpush2.msra.mxu0 0.0
  %2822 = vmatprep.subr.mxu0 0.0
  %2823 = vmatpush2.msra.mxu0 0.0
  %2824 = vmatprep.subr.mxu0 0.0
  %2825 = vmatpush2.msra.mxu0 0.0
  %2826 = vmatprep.subr.mxu0 0.0
  %2827 = vmatpush2.msra.mxu0 0.0
  %2828 = vmatprep.subr.mxu0 0.0
  %2829 = vmatpush2.msra.mxu0 0.0
  %2830 = vmatprep.subr.mxu0 0.0
  %2831 = vmatpush2.msra.mxu0 0.0
  %2832 = vmatprep.subr.mxu0 0.0
  %2833 = vmatpush2.msra.mxu0 0.0
  %2834 = vmatprep.mubr.f32.mxu0 0.0
  %2835 = vmatmul.mubr.f32.gmra.mxu0 %v2765
  %v2836 = vpop.f32.mrf.mxu0
  %v2837 = vadd.f32 %v2761, %v2836
  %v2838 = vpop.f32.mrf.mxu0
  %2839 = vmatprep.mubr.f32.mxu0 0.0
  %2840 = vmatmul.mubr.f32.gmra.mxu0 %v2768
  %v2841 = vpop.f32.mrf.mxu0
  %v2842 = vadd.f32 %v2761, %v2841
  %v2843 = vpop.f32.mrf.mxu0
  %2844 = vdwg.mxu0
  %v2845 = vmax.f32 %v2837, 0.0
  %v2846 = vmax.f32 %v2842, 0.0
  %v2847 = vld [vmem:[%s9] sm:$0xff]
  %v2848 = vld [vmem:[%s9 + $0x8] sm:$0xff]
  %v2849 = vld [vmem:[%s9 + $0x10] sm:$0xff]
  %v2850 = vld [vmem:[%s9 + $0x18] sm:$0xff]
  %v2851 = vld [vmem:[%s9 + $0x20] sm:$0xff]
  %v2852 = vld [vmem:[%s9 + $0x28] sm:$0xff]
  %v2853 = vld [vmem:[%s9 + $0x30] sm:$0xff]
  %v2854 = vld [vmem:[%s9 + $0x38] sm:$0xff]
  %v2855 = vld [vmem:[%s9 + $0x40] sm:$0xff]
  %v2856 = vld [vmem:[%s9 + $0x48] sm:$0xff]
  %v2857 = vld [vmem:[%s9 + $0x50] sm:$0xf]
  %v2858 = vld [vmem:[%s10] sm:$0x1]
  %v2860 = vlaneseq
  %v2861 = vshrl.u32 %v2860, 7
  %v2862 = vsub.s32 0, %v2861
  %v2863 = vrot.slane %v2858, %v2862
  %vm2865 = vcmask 687104
  %v2867 = vsel %vm2865, %v2845, 0
  %v2870 = vsel %vm2865, %v2846, 0
  %vm2872 = vcmask 1043456
  %v2874 = vsel %vm2872, %v2857, 0
  %2876 = vmatprep.subr.mxu0 0.0
  %2877 = vmatpush1.msra.mxu0 0.0
  %2878 = vmatprep.subr.mxu0 0.0
  %2879 = vmatpush1.msra.mxu0 0.0
  %2880 = vmatprep.subr.mxu0 0.0
  %2881 = vmatpush1.msra.mxu0 0.0
  %2882 = vmatprep.subr.mxu0 0.0
  %2883 = vmatpush1.msra.mxu0 0.0
  %2884 = vmatprep.subr.mxu0 0.0
  %2885 = vmatpush1.msra.mxu0 0.0
  %2886 = vmatprep.subr.mxu0 0.0
  %2887 = vmatpush1.msra.mxu0 %v2874
  %2888 = vmatprep.subr.mxu0 0.0
  %2889 = vmatpush1.msra.mxu0 %v2856
  %2890 = vmatprep.subr.mxu0 0.0
  %2891 = vmatpush1.msra.mxu0 %v2855
  %2892 = vmatprep.subr.mxu0 0.0
  %2893 = vmatpush1.msra.mxu0 %v2854
  %2894 = vmatprep.subr.mxu0 0.0
  %2895 = vmatpush1.msra.mxu0 %v2853
  %2896 = vmatprep.subr.mxu0 0.0
  %2897 = vmatpush1.msra.mxu0 %v2852
  %2898 = vmatprep.subr.mxu0 0.0
  %2899 = vmatpush1.msra.mxu0 %v2851
  %2900 = vmatprep.subr.mxu0 0.0
  %2901 = vmatpush1.msra.mxu0 %v2850
  %2902 = vmatprep.subr.mxu0 0.0
  %2903 = vmatpush1.msra.mxu0 %v2849
  %2904 = vmatprep.subr.mxu0 0.0
  %2905 = vmatpush1.msra.mxu0 %v2848
  %2906 = vmatprep.subr.mxu0 0.0
  %2907 = vmatpush1.msra.mxu0 %v2847
  %2908 = vmatprep.subr.mxu0 0.0
  %2909 = vmatpush2.msra.mxu0 0.0
  %2910 = vmatprep.subr.mxu0 0.0
  %2911 = vmatpush2.msra.mxu0 0.0
  %2912 = vmatprep.subr.mxu0 0.0
  %2913 = vmatpush2.msra.mxu0 0.0
  %2914 = vmatprep.subr.mxu0 0.0
  %2915 = vmatpush2.msra.mxu0 0.0
  %2916 = vmatprep.subr.mxu0 0.0
  %2917 = vmatpush2.msra.mxu0 0.0
  %2918 = vmatprep.subr.mxu0 0.0
  %2919 = vmatpush2.msra.mxu0 0.0
  %2920 = vmatprep.subr.mxu0 0.0
  %2921 = vmatpush2.msra.mxu0 0.0
  %2922 = vmatprep.subr.mxu0 0.0
  %2923 = vmatpush2.msra.mxu0 0.0
  %2924 = vmatprep.subr.mxu0 0.0
  %2925 = vmatpush2.msra.mxu0 0.0
  %2926 = vmatprep.subr.mxu0 0.0
  %2927 = vmatpush2.msra.mxu0 0.0
  %2928 = vmatprep.subr.mxu0 0.0
  %2929 = vmatpush2.msra.mxu0 0.0
  %2930 = vmatprep.subr.mxu0 0.0
  %2931 = vmatpush2.msra.mxu0 0.0
  %2932 = vmatprep.subr.mxu0 0.0
  %2933 = vmatpush2.msra.mxu0 0.0
  %2934 = vmatprep.subr.mxu0 0.0
  %2935 = vmatpush2.msra.mxu0 0.0
  %2936 = vmatprep.subr.mxu0 0.0
  %2937 = vmatpush2.msra.mxu0 0.0
  %2938 = vmatprep.subr.mxu0 0.0
  %2939 = vmatpush2.msra.mxu0 0.0
  %2940 = vmatprep.mubr.f32.mxu0 0.0
  %2941 = vmatmul.mubr.f32.gmra.mxu0 %v2867
  %v2942 = vpop.f32.mrf.mxu0
  %v2943 = vadd.f32 %v2863, %v2942
  %v2944 = vpop.f32.mrf.mxu0
  %2945 = vmatprep.mubr.f32.mxu0 0.0
  %2946 = vmatmul.mubr.f32.gmra.mxu0 %v2870
  %v2947 = vpop.f32.mrf.mxu0
  %v2948 = vadd.f32 %v2863, %v2947
  %v2949 = vpop.f32.mrf.mxu0
  %2950 = vdwg.mxu0
  %2951 = vst [vmem:[%s11] sm:$0xff] %v2943
  %2952 = vst [vmem:[%s11 + $0x8] sm:$0xff] %v2948
  // Predicated region
  $region46: #{simple_net_forward.1} parent=0 // pred_check
    _
  $region47: #{simple_net_forward.1} parent=0 // pred_check_branch
    %2954 = sbr.rel (0) target = $region49
  $region48: #{simple_net_forward.1} parent=0 // pred_region
    _
  $region49: #{simple_net_forward.1} parent=0 // pred_fallthru
    _
  // Predicated region
  $region50: #{simple_net_forward.1} parent=0 // pred_check
    _
  $region51: #{simple_net_forward.1} parent=0 // pred_check_branch
    %2956 = sbr.rel (0) target = $region53
  $region52: #{simple_net_forward.1} parent=0 // pred_region
    _
  $region53: #{simple_net_forward.1} parent=0 // pred_fallthru
    _

</llo_original>
